<compile_context>
chip_gen: v7x
topology: tpu7x:2x2x1
jax: 0.10.0
libtpu: 0.0.40
codegen_flags: <defaults>
</compile_context>

<pallas_src>
import numpy as np
import jax
import jax.numpy as jnp
from jax.experimental import pallas as pl
from jax.experimental.pallas import tpu as pltpu

V_SIZE = 16                 # conf['data']['v_size']
L_SIZE = 8                  # row/column weight of H
E_SIZE = V_SIZE * L_SIZE    # conf['data']['e_size'] = 128
V_PAD = 128                 # lane-dense padding for x / output (unmasked vst)
BATCH = 256                 # demo batch (fills MXU rows, 2-step parallel grid)
CLIP = 10.0
N_LAYERS = 5
EPS_SAT = 1e-6              # guard so (1 - loo) never hits exactly 0 -> +/-inf


# ----------------------------------------------------------------------------
# Synthetic H + permutation construction (faithful translation of __init__)
# ----------------------------------------------------------------------------
def build_H(v_size, l_size):
    # TODO(synk): original code does np.loadtxt(conf['data']['H_path']); we synthesize
    # a deterministic regular circulant parity-check matrix instead.
    shifts = [0, 1, 2, 3, 5, 7, 11, 13][:l_size]
    H = np.zeros((v_size, v_size), dtype=np.int64)
    for i in range(v_size):
        for s in shifts:
            H[i][(i + s) % v_size] = 1
    return H


def build_permutations(H, v_size, e_size):
    count = 0
    pos_cyclic_col = np.zeros([v_size, v_size], dtype=np.int64)
    for i in range(v_size):
        for j in range(v_size):
            if H[(j + i) % v_size][i] == 1:
                pos_cyclic_col[(j + i) % v_size, i] = count
                count += 1
    count = 0
    pos_cyclic_row = np.zeros([v_size, v_size], dtype=np.int64)
    for i in range(v_size):
        for j in range(v_size):
            if H[i][(j + i) % v_size] == 1:
                pos_cyclic_row[i, (j + i) % v_size] = count
                count += 1
    cycrowtocyccol = np.zeros(e_size, dtype=np.int64)
    for i in range(v_size):
        for j in range(v_size):
            if H[i][j] == 1:
                cycrowtocyccol[int(pos_cyclic_col[i][j])] = pos_cyclic_row[i][j]
    cyccoltocycrow = np.zeros(e_size, dtype=np.int64)
    for i in range(v_size):
        for j in range(v_size):
            if H[i][j] == 1:
                cyccoltocycrow[int(pos_cyclic_row[i][j])] = pos_cyclic_col[i][j]
    P_r2c = np.zeros([e_size, e_size], dtype=np.float32)
    for cnt, j in enumerate(cycrowtocyccol):
        P_r2c[int(j)][cnt] = 1.0
    P_c2r = np.zeros([e_size, e_size], dtype=np.float32)
    for cnt, j in enumerate(cyccoltocycrow):
        P_c2r[int(j)][cnt] = 1.0
    return P_r2c, P_c2r


# ----------------------------------------------------------------------------
# Wrapper-side fusion of permutations with (masked) weights into dense matrices
# ----------------------------------------------------------------------------
def fuse_parameters(pr2c, pc2r, wv, we, weout, v_pad):
    """Precompute fused (bf16) matrices so the kernel body is only full-width MXU
    matmuls + full-vreg elementwise ops.  Permutations commute with elementwise ops,
    so P_c2r folds directly into the leave-one-out group-sum matrix."""
    n_layers, L = wv.shape
    E = pr2c.shape[0]
    V = E // L
    eye_v = jnp.eye(V, dtype=jnp.float32)
    mask_e = jnp.ones((L, L), jnp.float32) - jnp.eye(L, dtype=jnp.float32)
    # per-layer variable-node expansion, wv folded in:  v_out = x_pad @ C_l
    #   C_l[v, v*L + j] = wv[l, j]   (zero rows for the padded lanes of x)
    C_l = jnp.stack([jnp.kron(eye_v, wv[l:l + 1, :]) for l in range(n_layers)])
    C_l = jnp.pad(C_l, ((0, 0), (0, v_pad - V), (0, 0)))                 # [NL, v_pad, E]
    # odd layer edge mixing:  e_out = msg @ (P_r2c @ blockdiag_V(mask_e * we_l))
    A = jnp.stack([pr2c @ jnp.kron(eye_v, mask_e * we[l]) for l in range(n_layers)])
    # even layer leave-one-out group sum (self excluded), fused with P_c2r
    B_loo = pc2r @ jnp.kron(eye_v, mask_e)
    # output layer:  e_out = msg @ (P_r2c @ blockdiag_V(weout^T)), zero-padded lanes
    M_out = pr2c @ jnp.kron(eye_v, weout.reshape(L, 1))                  # [E, V]
    M_out = jnp.pad(M_out, ((0, 0), (0, v_pad - V)))                     # [E, v_pad]
    bf = lambda a: a.astype(jnp.bfloat16)    # exact for the 0/1 entries of B_loo
    return bf(C_l), bf(A), bf(B_loo), bf(M_out)


# ----------------------------------------------------------------------------
# Pallas kernel: full 5-iteration odd/even message passing + output layer
# ----------------------------------------------------------------------------
def cycnet_kernel(x_ref, cl_ref, a_ref, bloo_ref, mout_ref, out_ref):
    tb = x_ref.shape[0]
    e = a_ref.shape[-1]
    x_bf = x_ref[...].astype(jnp.bfloat16)                               # [TB, V_PAD]
    bloo = bloo_ref[...]                                                 # [E, E] bf16

    msg = jnp.zeros((tb, e), jnp.float32)                                # train_message
    for layer in range(N_LAYERS):
        # -------- odd layer: 2 bf16 MXU matmuls + full-vreg VPU/EUP elementwise ------
        v_out = jnp.dot(x_bf, cl_ref[layer], preferred_element_type=jnp.float32)
        e_out = jnp.dot(msg.astype(jnp.bfloat16), a_ref[layer],
                        preferred_element_type=jnp.float32)
        odd = jnp.tanh(0.5 * jnp.clip(v_out + e_out, -CLIP, CLIP))

        # -------- even layer: leave-one-out product via ONE fused log-domain matmul --
        # exact-zero guard (applied pre-permutation; the permutation only reorders
        # lanes, so this matches the reference's guard on the permuted messages)
        g = odd + (1.0 - (jnp.abs(odd) > 0).astype(jnp.float32))
        log_abs = jnp.log(jnp.abs(g))
        neg = (g < 0.0).astype(jnp.float32)
        # shared-RHS fusion: [log|g| ; neg] @ B_loo in a single [2*TB, E] matmul
        lhs = jnp.concatenate([log_abs, neg], axis=0).astype(jnp.bfloat16)
        res = jnp.dot(lhs, bloo, preferred_element_type=jnp.float32)
        loo_log = res[:tb]
        neg_cnt = res[tb:]
        parity = neg_cnt - 2.0 * jnp.floor(0.5 * neg_cnt)                # exactly 0/1
        sign = 1.0 - 2.0 * parity
        loo = sign * jnp.exp(loo_log)                                    # LOO product
        if layer == 0:
            loo = jnp.clip(loo, -CLIP, CLIP)                             # flag_clip
        # robustness guard: matmul rounding can push exp(loo_log) to exactly 1.0,
        # which would give msg = +/-inf; clamp just inside (-1, 1).
        loo = jnp.clip(loo, -(1.0 - EPS_SAT), 1.0 - EPS_SAT)
        msg = jnp.log((1.0 + loo) * pl.reciprocal(1.0 - loo, approx=True))

    # -------- output layer: one [TB,E]x[E,V_PAD] matmul + one unmasked lane-dense store
    out_ref[...] = x_ref[...] + jnp.dot(msg.astype(jnp.bfloat16), mout_ref[...],
                                        preferred_element_type=jnp.float32)


def _pick_tiling(batch):
    """Pick batch tile TB (multiple of 8) and padded batch.  Mid-sized batches get a
    >=2-step grid so dimension_semantics=('parallel',) can use both v7x TensorCores;
    large batches use 256-row tiles to fill MXU rows."""
    b8 = pl.cdiv(batch, 8) * 8
    if b8 <= 16:
        tb = b8
    elif b8 <= 512:
        tb = pl.cdiv(pl.cdiv(b8, 2), 8) * 8
    else:
        tb = 256
    b_pad = pl.cdiv(b8, tb) * tb
    return tb, b_pad


@jax.jit
def cycnet_forward(x, pr2c, pc2r, wv, we, weout):
    B, V = x.shape
    E = pr2c.shape[0]
    NL = wv.shape[0]
    C_l, A, B_loo, M_out = fuse_parameters(pr2c, pc2r, wv, we, weout, V_PAD)

    TB, B_pad = _pick_tiling(B)
    x_pad = jnp.pad(x.astype(jnp.float32), ((0, B_pad - B), (0, V_PAD - V)))

    grid = (B_pad // TB,)
    full2 = lambda i: (0, 0)

    out = pl.pallas_call(
        cycnet_kernel,
        out_shape=jax.ShapeDtypeStruct((B_pad, V_PAD), jnp.float32),
        grid_spec=pltpu.PrefetchScalarGridSpec(
            num_scalar_prefetch=0,
            grid=grid,
            in_specs=[
                pl.BlockSpec((TB, V_PAD), lambda i: (i, 0)),           # x (lane-padded)
                pl.BlockSpec((NL, V_PAD, E), lambda i: (0, 0, 0)),     # fused C_l (bf16)
                pl.BlockSpec((NL, E, E), lambda i: (0, 0, 0)),         # fused odd A_l
                pl.BlockSpec((E, E), full2),                           # fused LOO matrix
                pl.BlockSpec((E, V_PAD), full2),                       # fused output mat
            ],
            out_specs=pl.BlockSpec((TB, V_PAD), lambda i: (i, 0)),
        ),
        compiler_params=pltpu.CompilerParams(dimension_semantics=("parallel",)),
    )(x_pad, C_l, A, B_loo, M_out)
    return out[:B, :V]


# ----------------------------------------------------------------------------
# Pure-JAX reference (mirrors the torch forward op-for-op, all f32) for validation
# ----------------------------------------------------------------------------
def reference_forward(x, pr2c, pc2r, wv, we, weout):
    B, V = x.shape
    E = pr2c.shape[0]
    L = E // V
    mask = 1.0 - jnp.eye(L, dtype=jnp.float32)
    msg = jnp.zeros((B, E), jnp.float32)

    def odd(ie, wvl, wel):
        v_out = (x[:, :, None] * wvl[None, None, :]).reshape(B, E)
        ie = ie @ pr2c
        e_out = (ie.reshape(B, V, L) @ (wel * mask)).reshape(B, E)
        return jnp.tanh(0.5 * jnp.clip(v_out + e_out, -CLIP, CLIP))

    def even(o, fc):
        ev = (o @ pc2r).reshape(B, V, L)
        ev = ev + (1.0 - (jnp.abs(ev) > 0).astype(jnp.float32))
        loo = (jnp.prod(ev, -1, keepdims=True) / ev).reshape(B, E)
        if fc:
            loo = jnp.clip(loo, -CLIP, CLIP)
        return jnp.log((1.0 + loo) / (1.0 - loo))

    fc = True
    for l in range(N_LAYERS):
        o = odd(msg, wv[l], we[l])
        msg = even(o, fc)
        fc = False
    e_out = (msg @ pr2c).reshape(B, V, L) @ weout[0]
    return x + e_out


if __name__ == "__main__":
    H = build_H(V_SIZE, L_SIZE)
    P_r2c_np, P_c2r_np = build_permutations(H, V_SIZE, E_SIZE)
    pr2c = jnp.asarray(P_r2c_np, dtype=jnp.float32)
    pc2r = jnp.asarray(P_c2r_np, dtype=jnp.float32)

    key = jax.random.PRNGKey(0)
    kx, kv, ke, ko = jax.random.split(key, 4)
    # stacked per-layer parameters (oddw_v1..5, oddw_e1..5), deterministic init
    wv = 0.5 * jax.random.normal(kv, (N_LAYERS, L_SIZE), dtype=jnp.float32)
    we = 0.5 * jax.random.normal(ke, (N_LAYERS, L_SIZE, L_SIZE), dtype=jnp.float32)
    weout = 0.5 * jax.random.normal(ko, (1, L_SIZE), dtype=jnp.float32)

    # main run: MXU-filling batch with a 2-step parallel grid; plus a tiny-batch run
    # to exercise the padding / small-tile path.
    for batch in (BATCH, 8):
        x = jax.random.normal(kx, (batch, V_SIZE), dtype=jnp.float32)
        out = jax.block_until_ready(cycnet_forward(x, pr2c, pc2r, wv, we, weout))
        ref = jax.block_until_ready(reference_forward(x, pr2c, pc2r, wv, we, weout))
        assert out.shape == (batch, V_SIZE)
        assert bool(jnp.all(jnp.isfinite(out)))
        np.testing.assert_allclose(np.asarray(out), np.asarray(ref),
                                   rtol=2e-2, atol=2e-2)
    print("KERNEL_OK")
</pallas_src>

<mosaic_0001>
module attributes {stable_mosaic.version = 11 : i64} {
  func.func @cycnet_kernel(%arg0: i32, %arg1: memref<128x128xf32, #tpu.memory_space<vmem>>, %arg2: memref<5x128x128xbf16, #tpu.memory_space<vmem>>, %arg3: memref<5x128x128xbf16, #tpu.memory_space<vmem>>, %arg4: memref<128x128xbf16, #tpu.memory_space<vmem>>, %arg5: memref<128x128xbf16, #tpu.memory_space<vmem>>, %arg6: memref<128x128xf32, #tpu.memory_space<vmem>>) attributes {dimension_semantics = [#tpu.dimension_semantics<parallel>], iteration_bounds = array<i64: 2>, scalar_prefetch = 0 : i64, scratch_operands = 0 : i64, tpu.core_type = #tpu.core_type<tc>, window_params = [{transform_indices = @transform_0, window_bounds = array<i64: 128, 128>}, {pipeline_mode = #tpu.pipeline_mode<synchronous>, transform_indices = @transform_1, window_bounds = array<i64: 5, 128, 128>}, {pipeline_mode = #tpu.pipeline_mode<synchronous>, transform_indices = @transform_2, window_bounds = array<i64: 5, 128, 128>}, {pipeline_mode = #tpu.pipeline_mode<synchronous>, transform_indices = @transform_3, window_bounds = array<i64: 128, 128>}, {pipeline_mode = #tpu.pipeline_mode<synchronous>, transform_indices = @transform_4, window_bounds = array<i64: 128, 128>}, {transform_indices = @transform_5, window_bounds = array<i64: 128, 128>}]} {
    %c0 = arith.constant 0 : index
    %c0_0 = arith.constant 0 : index
    %0 = vector.load %arg1[%c0, %c0_0] : memref<128x128xf32, #tpu.memory_space<vmem>>, vector<128x128xf32>
    %1 = arith.truncf %0 : vector<128x128xf32> to vector<128x128xbf16>
    %c0_1 = arith.constant 0 : index
    %c0_2 = arith.constant 0 : index
    %2 = vector.load %arg4[%c0_1, %c0_2] : memref<128x128xbf16, #tpu.memory_space<vmem>>, vector<128x128xbf16>
    %cst = arith.constant 0.000000e+00 : f32
    %3 = vector.broadcast %cst : f32 to vector<128x128xf32>
    %c0_3 = arith.constant 0 : index
    %c0_4 = arith.constant 0 : index
    %c0_5 = arith.constant 0 : index
    %4 = vector.load %arg2[%c0_3, %c0_4, %c0_5] : memref<5x128x128xbf16, #tpu.memory_space<vmem>>, vector<1x128x128xbf16>
    %5 = vector.shape_cast %4 : vector<1x128x128xbf16> to vector<128x128xbf16>
    %cst_6 = arith.constant dense<0.000000e+00> : vector<128x128xf32>
    %6 = tpu.matmul %1, %5, %cst_6 {dimension_numbers = #tpu.dot_dimension_numbers<[1], [0], [0], [1], [0, 0, 1, 1], [], []>} : vector<128x128xbf16>, vector<128x128xbf16>, vector<128x128xf32> -> vector<128x128xf32>
    %7 = arith.truncf %3 : vector<128x128xf32> to vector<128x128xbf16>
    %c0_7 = arith.constant 0 : index
    %c0_8 = arith.constant 0 : index
    %c0_9 = arith.constant 0 : index
    %8 = vector.load %arg3[%c0_7, %c0_8, %c0_9] : memref<5x128x128xbf16, #tpu.memory_space<vmem>>, vector<1x128x128xbf16>
    %9 = vector.shape_cast %8 : vector<1x128x128xbf16> to vector<128x128xbf16>
    %cst_10 = arith.constant dense<0.000000e+00> : vector<128x128xf32>
    %10 = tpu.matmul %7, %9, %cst_10 {dimension_numbers = #tpu.dot_dimension_numbers<[1], [0], [0], [1], [0, 0, 1, 1], [], []>} : vector<128x128xbf16>, vector<128x128xbf16>, vector<128x128xf32> -> vector<128x128xf32>
    %11 = arith.addf %6, %10 : vector<128x128xf32>
    %cst_11 = arith.constant -1.000000e+01 : f32
    %cst_12 = arith.constant 1.000000e+01 : f32
    %12 = vector.broadcast %cst_11 : f32 to vector<128x128xf32>
    %13 = arith.maximumf %12, %11 : vector<128x128xf32>
    %14 = vector.broadcast %cst_12 : f32 to vector<128x128xf32>
    %15 = arith.minimumf %14, %13 : vector<128x128xf32>
    %cst_13 = arith.constant 5.000000e-01 : f32
    %16 = vector.broadcast %cst_13 : f32 to vector<128x128xf32>
    %17 = arith.mulf %16, %15 : vector<128x128xf32>
    %18 = math.tanh %17 : vector<128x128xf32>
    %19 = math.absf %18 : vector<128x128xf32>
    %cst_14 = arith.constant 0.000000e+00 : f32
    %20 = vector.broadcast %cst_14 : f32 to vector<128x128xf32>
    %21 = arith.cmpf ogt, %19, %20 : vector<128x128xf32>
    %22 = arith.extui %21 : vector<128x128xi1> to vector<128x128xi32>
    %23 = arith.sitofp %22 : vector<128x128xi32> to vector<128x128xf32>
    %cst_15 = arith.constant 1.000000e+00 : f32
    %24 = vector.broadcast %cst_15 : f32 to vector<128x128xf32>
    %25 = arith.subf %24, %23 : vector<128x128xf32>
    %26 = arith.addf %18, %25 : vector<128x128xf32>
    %27 = math.absf %26 : vector<128x128xf32>
    %28 = math.log %27 : vector<128x128xf32>
    %cst_16 = arith.constant 0.000000e+00 : f32
    %29 = vector.broadcast %cst_16 : f32 to vector<128x128xf32>
    %30 = arith.cmpf olt, %26, %29 : vector<128x128xf32>
    %31 = arith.extui %30 : vector<128x128xi1> to vector<128x128xi32>
    %32 = arith.sitofp %31 : vector<128x128xi32> to vector<128x128xf32>
    %33 = tpu.concatenate %28, %32 in 0 : vector<128x128xf32>, vector<128x128xf32> -> vector<256x128xf32>
    %34 = arith.truncf %33 : vector<256x128xf32> to vector<256x128xbf16>
    %cst_17 = arith.constant dense<0.000000e+00> : vector<256x128xf32>
    %35 = tpu.matmul %34, %2, %cst_17 {dimension_numbers = #tpu.dot_dimension_numbers<[1], [0], [0], [1], [0, 0, 1, 1], [], []>} : vector<256x128xbf16>, vector<128x128xbf16>, vector<256x128xf32> -> vector<256x128xf32>
    %36 = vector.extract_strided_slice %35 {offsets = [0, 0], sizes = [128, 128], strides = [1, 1]} : vector<256x128xf32> to vector<128x128xf32>
    %37 = vector.extract_strided_slice %35 {offsets = [128, 0], sizes = [128, 128], strides = [1, 1]} : vector<256x128xf32> to vector<128x128xf32>
    %cst_18 = arith.constant 5.000000e-01 : f32
    %38 = vector.broadcast %cst_18 : f32 to vector<128x128xf32>
    %39 = arith.mulf %38, %37 : vector<128x128xf32>
    %40 = math.floor %39 : vector<128x128xf32>
    %cst_19 = arith.constant 2.000000e+00 : f32
    %41 = vector.broadcast %cst_19 : f32 to vector<128x128xf32>
    %42 = arith.mulf %41, %40 : vector<128x128xf32>
    %43 = arith.subf %37, %42 : vector<128x128xf32>
    %cst_20 = arith.constant 2.000000e+00 : f32
    %44 = vector.broadcast %cst_20 : f32 to vector<128x128xf32>
    %45 = arith.mulf %44, %43 : vector<128x128xf32>
    %cst_21 = arith.constant 1.000000e+00 : f32
    %46 = vector.broadcast %cst_21 : f32 to vector<128x128xf32>
    %47 = arith.subf %46, %45 : vector<128x128xf32>
    %48 = math.exp %36 : vector<128x128xf32>
    %49 = arith.mulf %47, %48 : vector<128x128xf32>
    %cst_22 = arith.constant -1.000000e+01 : f32
    %cst_23 = arith.constant 1.000000e+01 : f32
    %50 = vector.broadcast %cst_22 : f32 to vector<128x128xf32>
    %51 = arith.maximumf %50, %49 : vector<128x128xf32>
    %52 = vector.broadcast %cst_23 : f32 to vector<128x128xf32>
    %53 = arith.minimumf %52, %51 : vector<128x128xf32>
    %cst_24 = arith.constant -0.999998986 : f32
    %cst_25 = arith.constant 0.999998986 : f32
    %54 = vector.broadcast %cst_24 : f32 to vector<128x128xf32>
    %55 = arith.maximumf %54, %53 : vector<128x128xf32>
    %56 = vector.broadcast %cst_25 : f32 to vector<128x128xf32>
    %57 = arith.minimumf %56, %55 : vector<128x128xf32>
    %cst_26 = arith.constant 1.000000e+00 : f32
    %58 = vector.broadcast %cst_26 : f32 to vector<128x128xf32>
    %59 = arith.addf %58, %57 : vector<128x128xf32>
    %cst_27 = arith.constant 1.000000e+00 : f32
    %60 = vector.broadcast %cst_27 : f32 to vector<128x128xf32>
    %61 = arith.subf %60, %57 : vector<128x128xf32>
    %62 = tpu.reciprocal %61 {approx = true} : vector<128x128xf32> -> vector<128x128xf32>
    %63 = arith.mulf %59, %62 : vector<128x128xf32>
    %64 = math.log %63 : vector<128x128xf32>
    %c1 = arith.constant 1 : index
    %c0_28 = arith.constant 0 : index
    %c0_29 = arith.constant 0 : index
    %65 = vector.load %arg2[%c1, %c0_28, %c0_29] : memref<5x128x128xbf16, #tpu.memory_space<vmem>>, vector<1x128x128xbf16>
    %66 = vector.shape_cast %65 : vector<1x128x128xbf16> to vector<128x128xbf16>
    %cst_30 = arith.constant dense<0.000000e+00> : vector<128x128xf32>
    %67 = tpu.matmul %1, %66, %cst_30 {dimension_numbers = #tpu.dot_dimension_numbers<[1], [0], [0], [1], [0, 0, 1, 1], [], []>} : vector<128x128xbf16>, vector<128x128xbf16>, vector<128x128xf32> -> vector<128x128xf32>
    %68 = arith.truncf %64 : vector<128x128xf32> to vector<128x128xbf16>
    %c1_31 = arith.constant 1 : index
    %c0_32 = arith.constant 0 : index
    %c0_33 = arith.constant 0 : index
    %69 = vector.load %arg3[%c1_31, %c0_32, %c0_33] : memref<5x128x128xbf16, #tpu.memory_space<vmem>>, vector<1x128x128xbf16>
    %70 = vector.shape_cast %69 : vector<1x128x128xbf16> to vector<128x128xbf16>
    %cst_34 = arith.constant dense<0.000000e+00> : vector<128x128xf32>
    %71 = tpu.matmul %68, %70, %cst_34 {dimension_numbers = #tpu.dot_dimension_numbers<[1], [0], [0], [1], [0, 0, 1, 1], [], []>} : vector<128x128xbf16>, vector<128x128xbf16>, vector<128x128xf32> -> vector<128x128xf32>
    %72 = arith.addf %67, %71 : vector<128x128xf32>
    %cst_35 = arith.constant -1.000000e+01 : f32
    %cst_36 = arith.constant 1.000000e+01 : f32
    %73 = vector.broadcast %cst_35 : f32 to vector<128x128xf32>
    %74 = arith.maximumf %73, %72 : vector<128x128xf32>
    %75 = vector.broadcast %cst_36 : f32 to vector<128x128xf32>
    %76 = arith.minimumf %75, %74 : vector<128x128xf32>
    %cst_37 = arith.constant 5.000000e-01 : f32
    %77 = vector.broadcast %cst_37 : f32 to vector<128x128xf32>
    %78 = arith.mulf %77, %76 : vector<128x128xf32>
    %79 = math.tanh %78 : vector<128x128xf32>
    %80 = math.absf %79 : vector<128x128xf32>
    %cst_38 = arith.constant 0.000000e+00 : f32
    %81 = vector.broadcast %cst_38 : f32 to vector<128x128xf32>
    %82 = arith.cmpf ogt, %80, %81 : vector<128x128xf32>
    %83 = arith.extui %82 : vector<128x128xi1> to vector<128x128xi32>
    %84 = arith.sitofp %83 : vector<128x128xi32> to vector<128x128xf32>
    %cst_39 = arith.constant 1.000000e+00 : f32
    %85 = vector.broadcast %cst_39 : f32 to vector<128x128xf32>
    %86 = arith.subf %85, %84 : vector<128x128xf32>
    %87 = arith.addf %79, %86 : vector<128x128xf32>
    %88 = math.absf %87 : vector<128x128xf32>
    %89 = math.log %88 : vector<128x128xf32>
    %cst_40 = arith.constant 0.000000e+00 : f32
    %90 = vector.broadcast %cst_40 : f32 to vector<128x128xf32>
    %91 = arith.cmpf olt, %87, %90 : vector<128x128xf32>
    %92 = arith.extui %91 : vector<128x128xi1> to vector<128x128xi32>
    %93 = arith.sitofp %92 : vector<128x128xi32> to vector<128x128xf32>
    %94 = tpu.concatenate %89, %93 in 0 : vector<128x128xf32>, vector<128x128xf32> -> vector<256x128xf32>
    %95 = arith.truncf %94 : vector<256x128xf32> to vector<256x128xbf16>
    %cst_41 = arith.constant dense<0.000000e+00> : vector<256x128xf32>
    %96 = tpu.matmul %95, %2, %cst_41 {dimension_numbers = #tpu.dot_dimension_numbers<[1], [0], [0], [1], [0, 0, 1, 1], [], []>} : vector<256x128xbf16>, vector<128x128xbf16>, vector<256x128xf32> -> vector<256x128xf32>
    %97 = vector.extract_strided_slice %96 {offsets = [0, 0], sizes = [128, 128], strides = [1, 1]} : vector<256x128xf32> to vector<128x128xf32>
    %98 = vector.extract_strided_slice %96 {offsets = [128, 0], sizes = [128, 128], strides = [1, 1]} : vector<256x128xf32> to vector<128x128xf32>
    %cst_42 = arith.constant 5.000000e-01 : f32
    %99 = vector.broadcast %cst_42 : f32 to vector<128x128xf32>
    %100 = arith.mulf %99, %98 : vector<128x128xf32>
    %101 = math.floor %100 : vector<128x128xf32>
    %cst_43 = arith.constant 2.000000e+00 : f32
    %102 = vector.broadcast %cst_43 : f32 to vector<128x128xf32>
    %103 = arith.mulf %102, %101 : vector<128x128xf32>
    %104 = arith.subf %98, %103 : vector<128x128xf32>
    %cst_44 = arith.constant 2.000000e+00 : f32
    %105 = vector.broadcast %cst_44 : f32 to vector<128x128xf32>
    %106 = arith.mulf %105, %104 : vector<128x128xf32>
    %cst_45 = arith.constant 1.000000e+00 : f32
    %107 = vector.broadcast %cst_45 : f32 to vector<128x128xf32>
    %108 = arith.subf %107, %106 : vector<128x128xf32>
    %109 = math.exp %97 : vector<128x128xf32>
    %110 = arith.mulf %108, %109 : vector<128x128xf32>
    %cst_46 = arith.constant -0.999998986 : f32
    %cst_47 = arith.constant 0.999998986 : f32
    %111 = vector.broadcast %cst_46 : f32 to vector<128x128xf32>
    %112 = arith.maximumf %111, %110 : vector<128x128xf32>
    %113 = vector.broadcast %cst_47 : f32 to vector<128x128xf32>
    %114 = arith.minimumf %113, %112 : vector<128x128xf32>
    %cst_48 = arith.constant 1.000000e+00 : f32
    %115 = vector.broadcast %cst_48 : f32 to vector<128x128xf32>
    %116 = arith.addf %115, %114 : vector<128x128xf32>
    %cst_49 = arith.constant 1.000000e+00 : f32
    %117 = vector.broadcast %cst_49 : f32 to vector<128x128xf32>
    %118 = arith.subf %117, %114 : vector<128x128xf32>
    %119 = tpu.reciprocal %118 {approx = true} : vector<128x128xf32> -> vector<128x128xf32>
    %120 = arith.mulf %116, %119 : vector<128x128xf32>
    %121 = math.log %120 : vector<128x128xf32>
    %c2 = arith.constant 2 : index
    %c0_50 = arith.constant 0 : index
    %c0_51 = arith.constant 0 : index
    %122 = vector.load %arg2[%c2, %c0_50, %c0_51] : memref<5x128x128xbf16, #tpu.memory_space<vmem>>, vector<1x128x128xbf16>
    %123 = vector.shape_cast %122 : vector<1x128x128xbf16> to vector<128x128xbf16>
    %cst_52 = arith.constant dense<0.000000e+00> : vector<128x128xf32>
    %124 = tpu.matmul %1, %123, %cst_52 {dimension_numbers = #tpu.dot_dimension_numbers<[1], [0], [0], [1], [0, 0, 1, 1], [], []>} : vector<128x128xbf16>, vector<128x128xbf16>, vector<128x128xf32> -> vector<128x128xf32>
    %125 = arith.truncf %121 : vector<128x128xf32> to vector<128x128xbf16>
    %c2_53 = arith.constant 2 : index
    %c0_54 = arith.constant 0 : index
    %c0_55 = arith.constant 0 : index
    %126 = vector.load %arg3[%c2_53, %c0_54, %c0_55] : memref<5x128x128xbf16, #tpu.memory_space<vmem>>, vector<1x128x128xbf16>
    %127 = vector.shape_cast %126 : vector<1x128x128xbf16> to vector<128x128xbf16>
    %cst_56 = arith.constant dense<0.000000e+00> : vector<128x128xf32>
    %128 = tpu.matmul %125, %127, %cst_56 {dimension_numbers = #tpu.dot_dimension_numbers<[1], [0], [0], [1], [0, 0, 1, 1], [], []>} : vector<128x128xbf16>, vector<128x128xbf16>, vector<128x128xf32> -> vector<128x128xf32>
    %129 = arith.addf %124, %128 : vector<128x128xf32>
    %cst_57 = arith.constant -1.000000e+01 : f32
    %cst_58 = arith.constant 1.000000e+01 : f32
    %130 = vector.broadcast %cst_57 : f32 to vector<128x128xf32>
    %131 = arith.maximumf %130, %129 : vector<128x128xf32>
    %132 = vector.broadcast %cst_58 : f32 to vector<128x128xf32>
    %133 = arith.minimumf %132, %131 : vector<128x128xf32>
    %cst_59 = arith.constant 5.000000e-01 : f32
    %134 = vector.broadcast %cst_59 : f32 to vector<128x128xf32>
    %135 = arith.mulf %134, %133 : vector<128x128xf32>
    %136 = math.tanh %135 : vector<128x128xf32>
    %137 = math.absf %136 : vector<128x128xf32>
    %cst_60 = arith.constant 0.000000e+00 : f32
    %138 = vector.broadcast %cst_60 : f32 to vector<128x128xf32>
    %139 = arith.cmpf ogt, %137, %138 : vector<128x128xf32>
    %140 = arith.extui %139 : vector<128x128xi1> to vector<128x128xi32>
    %141 = arith.sitofp %140 : vector<128x128xi32> to vector<128x128xf32>
    %cst_61 = arith.constant 1.000000e+00 : f32
    %142 = vector.broadcast %cst_61 : f32 to vector<128x128xf32>
    %143 = arith.subf %142, %141 : vector<128x128xf32>
    %144 = arith.addf %136, %143 : vector<128x128xf32>
    %145 = math.absf %144 : vector<128x128xf32>
    %146 = math.log %145 : vector<128x128xf32>
    %cst_62 = arith.constant 0.000000e+00 : f32
    %147 = vector.broadcast %cst_62 : f32 to vector<128x128xf32>
    %148 = arith.cmpf olt, %144, %147 : vector<128x128xf32>
    %149 = arith.extui %148 : vector<128x128xi1> to vector<128x128xi32>
    %150 = arith.sitofp %149 : vector<128x128xi32> to vector<128x128xf32>
    %151 = tpu.concatenate %146, %150 in 0 : vector<128x128xf32>, vector<128x128xf32> -> vector<256x128xf32>
    %152 = arith.truncf %151 : vector<256x128xf32> to vector<256x128xbf16>
    %cst_63 = arith.constant dense<0.000000e+00> : vector<256x128xf32>
    %153 = tpu.matmul %152, %2, %cst_63 {dimension_numbers = #tpu.dot_dimension_numbers<[1], [0], [0], [1], [0, 0, 1, 1], [], []>} : vector<256x128xbf16>, vector<128x128xbf16>, vector<256x128xf32> -> vector<256x128xf32>
    %154 = vector.extract_strided_slice %153 {offsets = [0, 0], sizes = [128, 128], strides = [1, 1]} : vector<256x128xf32> to vector<128x128xf32>
    %155 = vector.extract_strided_slice %153 {offsets = [128, 0], sizes = [128, 128], strides = [1, 1]} : vector<256x128xf32> to vector<128x128xf32>
    %cst_64 = arith.constant 5.000000e-01 : f32
    %156 = vector.broadcast %cst_64 : f32 to vector<128x128xf32>
    %157 = arith.mulf %156, %155 : vector<128x128xf32>
    %158 = math.floor %157 : vector<128x128xf32>
    %cst_65 = arith.constant 2.000000e+00 : f32
    %159 = vector.broadcast %cst_65 : f32 to vector<128x128xf32>
    %160 = arith.mulf %159, %158 : vector<128x128xf32>
    %161 = arith.subf %155, %160 : vector<128x128xf32>
    %cst_66 = arith.constant 2.000000e+00 : f32
    %162 = vector.broadcast %cst_66 : f32 to vector<128x128xf32>
    %163 = arith.mulf %162, %161 : vector<128x128xf32>
    %cst_67 = arith.constant 1.000000e+00 : f32
    %164 = vector.broadcast %cst_67 : f32 to vector<128x128xf32>
    %165 = arith.subf %164, %163 : vector<128x128xf32>
    %166 = math.exp %154 : vector<128x128xf32>
    %167 = arith.mulf %165, %166 : vector<128x128xf32>
    %cst_68 = arith.constant -0.999998986 : f32
    %cst_69 = arith.constant 0.999998986 : f32
    %168 = vector.broadcast %cst_68 : f32 to vector<128x128xf32>
    %169 = arith.maximumf %168, %167 : vector<128x128xf32>
    %170 = vector.broadcast %cst_69 : f32 to vector<128x128xf32>
    %171 = arith.minimumf %170, %169 : vector<128x128xf32>
    %cst_70 = arith.constant 1.000000e+00 : f32
    %172 = vector.broadcast %cst_70 : f32 to vector<128x128xf32>
    %173 = arith.addf %172, %171 : vector<128x128xf32>
    %cst_71 = arith.constant 1.000000e+00 : f32
    %174 = vector.broadcast %cst_71 : f32 to vector<128x128xf32>
    %175 = arith.subf %174, %171 : vector<128x128xf32>
    %176 = tpu.reciprocal %175 {approx = true} : vector<128x128xf32> -> vector<128x128xf32>
    %177 = arith.mulf %173, %176 : vector<128x128xf32>
    %178 = math.log %177 : vector<128x128xf32>
    %c3 = arith.constant 3 : index
    %c0_72 = arith.constant 0 : index
    %c0_73 = arith.constant 0 : index
    %179 = vector.load %arg2[%c3, %c0_72, %c0_73] : memref<5x128x128xbf16, #tpu.memory_space<vmem>>, vector<1x128x128xbf16>
    %180 = vector.shape_cast %179 : vector<1x128x128xbf16> to vector<128x128xbf16>
    %cst_74 = arith.constant dense<0.000000e+00> : vector<128x128xf32>
    %181 = tpu.matmul %1, %180, %cst_74 {dimension_numbers = #tpu.dot_dimension_numbers<[1], [0], [0], [1], [0, 0, 1, 1], [], []>} : vector<128x128xbf16>, vector<128x128xbf16>, vector<128x128xf32> -> vector<128x128xf32>
    %182 = arith.truncf %178 : vector<128x128xf32> to vector<128x128xbf16>
    %c3_75 = arith.constant 3 : index
    %c0_76 = arith.constant 0 : index
    %c0_77 = arith.constant 0 : index
    %183 = vector.load %arg3[%c3_75, %c0_76, %c0_77] : memref<5x128x128xbf16, #tpu.memory_space<vmem>>, vector<1x128x128xbf16>
    %184 = vector.shape_cast %183 : vector<1x128x128xbf16> to vector<128x128xbf16>
    %cst_78 = arith.constant dense<0.000000e+00> : vector<128x128xf32>
    %185 = tpu.matmul %182, %184, %cst_78 {dimension_numbers = #tpu.dot_dimension_numbers<[1], [0], [0], [1], [0, 0, 1, 1], [], []>} : vector<128x128xbf16>, vector<128x128xbf16>, vector<128x128xf32> -> vector<128x128xf32>
    %186 = arith.addf %181, %185 : vector<128x128xf32>
    %cst_79 = arith.constant -1.000000e+01 : f32
    %cst_80 = arith.constant 1.000000e+01 : f32
    %187 = vector.broadcast %cst_79 : f32 to vector<128x128xf32>
    %188 = arith.maximumf %187, %186 : vector<128x128xf32>
    %189 = vector.broadcast %cst_80 : f32 to vector<128x128xf32>
    %190 = arith.minimumf %189, %188 : vector<128x128xf32>
    %cst_81 = arith.constant 5.000000e-01 : f32
    %191 = vector.broadcast %cst_81 : f32 to vector<128x128xf32>
    %192 = arith.mulf %191, %190 : vector<128x128xf32>
    %193 = math.tanh %192 : vector<128x128xf32>
    %194 = math.absf %193 : vector<128x128xf32>
    %cst_82 = arith.constant 0.000000e+00 : f32
    %195 = vector.broadcast %cst_82 : f32 to vector<128x128xf32>
    %196 = arith.cmpf ogt, %194, %195 : vector<128x128xf32>
    %197 = arith.extui %196 : vector<128x128xi1> to vector<128x128xi32>
    %198 = arith.sitofp %197 : vector<128x128xi32> to vector<128x128xf32>
    %cst_83 = arith.constant 1.000000e+00 : f32
    %199 = vector.broadcast %cst_83 : f32 to vector<128x128xf32>
    %200 = arith.subf %199, %198 : vector<128x128xf32>
    %201 = arith.addf %193, %200 : vector<128x128xf32>
    %202 = math.absf %201 : vector<128x128xf32>
    %203 = math.log %202 : vector<128x128xf32>
    %cst_84 = arith.constant 0.000000e+00 : f32
    %204 = vector.broadcast %cst_84 : f32 to vector<128x128xf32>
    %205 = arith.cmpf olt, %201, %204 : vector<128x128xf32>
    %206 = arith.extui %205 : vector<128x128xi1> to vector<128x128xi32>
    %207 = arith.sitofp %206 : vector<128x128xi32> to vector<128x128xf32>
    %208 = tpu.concatenate %203, %207 in 0 : vector<128x128xf32>, vector<128x128xf32> -> vector<256x128xf32>
    %209 = arith.truncf %208 : vector<256x128xf32> to vector<256x128xbf16>
    %cst_85 = arith.constant dense<0.000000e+00> : vector<256x128xf32>
    %210 = tpu.matmul %209, %2, %cst_85 {dimension_numbers = #tpu.dot_dimension_numbers<[1], [0], [0], [1], [0, 0, 1, 1], [], []>} : vector<256x128xbf16>, vector<128x128xbf16>, vector<256x128xf32> -> vector<256x128xf32>
    %211 = vector.extract_strided_slice %210 {offsets = [0, 0], sizes = [128, 128], strides = [1, 1]} : vector<256x128xf32> to vector<128x128xf32>
    %212 = vector.extract_strided_slice %210 {offsets = [128, 0], sizes = [128, 128], strides = [1, 1]} : vector<256x128xf32> to vector<128x128xf32>
    %cst_86 = arith.constant 5.000000e-01 : f32
    %213 = vector.broadcast %cst_86 : f32 to vector<128x128xf32>
    %214 = arith.mulf %213, %212 : vector<128x128xf32>
    %215 = math.floor %214 : vector<128x128xf32>
    %cst_87 = arith.constant 2.000000e+00 : f32
    %216 = vector.broadcast %cst_87 : f32 to vector<128x128xf32>
    %217 = arith.mulf %216, %215 : vector<128x128xf32>
    %218 = arith.subf %212, %217 : vector<128x128xf32>
    %cst_88 = arith.constant 2.000000e+00 : f32
    %219 = vector.broadcast %cst_88 : f32 to vector<128x128xf32>
    %220 = arith.mulf %219, %218 : vector<128x128xf32>
    %cst_89 = arith.constant 1.000000e+00 : f32
    %221 = vector.broadcast %cst_89 : f32 to vector<128x128xf32>
    %222 = arith.subf %221, %220 : vector<128x128xf32>
    %223 = math.exp %211 : vector<128x128xf32>
    %224 = arith.mulf %222, %223 : vector<128x128xf32>
    %cst_90 = arith.constant -0.999998986 : f32
    %cst_91 = arith.constant 0.999998986 : f32
    %225 = vector.broadcast %cst_90 : f32 to vector<128x128xf32>
    %226 = arith.maximumf %225, %224 : vector<128x128xf32>
    %227 = vector.broadcast %cst_91 : f32 to vector<128x128xf32>
    %228 = arith.minimumf %227, %226 : vector<128x128xf32>
    %cst_92 = arith.constant 1.000000e+00 : f32
    %229 = vector.broadcast %cst_92 : f32 to vector<128x128xf32>
    %230 = arith.addf %229, %228 : vector<128x128xf32>
    %cst_93 = arith.constant 1.000000e+00 : f32
    %231 = vector.broadcast %cst_93 : f32 to vector<128x128xf32>
    %232 = arith.subf %231, %228 : vector<128x128xf32>
    %233 = tpu.reciprocal %232 {approx = true} : vector<128x128xf32> -> vector<128x128xf32>
    %234 = arith.mulf %230, %233 : vector<128x128xf32>
    %235 = math.log %234 : vector<128x128xf32>
    %c4 = arith.constant 4 : index
    %c0_94 = arith.constant 0 : index
    %c0_95 = arith.constant 0 : index
    %236 = vector.load %arg2[%c4, %c0_94, %c0_95] : memref<5x128x128xbf16, #tpu.memory_space<vmem>>, vector<1x128x128xbf16>
    %237 = vector.shape_cast %236 : vector<1x128x128xbf16> to vector<128x128xbf16>
    %cst_96 = arith.constant dense<0.000000e+00> : vector<128x128xf32>
    %238 = tpu.matmul %1, %237, %cst_96 {dimension_numbers = #tpu.dot_dimension_numbers<[1], [0], [0], [1], [0, 0, 1, 1], [], []>} : vector<128x128xbf16>, vector<128x128xbf16>, vector<128x128xf32> -> vector<128x128xf32>
    %239 = arith.truncf %235 : vector<128x128xf32> to vector<128x128xbf16>
    %c4_97 = arith.constant 4 : index
    %c0_98 = arith.constant 0 : index
    %c0_99 = arith.constant 0 : index
    %240 = vector.load %arg3[%c4_97, %c0_98, %c0_99] : memref<5x128x128xbf16, #tpu.memory_space<vmem>>, vector<1x128x128xbf16>
    %241 = vector.shape_cast %240 : vector<1x128x128xbf16> to vector<128x128xbf16>
    %cst_100 = arith.constant dense<0.000000e+00> : vector<128x128xf32>
    %242 = tpu.matmul %239, %241, %cst_100 {dimension_numbers = #tpu.dot_dimension_numbers<[1], [0], [0], [1], [0, 0, 1, 1], [], []>} : vector<128x128xbf16>, vector<128x128xbf16>, vector<128x128xf32> -> vector<128x128xf32>
    %243 = arith.addf %238, %242 : vector<128x128xf32>
    %cst_101 = arith.constant -1.000000e+01 : f32
    %cst_102 = arith.constant 1.000000e+01 : f32
    %244 = vector.broadcast %cst_101 : f32 to vector<128x128xf32>
    %245 = arith.maximumf %244, %243 : vector<128x128xf32>
    %246 = vector.broadcast %cst_102 : f32 to vector<128x128xf32>
    %247 = arith.minimumf %246, %245 : vector<128x128xf32>
    %cst_103 = arith.constant 5.000000e-01 : f32
    %248 = vector.broadcast %cst_103 : f32 to vector<128x128xf32>
    %249 = arith.mulf %248, %247 : vector<128x128xf32>
    %250 = math.tanh %249 : vector<128x128xf32>
    %251 = math.absf %250 : vector<128x128xf32>
    %cst_104 = arith.constant 0.000000e+00 : f32
    %252 = vector.broadcast %cst_104 : f32 to vector<128x128xf32>
    %253 = arith.cmpf ogt, %251, %252 : vector<128x128xf32>
    %254 = arith.extui %253 : vector<128x128xi1> to vector<128x128xi32>
    %255 = arith.sitofp %254 : vector<128x128xi32> to vector<128x128xf32>
    %cst_105 = arith.constant 1.000000e+00 : f32
    %256 = vector.broadcast %cst_105 : f32 to vector<128x128xf32>
    %257 = arith.subf %256, %255 : vector<128x128xf32>
    %258 = arith.addf %250, %257 : vector<128x128xf32>
    %259 = math.absf %258 : vector<128x128xf32>
    %260 = math.log %259 : vector<128x128xf32>
    %cst_106 = arith.constant 0.000000e+00 : f32
    %261 = vector.broadcast %cst_106 : f32 to vector<128x128xf32>
    %262 = arith.cmpf olt, %258, %261 : vector<128x128xf32>
    %263 = arith.extui %262 : vector<128x128xi1> to vector<128x128xi32>
    %264 = arith.sitofp %263 : vector<128x128xi32> to vector<128x128xf32>
    %265 = tpu.concatenate %260, %264 in 0 : vector<128x128xf32>, vector<128x128xf32> -> vector<256x128xf32>
    %266 = arith.truncf %265 : vector<256x128xf32> to vector<256x128xbf16>
    %cst_107 = arith.constant dense<0.000000e+00> : vector<256x128xf32>
    %267 = tpu.matmul %266, %2, %cst_107 {dimension_numbers = #tpu.dot_dimension_numbers<[1], [0], [0], [1], [0, 0, 1, 1], [], []>} : vector<256x128xbf16>, vector<128x128xbf16>, vector<256x128xf32> -> vector<256x128xf32>
    %268 = vector.extract_strided_slice %267 {offsets = [0, 0], sizes = [128, 128], strides = [1, 1]} : vector<256x128xf32> to vector<128x128xf32>
    %269 = vector.extract_strided_slice %267 {offsets = [128, 0], sizes = [128, 128], strides = [1, 1]} : vector<256x128xf32> to vector<128x128xf32>
    %cst_108 = arith.constant 5.000000e-01 : f32
    %270 = vector.broadcast %cst_108 : f32 to vector<128x128xf32>
    %271 = arith.mulf %270, %269 : vector<128x128xf32>
    %272 = math.floor %271 : vector<128x128xf32>
    %cst_109 = arith.constant 2.000000e+00 : f32
    %273 = vector.broadcast %cst_109 : f32 to vector<128x128xf32>
    %274 = arith.mulf %273, %272 : vector<128x128xf32>
    %275 = arith.subf %269, %274 : vector<128x128xf32>
    %cst_110 = arith.constant 2.000000e+00 : f32
    %276 = vector.broadcast %cst_110 : f32 to vector<128x128xf32>
    %277 = arith.mulf %276, %275 : vector<128x128xf32>
    %cst_111 = arith.constant 1.000000e+00 : f32
    %278 = vector.broadcast %cst_111 : f32 to vector<128x128xf32>
    %279 = arith.subf %278, %277 : vector<128x128xf32>
    %280 = math.exp %268 : vector<128x128xf32>
    %281 = arith.mulf %279, %280 : vector<128x128xf32>
    %cst_112 = arith.constant -0.999998986 : f32
    %cst_113 = arith.constant 0.999998986 : f32
    %282 = vector.broadcast %cst_112 : f32 to vector<128x128xf32>
    %283 = arith.maximumf %282, %281 : vector<128x128xf32>
    %284 = vector.broadcast %cst_113 : f32 to vector<128x128xf32>
    %285 = arith.minimumf %284, %283 : vector<128x128xf32>
    %cst_114 = arith.constant 1.000000e+00 : f32
    %286 = vector.broadcast %cst_114 : f32 to vector<128x128xf32>
    %287 = arith.addf %286, %285 : vector<128x128xf32>
    %cst_115 = arith.constant 1.000000e+00 : f32
    %288 = vector.broadcast %cst_115 : f32 to vector<128x128xf32>
    %289 = arith.subf %288, %285 : vector<128x128xf32>
    %290 = tpu.reciprocal %289 {approx = true} : vector<128x128xf32> -> vector<128x128xf32>
    %291 = arith.mulf %287, %290 : vector<128x128xf32>
    %292 = math.log %291 : vector<128x128xf32>
    %c0_116 = arith.constant 0 : index
    %c0_117 = arith.constant 0 : index
    %293 = vector.load %arg1[%c0_116, %c0_117] : memref<128x128xf32, #tpu.memory_space<vmem>>, vector<128x128xf32>
    %294 = arith.truncf %292 : vector<128x128xf32> to vector<128x128xbf16>
    %c0_118 = arith.constant 0 : index
    %c0_119 = arith.constant 0 : index
    %295 = vector.load %arg5[%c0_118, %c0_119] : memref<128x128xbf16, #tpu.memory_space<vmem>>, vector<128x128xbf16>
    %cst_120 = arith.constant dense<0.000000e+00> : vector<128x128xf32>
    %296 = tpu.matmul %294, %295, %cst_120 {dimension_numbers = #tpu.dot_dimension_numbers<[1], [0], [0], [1], [0, 0, 1, 1], [], []>} : vector<128x128xbf16>, vector<128x128xbf16>, vector<128x128xf32> -> vector<128x128xf32>
    %297 = arith.addf %293, %296 : vector<128x128xf32>
    %c0_121 = arith.constant 0 : index
    %c0_122 = arith.constant 0 : index
    %298 = vector.load %arg6[%c0_121, %c0_122] : memref<128x128xf32, #tpu.memory_space<vmem>>, vector<128x128xf32>
    tpu.vector_store %arg6[%c0_121, %c0_122], %297 {strides = array<i32>} : memref<128x128xf32, #tpu.memory_space<vmem>>, vector<128x128xf32>,
    return
  }
  func.func @transform_0(%arg0: i32) -> (i32, i32) {
    %c0_i32 = arith.constant 0 : i32
    %c0_i32_0 = arith.constant 0 : i32
    return %arg0, %c0_i32 : i32, i32
  }
  func.func @transform_1(%arg0: i32) -> (i32, i32, i32) {
    %c0_i32 = arith.constant 0 : i32
    %c0_i32_0 = arith.constant 0 : i32
    %c0_i32_1 = arith.constant 0 : i32
    %c0_i32_2 = arith.constant 0 : i32
    return %c0_i32, %c0_i32_0, %c0_i32_1 : i32, i32, i32
  }
  func.func @transform_2(%arg0: i32) -> (i32, i32, i32) {
    %c0_i32 = arith.constant 0 : i32
    %c0_i32_0 = arith.constant 0 : i32
    %c0_i32_1 = arith.constant 0 : i32
    %c0_i32_2 = arith.constant 0 : i32
    return %c0_i32, %c0_i32_0, %c0_i32_1 : i32, i32, i32
  }
  func.func @transform_3(%arg0: i32) -> (i32, i32) {
    %c0_i32 = arith.constant 0 : i32
    %c0_i32_0 = arith.constant 0 : i32
    %c0_i32_1 = arith.constant 0 : i32
    return %c0_i32, %c0_i32_0 : i32, i32
  }
  func.func @transform_4(%arg0: i32) -> (i32, i32) {
    %c0_i32 = arith.constant 0 : i32
    %c0_i32_0 = arith.constant 0 : i32
    %c0_i32_1 = arith.constant 0 : i32
    return %c0_i32, %c0_i32_0 : i32, i32
  }
  func.func @transform_5(%arg0: i32) -> (i32, i32) {
    %c0_i32 = arith.constant 0 : i32
    %c0_i32_0 = arith.constant 0 : i32
    return %arg0, %c0_i32 : i32, i32
  }
}

</mosaic_0001>

<llo_original>
// kernel: cycnet_forward.1
$region0: #{cycnet_forward.1}
  #allocation0 [shape = 'u32[]', space=smem, size = 0x4, offset = 0x4, fixed_abs, tag = 'smem constant byte address 0x4 - core index']
  #allocation1 [shape = 'u32[144,128]{1,0:T(1,128)}', space=vmem, size = 0x12000, scoped, tag = 'internal scratch']
  %s0 = inlined_call_operand.vmem [shape: f32[256,128], index: 0, kind: input, shape index: {}]
  %s1 = inlined_call_operand.vmem [shape: bf16[5,128,128], index: 1, kind: input, shape index: {}]
  %s2 = inlined_call_operand.vmem [shape: bf16[5,128,128], index: 2, kind: input, shape index: {}]
  %s3 = inlined_call_operand.vmem [shape: bf16[128,128], index: 3, kind: input, shape index: {}]
  %s4 = inlined_call_operand.vmem [shape: bf16[128,128], index: 4, kind: input, shape index: {}]
  %s5 = inlined_call_operand.vmem [shape: f32[256,128], index: 5, kind: output, shape index: {}]
  %s6 = sld [smem:[#allocation0]]
  $region53: #{cycnet_forward.1} parent=0
    _
  %s8 = ssub.s32 1, %s6
  %s9 = scalar_select 0, %s8, %s6
  loop: start=0, step=1, limit=4
  $region2: #{cycnet_forward.1} parent=0 // loop_pre_header
    _
  $region3: #{cycnet_forward.1} parent=0 // loop_header
    %s11 = sphi 0, %s15
    %p12 = scmp.ge.s32.totalorder %s11, 4
    %s21 = sphi 0, %s23
    %s24 = sphi 0, %s21
    %s25 = sphi 0, %s24
    %s41 = sphi 0, %s25
    %s45 = sphi 0, %s45
    %s47 = sphi 0, %s45
    %s48 = sphi 0, %s47
    %s62 = sphi 0, %s48
    %s66 = sphi 0, %s66
    %s68 = sphi 0, %s66
    %s69 = sphi 0, %s68
    %s83 = sphi 0, %s69
    %s87 = sphi 0, %s87
    %s89 = sphi 0, %s87
    %s90 = sphi 0, %s89
    %s104 = sphi 0, %s90
    %s108 = sphi 0, %s108
    %s110 = sphi 0, %s108
    %s111 = sphi 0, %s110
    %s125 = sphi 0, %s111
    %s131 = sphi 0, %s133
    %s134 = sphi 0, %s131
    %s135 = sphi 0, %s134
    %s151 = sphi 0, %s135
  $region4: #{cycnet_forward.1} parent=0 // loop_header_branch
    %14 = sbr.rel (%p12) target = $region8
  $region5: #{cycnet_forward.1} parent=0 // loop_body
    %s16 = ssub.s32 %s11, 1
    %s17 = ssub.s32 %s11, 2
    %s18 = sadd.s32 %s11, 1
    %s19 = ssub.s32 %s11, %s18
    %p20 = scmp.eq.s32.totalorder %s19, 0
    %s22 = sadd.s32 %s21, 1
    %s23 = scalar_select %p20, %s21, %s22
    %p26 = pneg %p20
    %p27 = scmp.eq.s32.totalorder %s11, 1
    %p28 = por %p26, %p27
    %p29 = scmp.ne.s32.totalorder %s21, %s24
    %p30 = scmp.eq.s32.totalorder %s11, 0
    %p31 = por %p29, %p30
    %p32 = scmp.ne.s32.totalorder %s21, %s24
    %p33 = scmp.eq.s32.totalorder %s16, 1
    %p34 = por %p32, %p33
    %p35 = scmp.ne.s32.totalorder %s24, %s25
    %p36 = scmp.eq.s32.totalorder %s16, 0
    %p37 = por %p35, %p36
    %p38 = scmp.ne.s32.totalorder %s24, %s25
    %p39 = scmp.eq.s32.totalorder %s17, 1
    %p40 = por %p38, %p39
    %p42 = scmp.ne.s32.totalorder %s25, %s41
    %p43 = scmp.eq.s32.totalorder %s17, 0
    %p44 = por %p42, %p43
    %s46 = sadd.s32 %s45, 1
    %p49 = scmp.eq.s32.totalorder %s11, 1
    %p50 = scmp.ne.s32.totalorder %s45, %s47
    %p51 = scmp.eq.s32.totalorder %s11, 0
    %p52 = por %p50, %p51
    %p53 = scmp.ne.s32.totalorder %s45, %s47
    %p54 = scmp.eq.s32.totalorder %s16, 1
    %p55 = por %p53, %p54
    %p56 = scmp.ne.s32.totalorder %s47, %s48
    %p57 = scmp.eq.s32.totalorder %s16, 0
    %p58 = por %p56, %p57
    %p59 = scmp.ne.s32.totalorder %s47, %s48
    %p60 = scmp.eq.s32.totalorder %s17, 1
    %p61 = por %p59, %p60
    %p63 = scmp.ne.s32.totalorder %s48, %s62
    %p64 = scmp.eq.s32.totalorder %s17, 0
    %p65 = por %p63, %p64
    %s67 = sadd.s32 %s66, 1
    %p70 = scmp.eq.s32.totalorder %s11, 1
    %p71 = scmp.ne.s32.totalorder %s66, %s68
    %p72 = scmp.eq.s32.totalorder %s11, 0
    %p73 = por %p71, %p72
    %p74 = scmp.ne.s32.totalorder %s66, %s68
    %p75 = scmp.eq.s32.totalorder %s16, 1
    %p76 = por %p74, %p75
    %p77 = scmp.ne.s32.totalorder %s68, %s69
    %p78 = scmp.eq.s32.totalorder %s16, 0
    %p79 = por %p77, %p78
    %p80 = scmp.ne.s32.totalorder %s68, %s69
    %p81 = scmp.eq.s32.totalorder %s17, 1
    %p82 = por %p80, %p81
    %p84 = scmp.ne.s32.totalorder %s69, %s83
    %p85 = scmp.eq.s32.totalorder %s17, 0
    %p86 = por %p84, %p85
    %s88 = sadd.s32 %s87, 1
    %p91 = scmp.eq.s32.totalorder %s11, 1
    %p92 = scmp.ne.s32.totalorder %s87, %s89
    %p93 = scmp.eq.s32.totalorder %s11, 0
    %p94 = por %p92, %p93
    %p95 = scmp.ne.s32.totalorder %s87, %s89
    %p96 = scmp.eq.s32.totalorder %s16, 1
    %p97 = por %p95, %p96
    %p98 = scmp.ne.s32.totalorder %s89, %s90
    %p99 = scmp.eq.s32.totalorder %s16, 0
    %p100 = por %p98, %p99
    %p101 = scmp.ne.s32.totalorder %s89, %s90
    %p102 = scmp.eq.s32.totalorder %s17, 1
    %p103 = por %p101, %p102
    %p105 = scmp.ne.s32.totalorder %s90, %s104
    %p106 = scmp.eq.s32.totalorder %s17, 0
    %p107 = por %p105, %p106
    %s109 = sadd.s32 %s108, 1
    %p112 = scmp.eq.s32.totalorder %s11, 1
    %p113 = scmp.ne.s32.totalorder %s108, %s110
    %p114 = scmp.eq.s32.totalorder %s11, 0
    %p115 = por %p113, %p114
    %p116 = scmp.ne.s32.totalorder %s108, %s110
    %p117 = scmp.eq.s32.totalorder %s16, 1
    %p118 = por %p116, %p117
    %p119 = scmp.ne.s32.totalorder %s110, %s111
    %p120 = scmp.eq.s32.totalorder %s16, 0
    %p121 = por %p119, %p120
    %p122 = scmp.ne.s32.totalorder %s110, %s111
    %p123 = scmp.eq.s32.totalorder %s17, 1
    %p124 = por %p122, %p123
    %p126 = scmp.ne.s32.totalorder %s111, %s125
    %p127 = scmp.eq.s32.totalorder %s17, 0
    %p128 = por %p126, %p127
    %s129 = ssub.s32 %s11, %s18
    %p130 = scmp.eq.s32.totalorder %s129, 0
    %s132 = sadd.s32 %s131, 1
    %s133 = scalar_select %p130, %s131, %s132
    %p136 = pneg %p130
    %p137 = scmp.eq.s32.totalorder %s11, 1
    %p138 = por %p136, %p137
    %p139 = scmp.ne.s32.totalorder %s131, %s134
    %p140 = scmp.eq.s32.totalorder %s11, 0
    %p141 = por %p139, %p140
    %p142 = scmp.ne.s32.totalorder %s131, %s134
    %p143 = scmp.eq.s32.totalorder %s16, 1
    %p144 = por %p142, %p143
    %p145 = scmp.ne.s32.totalorder %s134, %s135
    %p146 = scmp.eq.s32.totalorder %s16, 0
    %p147 = por %p145, %p146
    %p148 = scmp.ne.s32.totalorder %s134, %s135
    %p149 = scmp.eq.s32.totalorder %s17, 1
    %p150 = por %p148, %p149
    %p152 = scmp.ne.s32.totalorder %s135, %s151
    %p153 = scmp.eq.s32.totalorder %s17, 0
    %p154 = por %p152, %p153
    %p155 = scmp.le.s32.totalorder 1, %s11
    %p156 = scmp.lt.s32.totalorder %s11, 3
    %p157 = pnand %p155, %p156
    %p158 = pneg %p157
    // Predicated region
    $region9: #{cycnet_forward.1} parent=5 // pred_check
      _
    $region10: #{cycnet_forward.1} parent=5 // pred_check_branch
      %160 = sbr.rel (%p157) target = $region12
    $region11: #{cycnet_forward.1} parent=5 // pred_region
      %s161 = ssub.s32 %s11, 1
      // Predicated region
      $region13: #{cycnet_forward.1} parent=11 // pred_check
        %p162 = pneg %p58
      $region14: #{cycnet_forward.1} parent=11 // pred_check_branch
        %164 = sbr.rel (%p162) target = $region16
      $region15: #{cycnet_forward.1} parent=11 // pred_region
        _
      $region16: #{cycnet_forward.1} parent=11 // pred_fallthru
        _
      // Predicated region
      $region17: #{cycnet_forward.1} parent=11 // pred_check
        %p165 = pneg %p79
      $region18: #{cycnet_forward.1} parent=11 // pred_check_branch
        %167 = sbr.rel (%p165) target = $region20
      $region19: #{cycnet_forward.1} parent=11 // pred_region
        _
      $region20: #{cycnet_forward.1} parent=11 // pred_fallthru
        _
      // Predicated region
      $region21: #{cycnet_forward.1} parent=11 // pred_check
        %p168 = pneg %p100
      $region22: #{cycnet_forward.1} parent=11 // pred_check_branch
        %170 = sbr.rel (%p168) target = $region24
      $region23: #{cycnet_forward.1} parent=11 // pred_region
        _
      $region24: #{cycnet_forward.1} parent=11 // pred_fallthru
        _
      // Predicated region
      $region25: #{cycnet_forward.1} parent=11 // pred_check
        %p171 = pneg %p121
      $region26: #{cycnet_forward.1} parent=11 // pred_check_branch
        %173 = sbr.rel (%p171) target = $region28
      $region27: #{cycnet_forward.1} parent=11 // pred_region
        _
      $region28: #{cycnet_forward.1} parent=11 // pred_fallthru
        _
    $region12: #{cycnet_forward.1} parent=5 // pred_fallthru
      _
    %p174 = scmp.lt.s32.totalorder %s11, 2
    // Predicated region
    $region29: #{cycnet_forward.1} parent=5 // pred_check
      %p175 = pneg %p174
    $region30: #{cycnet_forward.1} parent=5 // pred_check_branch
      %177 = sbr.rel (%p175) target = $region32
    $region31: #{cycnet_forward.1} parent=5 // pred_region
      // Predicated region
      $region33: #{cycnet_forward.1} parent=31 // pred_check
        %p178 = pneg %p31
      $region34: #{cycnet_forward.1} parent=31 // pred_check_branch
        %180 = sbr.rel (%p178) target = $region36
      $region35: #{cycnet_forward.1} parent=31 // pred_region
        %s181 = smul.u32 16, %s11
        %p182 = scmp.lt.s32.totalorder %s181, 31
        %s183 = scalar_select %p182, %s181, 31
        %s184 = smul.addr %s183, 8
        %s185 = scalar_lea.vmem %s0, %s184
        %s186 = smul.u32 16, %s11
      $region36: #{cycnet_forward.1} parent=31 // pred_fallthru
        _
    $region32: #{cycnet_forward.1} parent=5 // pred_fallthru
      _
    %p187 = scmp.le.s32.totalorder 1, %s11
    %p188 = scmp.lt.s32.totalorder %s11, 3
    %p189 = pnand %p187, %p188
    %p190 = pneg %p189
    // Predicated region
    $region37: #{cycnet_forward.1} parent=5 // pred_check
      _
    $region38: #{cycnet_forward.1} parent=5 // pred_check_branch
      %192 = sbr.rel (%p189) target = $region40
    $region39: #{cycnet_forward.1} parent=5 // pred_region
      %s193 = ssub.s32 %s11, 1
      %s194 = smul.u32 16, %s16
      %p195 = scmp.lt.s32.totalorder %s194, 31
      %s196 = scalar_select %p195, %s194, 31
      %s197 = smul.addr %s196, 8
      %s198 = scalar_lea.vmem %s0, %s197
      %p199 = pneg %p37
      %p200 = pneg %p34
      %p201 = pneg %p58
      %p202 = pneg %p55
      %p203 = pneg %p79
      %p204 = pneg %p76
      %p205 = pneg %p100
      %p206 = pneg %p97
      %p207 = pneg %p121
      %p208 = pneg %p118
      %p209 = pneg %p147
      %p210 = pneg %p144
      %s211 = smul.u32 16, %s16
      %p212 = scmp.lt.s32.totalorder %s211, 31
      %s213 = scalar_select %p212, %s211, 31
      %s214 = smul.addr %s213, 8
      %s215 = scalar_lea.vmem %s5, %s214
      %s216 = smul.u32 16, %s16
      %p217 = scmp.lt.s32.totalorder %s216, 31
      %s218 = scalar_select %p217, %s216, 31
      %s219 = smul.addr %s218, 8
      %s220 = scalar_lea.vmem %s0, %s219
      %s221 = smul.u32 16, %s16
      %s222 = smul.u32 16, %s16
      %p223 = scmp.lt.s32.totalorder %s222, 31
      %s224 = scalar_select %p223, %s222, 31
      %s225 = smul.addr %s224, 8
      %s226 = scalar_lea.vmem %s5, %s225
      %s227 = smul.u32 16, %s16
      %v229 = vld [vmem:[%s220] sm:$0xff]
      %v230 = vld [vmem:[%s220 + $0x8] sm:$0xff]
      %v231 = vld [vmem:[%s220 + $0x10] sm:$0xff]
      %v232 = vld [vmem:[%s220 + $0x18] sm:$0xff]
      %v233 = vld [vmem:[%s220 + $0x20] sm:$0xff]
      %v234 = vld [vmem:[%s220 + $0x28] sm:$0xff]
      %v235 = vld [vmem:[%s220 + $0x30] sm:$0xff]
      %v236 = vld [vmem:[%s220 + $0x38] sm:$0xff]
      %v237 = vld [vmem:[%s220 + $0x40] sm:$0xff]
      %v238 = vld [vmem:[%s220 + $0x48] sm:$0xff]
      %v239 = vld [vmem:[%s220 + $0x50] sm:$0xff]
      %v240 = vld [vmem:[%s220 + $0x58] sm:$0xff]
      %v241 = vld [vmem:[%s220 + $0x60] sm:$0xff]
      %v242 = vld [vmem:[%s220 + $0x68] sm:$0xff]
      %v243 = vld [vmem:[%s220 + $0x70] sm:$0xff]
      %v244 = vld [vmem:[%s220 + $0x78] sm:$0xff]
      %v245 = vpack.c.bf16 %v230, %v229
      %v246 = vpack.c.bf16 %v232, %v231
      %v247 = vpack.c.bf16 %v234, %v233
      %v248 = vpack.c.bf16 %v236, %v235
      %v249 = vpack.c.bf16 %v238, %v237
      %v250 = vpack.c.bf16 %v240, %v239
      %v251 = vpack.c.bf16 %v242, %v241
      %v252 = vpack.c.bf16 %v244, %v243
      %v253 = vld [vmem:[%s3] sm:$0xf]
      %v254 = vld [vmem:[%s3 + $0x4] sm:$0xf]
      %v255 = vld [vmem:[%s3 + $0x8] sm:$0xf]
      %v256 = vld [vmem:[%s3 + $0xc] sm:$0xf]
      %v257 = vld [vmem:[%s3 + $0x10] sm:$0xf]
      %v258 = vld [vmem:[%s3 + $0x14] sm:$0xf]
      %v259 = vld [vmem:[%s3 + $0x18] sm:$0xf]
      %v260 = vld [vmem:[%s3 + $0x1c] sm:$0xf]
      %v261 = vld [vmem:[%s3 + $0x20] sm:$0xf]
      %v262 = vld [vmem:[%s3 + $0x24] sm:$0xf]
      %v263 = vld [vmem:[%s3 + $0x28] sm:$0xf]
      %v264 = vld [vmem:[%s3 + $0x2c] sm:$0xf]
      %v265 = vld [vmem:[%s3 + $0x30] sm:$0xf]
      %v266 = vld [vmem:[%s3 + $0x34] sm:$0xf]
      %v267 = vld [vmem:[%s3 + $0x38] sm:$0xf]
      %v268 = vld [vmem:[%s3 + $0x3c] sm:$0xf]
      %v269 = vld [vmem:[%s1] sm:$0xf]
      %v270 = vld [vmem:[%s1 + $0x4] sm:$0xf]
      %v271 = vld [vmem:[%s1 + $0x8] sm:$0xf]
      %v272 = vld [vmem:[%s1 + $0xc] sm:$0xf]
      %v273 = vld [vmem:[%s1 + $0x10] sm:$0xf]
      %v274 = vld [vmem:[%s1 + $0x14] sm:$0xf]
      %v275 = vld [vmem:[%s1 + $0x18] sm:$0xf]
      %v276 = vld [vmem:[%s1 + $0x1c] sm:$0xf]
      %v277 = vld [vmem:[%s1 + $0x20] sm:$0xf]
      %v278 = vld [vmem:[%s1 + $0x24] sm:$0xf]
      %v279 = vld [vmem:[%s1 + $0x28] sm:$0xf]
      %v280 = vld [vmem:[%s1 + $0x2c] sm:$0xf]
      %v281 = vld [vmem:[%s1 + $0x30] sm:$0xf]
      %v282 = vld [vmem:[%s1 + $0x34] sm:$0xf]
      %v283 = vld [vmem:[%s1 + $0x38] sm:$0xf]
      %v284 = vld [vmem:[%s1 + $0x3c] sm:$0xf]
      %v285 = vld [vmem:[%s2] sm:$0xf]
      %v286 = vld [vmem:[%s2 + $0x4] sm:$0xf]
      %v287 = vld [vmem:[%s2 + $0x8] sm:$0xf]
      %v288 = vld [vmem:[%s2 + $0xc] sm:$0xf]
      %v289 = vld [vmem:[%s2 + $0x10] sm:$0xf]
      %v290 = vld [vmem:[%s2 + $0x14] sm:$0xf]
      %v291 = vld [vmem:[%s2 + $0x18] sm:$0xf]
      %v292 = vld [vmem:[%s2 + $0x1c] sm:$0xf]
      %v293 = vld [vmem:[%s2 + $0x20] sm:$0xf]
      %v294 = vld [vmem:[%s2 + $0x24] sm:$0xf]
      %v295 = vld [vmem:[%s2 + $0x28] sm:$0xf]
      %v296 = vld [vmem:[%s2 + $0x2c] sm:$0xf]
      %v297 = vld [vmem:[%s2 + $0x30] sm:$0xf]
      %v298 = vld [vmem:[%s2 + $0x34] sm:$0xf]
      %v299 = vld [vmem:[%s2 + $0x38] sm:$0xf]
      %v300 = vld [vmem:[%s2 + $0x3c] sm:$0xf]
      %v317 = vunpack.c.l.b16 %v285
      %v318 = vunpack.c.l.b16 %v286
      %v319 = vunpack.c.l.b16 %v287
      %v320 = vunpack.c.l.b16 %v288
      %v321 = vunpack.c.l.b16 %v289
      %v322 = vunpack.c.l.b16 %v290
      %v323 = vunpack.c.l.b16 %v291
      %v324 = vunpack.c.l.b16 %v292
      %v325 = vunpack.c.l.b16 %v293
      %v326 = vunpack.c.l.b16 %v294
      %v327 = vunpack.c.l.b16 %v295
      %v328 = vunpack.c.l.b16 %v296
      %v329 = vunpack.c.l.b16 %v297
      %v330 = vunpack.c.l.b16 %v298
      %v331 = vunpack.c.l.b16 %v299
      %v332 = vunpack.c.l.b16 %v300
      %v333 = vpack.c.b16 %v318, %v317
      %v334 = vpack.c.b16 %v320, %v319
      %v335 = vpack.c.b16 %v322, %v321
      %v336 = vpack.c.b16 %v324, %v323
      %v337 = vpack.c.b16 %v326, %v325
      %v338 = vpack.c.b16 %v328, %v327
      %v339 = vpack.c.b16 %v330, %v329
      %v340 = vpack.c.b16 %v332, %v331
      %349 = vmatprep.subr.bf16.mxu0 0
      %350 = vmatpush1.bf16.msra.mxu0 %v333
      %351 = vmatprep.subr.bf16.mxu0 0
      %352 = vmatpush1.bf16.msra.mxu0 %v334
      %353 = vmatprep.subr.bf16.mxu0 0
      %354 = vmatpush1.bf16.msra.mxu0 %v335
      %355 = vmatprep.subr.bf16.mxu0 0
      %356 = vmatpush1.bf16.msra.mxu0 %v336
      %357 = vmatprep.subr.bf16.mxu0 0
      %358 = vmatpush1.bf16.msra.mxu0 %v337
      %359 = vmatprep.subr.bf16.mxu0 0
      %360 = vmatpush1.bf16.msra.mxu0 %v338
      %361 = vmatprep.subr.bf16.mxu0 0
      %362 = vmatpush1.bf16.msra.mxu0 %v339
      %363 = vmatprep.subr.bf16.mxu0 0
      %364 = vmatpush1.bf16.msra.mxu0 %v340
      %365 = vmatprep.subr.bf16.mxu0 0
      %366 = vmatpush1.bf16.msra.mxu0 0
      %367 = vmatprep.subr.bf16.mxu0 0
      %368 = vmatpush1.bf16.msra.mxu0 0
      %369 = vmatprep.subr.bf16.mxu0 0
      %370 = vmatpush1.bf16.msra.mxu0 0
      %371 = vmatprep.subr.bf16.mxu0 0
      %372 = vmatpush1.bf16.msra.mxu0 0
      %373 = vmatprep.subr.bf16.mxu0 0
      %374 = vmatpush1.bf16.msra.mxu0 0
      %375 = vmatprep.subr.bf16.mxu0 0
      %376 = vmatpush1.bf16.msra.mxu0 0
      %377 = vmatprep.subr.bf16.mxu0 0
      %378 = vmatpush1.bf16.msra.mxu0 0
      %379 = vmatprep.subr.bf16.mxu0 0
      %380 = vmatpush1.bf16.msra.mxu0 0
      %381 = vmatprep.mubr.bf16.mxu0 0
      %382 = vmatmul.mubr.bf16.gmra.mrb[0].mxu0 0
      %v383 = vpop.f32.mrb[0].mxu0
      %v384 = vadd.f32 0.0, %v383
      %v385 = vpop.f32.mrb[0].mxu0
      %v386 = vpop.f32.mrb[0].mxu0
      %v387 = vadd.f32 0.0, %v386
      %v388 = vpop.f32.mrb[0].mxu0
      %389 = vmatprep.mubr.bf16.mxu0 0
      %390 = vmatmul.mubr.bf16.gmra.mrb[0].mxu0 0
      %v391 = vpop.f32.mrb[0].mxu0
      %v392 = vadd.f32 0.0, %v391
      %v393 = vpop.f32.mrb[0].mxu0
      %v394 = vpop.f32.mrb[0].mxu0
      %v395 = vadd.f32 0.0, %v394
      %v396 = vpop.f32.mrb[0].mxu0
      %397 = vmatprep.mubr.bf16.mxu0 0
      %398 = vmatmul.mubr.bf16.gmra.mrb[0].mxu0 0
      %v399 = vpop.f32.mrb[0].mxu0
      %v400 = vadd.f32 0.0, %v399
      %v401 = vpop.f32.mrb[0].mxu0
      %v402 = vpop.f32.mrb[0].mxu0
      %v403 = vadd.f32 0.0, %v402
      %v404 = vpop.f32.mrb[0].mxu0
      %405 = vmatprep.mubr.bf16.mxu0 0
      %406 = vmatmul.mubr.bf16.gmra.mrb[0].mxu0 0
      %v407 = vpop.f32.mrb[0].mxu0
      %v408 = vadd.f32 0.0, %v407
      %v409 = vpop.f32.mrb[0].mxu0
      %v410 = vpop.f32.mrb[0].mxu0
      %v411 = vadd.f32 0.0, %v410
      %v412 = vpop.f32.mrb[0].mxu0
      %413 = vmatprep.mubr.bf16.mxu0 0
      %414 = vmatmul.mubr.bf16.gmra.mrb[0].mxu0 0
      %v415 = vpop.f32.mrb[0].mxu0
      %v416 = vadd.f32 0.0, %v415
      %v417 = vpop.f32.mrb[0].mxu0
      %v418 = vpop.f32.mrb[0].mxu0
      %v419 = vadd.f32 0.0, %v418
      %v420 = vpop.f32.mrb[0].mxu0
      %421 = vmatprep.mubr.bf16.mxu0 0
      %422 = vmatmul.mubr.bf16.gmra.mrb[0].mxu0 0
      %v423 = vpop.f32.mrb[0].mxu0
      %v424 = vadd.f32 0.0, %v423
      %v425 = vpop.f32.mrb[0].mxu0
      %v426 = vpop.f32.mrb[0].mxu0
      %v427 = vadd.f32 0.0, %v426
      %v428 = vpop.f32.mrb[0].mxu0
      %429 = vmatprep.mubr.bf16.mxu0 0
      %430 = vmatmul.mubr.bf16.gmra.mrb[0].mxu0 0
      %v431 = vpop.f32.mrb[0].mxu0
      %v432 = vadd.f32 0.0, %v431
      %v433 = vpop.f32.mrb[0].mxu0
      %v434 = vpop.f32.mrb[0].mxu0
      %v435 = vadd.f32 0.0, %v434
      %v436 = vpop.f32.mrb[0].mxu0
      %437 = vmatprep.mubr.bf16.mxu0 0
      %438 = vmatmul.mubr.bf16.gmra.mrb[0].mxu0 0
      %v439 = vpop.f32.mrb[0].mxu0
      %v440 = vadd.f32 0.0, %v439
      %v441 = vpop.f32.mrb[0].mxu0
      %v442 = vpop.f32.mrb[0].mxu0
      %v443 = vadd.f32 0.0, %v442
      %v444 = vpop.f32.mrb[0].mxu0
      %445 = vdwg.mxu0
      %v462 = vunpack.c.l.b16 %v269
      %v463 = vunpack.c.l.b16 %v270
      %v464 = vunpack.c.l.b16 %v271
      %v465 = vunpack.c.l.b16 %v272
      %v466 = vunpack.c.l.b16 %v273
      %v467 = vunpack.c.l.b16 %v274
      %v468 = vunpack.c.l.b16 %v275
      %v469 = vunpack.c.l.b16 %v276
      %v470 = vunpack.c.l.b16 %v277
      %v471 = vunpack.c.l.b16 %v278
      %v472 = vunpack.c.l.b16 %v279
      %v473 = vunpack.c.l.b16 %v280
      %v474 = vunpack.c.l.b16 %v281
      %v475 = vunpack.c.l.b16 %v282
      %v476 = vunpack.c.l.b16 %v283
      %v477 = vunpack.c.l.b16 %v284
      %v478 = vpack.c.b16 %v463, %v462
      %v479 = vpack.c.b16 %v465, %v464
      %v480 = vpack.c.b16 %v467, %v466
      %v481 = vpack.c.b16 %v469, %v468
      %v482 = vpack.c.b16 %v471, %v470
      %v483 = vpack.c.b16 %v473, %v472
      %v484 = vpack.c.b16 %v475, %v474
      %v485 = vpack.c.b16 %v477, %v476
      %494 = vmatprep.subr.bf16.mxu0 0
      %495 = vmatpush1.bf16.msra.mxu0 %v478
      %496 = vmatprep.subr.bf16.mxu0 0
      %497 = vmatpush1.bf16.msra.mxu0 %v479
      %498 = vmatprep.subr.bf16.mxu0 0
      %499 = vmatpush1.bf16.msra.mxu0 %v480
      %500 = vmatprep.subr.bf16.mxu0 0
      %501 = vmatpush1.bf16.msra.mxu0 %v481
      %502 = vmatprep.subr.bf16.mxu0 0
      %503 = vmatpush1.bf16.msra.mxu0 %v482
      %504 = vmatprep.subr.bf16.mxu0 0
      %505 = vmatpush1.bf16.msra.mxu0 %v483
      %506 = vmatprep.subr.bf16.mxu0 0
      %507 = vmatpush1.bf16.msra.mxu0 %v484
      %508 = vmatprep.subr.bf16.mxu0 0
      %509 = vmatpush1.bf16.msra.mxu0 %v485
      %510 = vmatprep.subr.bf16.mxu0 0
      %511 = vmatpush1.bf16.msra.mxu0 0
      %512 = vmatprep.subr.bf16.mxu0 0
      %513 = vmatpush1.bf16.msra.mxu0 0
      %514 = vmatprep.subr.bf16.mxu0 0
      %515 = vmatpush1.bf16.msra.mxu0 0
      %516 = vmatprep.subr.bf16.mxu0 0
      %517 = vmatpush1.bf16.msra.mxu0 0
      %518 = vmatprep.subr.bf16.mxu0 0
      %519 = vmatpush1.bf16.msra.mxu0 0
      %520 = vmatprep.subr.bf16.mxu0 0
      %521 = vmatpush1.bf16.msra.mxu0 0
      %522 = vmatprep.subr.bf16.mxu0 0
      %523 = vmatpush1.bf16.msra.mxu0 0
      %524 = vmatprep.subr.bf16.mxu0 0
      %525 = vmatpush1.bf16.msra.mxu0 0
      %526 = vmatprep.mubr.bf16.mxu0 0
      %527 = vmatmul.mubr.bf16.gmra.mrb[0].mxu0 %v245
      %v528 = vpop.f32.mrb[0].mxu0
      %v529 = vadd.f32 %v384, %v528
      %v530 = vpop.f32.mrb[0].mxu0
      %v531 = vpop.f32.mrb[0].mxu0
      %v532 = vadd.f32 %v387, %v531
      %v533 = vpop.f32.mrb[0].mxu0
      %534 = vmatprep.mubr.bf16.mxu0 0
      %535 = vmatmul.mubr.bf16.gmra.mrb[0].mxu0 %v246
      %v536 = vpop.f32.mrb[0].mxu0
      %v537 = vadd.f32 %v392, %v536
      %v538 = vpop.f32.mrb[0].mxu0
      %v539 = vpop.f32.mrb[0].mxu0
      %v540 = vadd.f32 %v395, %v539
      %v541 = vpop.f32.mrb[0].mxu0
      %542 = vmatprep.mubr.bf16.mxu0 0
      %543 = vmatmul.mubr.bf16.gmra.mrb[0].mxu0 %v247
      %v544 = vpop.f32.mrb[0].mxu0
      %v545 = vadd.f32 %v400, %v544
      %v546 = vpop.f32.mrb[0].mxu0
      %v547 = vpop.f32.mrb[0].mxu0
      %v548 = vadd.f32 %v403, %v547
      %v549 = vpop.f32.mrb[0].mxu0
      %550 = vmatprep.mubr.bf16.mxu0 0
      %551 = vmatmul.mubr.bf16.gmra.mrb[0].mxu0 %v248
      %v552 = vpop.f32.mrb[0].mxu0
      %v553 = vadd.f32 %v408, %v552
      %v554 = vpop.f32.mrb[0].mxu0
      %v555 = vpop.f32.mrb[0].mxu0
      %v556 = vadd.f32 %v411, %v555
      %v557 = vpop.f32.mrb[0].mxu0
      %558 = vmatprep.mubr.bf16.mxu0 0
      %559 = vmatmul.mubr.bf16.gmra.mrb[0].mxu0 %v249
      %v560 = vpop.f32.mrb[0].mxu0
      %v561 = vadd.f32 %v416, %v560
      %v562 = vpop.f32.mrb[0].mxu0
      %v563 = vpop.f32.mrb[0].mxu0
      %v564 = vadd.f32 %v419, %v563
      %v565 = vpop.f32.mrb[0].mxu0
      %566 = vmatprep.mubr.bf16.mxu0 0
      %567 = vmatmul.mubr.bf16.gmra.mrb[0].mxu0 %v250
      %v568 = vpop.f32.mrb[0].mxu0
      %v569 = vadd.f32 %v424, %v568
      %v570 = vpop.f32.mrb[0].mxu0
      %v571 = vpop.f32.mrb[0].mxu0
      %v572 = vadd.f32 %v427, %v571
      %v573 = vpop.f32.mrb[0].mxu0
      %574 = vmatprep.mubr.bf16.mxu0 0
      %575 = vmatmul.mubr.bf16.gmra.mrb[0].mxu0 %v251
      %v576 = vpop.f32.mrb[0].mxu0
      %v577 = vadd.f32 %v432, %v576
      %v578 = vpop.f32.mrb[0].mxu0
      %v579 = vpop.f32.mrb[0].mxu0
      %v580 = vadd.f32 %v435, %v579
      %v581 = vpop.f32.mrb[0].mxu0
      %582 = vmatprep.mubr.bf16.mxu0 0
      %583 = vmatmul.mubr.bf16.gmra.mrb[0].mxu0 %v252
      %v584 = vpop.f32.mrb[0].mxu0
      %v585 = vadd.f32 %v440, %v584
      %v586 = vpop.f32.mrb[0].mxu0
      %v587 = vpop.f32.mrb[0].mxu0
      %v588 = vadd.f32 %v443, %v587
      %v589 = vpop.f32.mrb[0].mxu0
      %590 = vdwg.mxu0
      %v591 = vmax.f32 %v529, -10.0
      %v592 = vmax.f32 %v532, -10.0
      %v593 = vmax.f32 %v537, -10.0
      %v594 = vmax.f32 %v540, -10.0
      %v595 = vmax.f32 %v545, -10.0
      %v596 = vmax.f32 %v548, -10.0
      %v597 = vmax.f32 %v553, -10.0
      %v598 = vmax.f32 %v556, -10.0
      %v599 = vmax.f32 %v561, -10.0
      %v600 = vmax.f32 %v564, -10.0
      %v601 = vmax.f32 %v569, -10.0
      %v602 = vmax.f32 %v572, -10.0
      %v603 = vmax.f32 %v577, -10.0
      %v604 = vmax.f32 %v580, -10.0
      %v605 = vmax.f32 %v585, -10.0
      %v606 = vmax.f32 %v588, -10.0
      %v607 = vmin.f32 %v591, 10.0
      %v608 = vmin.f32 %v592, 10.0
      %v609 = vmin.f32 %v593, 10.0
      %v610 = vmin.f32 %v594, 10.0
      %v611 = vmin.f32 %v595, 10.0
      %v612 = vmin.f32 %v596, 10.0
      %v613 = vmin.f32 %v597, 10.0
      %v614 = vmin.f32 %v598, 10.0
      %v615 = vmin.f32 %v599, 10.0
      %v616 = vmin.f32 %v600, 10.0
      %v617 = vmin.f32 %v601, 10.0
      %v618 = vmin.f32 %v602, 10.0
      %v619 = vmin.f32 %v603, 10.0
      %v620 = vmin.f32 %v604, 10.0
      %v621 = vmin.f32 %v605, 10.0
      %v622 = vmin.f32 %v606, 10.0
      %v623 = vmul.f32 %v607, 0.5
      %v624 = vmul.f32 %v608, 0.5
      %v625 = vmul.f32 %v609, 0.5
      %v626 = vmul.f32 %v610, 0.5
      %v627 = vmul.f32 %v611, 0.5
      %v628 = vmul.f32 %v612, 0.5
      %v629 = vmul.f32 %v613, 0.5
      %v630 = vmul.f32 %v614, 0.5
      %v631 = vmul.f32 %v615, 0.5
      %v632 = vmul.f32 %v616, 0.5
      %v633 = vmul.f32 %v617, 0.5
      %v634 = vmul.f32 %v618, 0.5
      %v635 = vmul.f32 %v619, 0.5
      %v636 = vmul.f32 %v620, 0.5
      %v637 = vmul.f32 %v621, 0.5
      %v638 = vmul.f32 %v622, 0.5
      %v639 = vtanh.pop %v623
      %v640 = vtanh.pop %v624
      %v641 = vtanh.pop %v625
      %v642 = vtanh.pop %v626
      %v643 = vtanh.pop %v627
      %v644 = vtanh.pop %v628
      %v645 = vtanh.pop %v629
      %v646 = vtanh.pop %v630
      %v647 = vtanh.pop %v631
      %v648 = vtanh.pop %v632
      %v649 = vtanh.pop %v633
      %v650 = vtanh.pop %v634
      %v651 = vtanh.pop %v635
      %v652 = vtanh.pop %v636
      %v653 = vtanh.pop %v637
      %v654 = vtanh.pop %v638
      %v655 = vand.u32 2147483647, %v639
      %v656 = vand.u32 2147483647, %v640
      %v657 = vand.u32 2147483647, %v641
      %v658 = vand.u32 2147483647, %v642
      %v659 = vand.u32 2147483647, %v643
      %v660 = vand.u32 2147483647, %v644
      %v661 = vand.u32 2147483647, %v645
      %v662 = vand.u32 2147483647, %v646
      %v663 = vand.u32 2147483647, %v647
      %v664 = vand.u32 2147483647, %v648
      %v665 = vand.u32 2147483647, %v649
      %v666 = vand.u32 2147483647, %v650
      %v667 = vand.u32 2147483647, %v651
      %v668 = vand.u32 2147483647, %v652
      %v669 = vand.u32 2147483647, %v653
      %v670 = vand.u32 2147483647, %v654
      %vm671 = vcmp.gt.f32.partialorder %v655, 0.0
      %vm672 = vcmp.gt.f32.partialorder %v656, 0.0
      %vm673 = vcmp.gt.f32.partialorder %v657, 0.0
      %vm674 = vcmp.gt.f32.partialorder %v658, 0.0
      %vm675 = vcmp.gt.f32.partialorder %v659, 0.0
      %vm676 = vcmp.gt.f32.partialorder %v660, 0.0
      %vm677 = vcmp.gt.f32.partialorder %v661, 0.0
      %vm678 = vcmp.gt.f32.partialorder %v662, 0.0
      %vm679 = vcmp.gt.f32.partialorder %v663, 0.0
      %vm680 = vcmp.gt.f32.partialorder %v664, 0.0
      %vm681 = vcmp.gt.f32.partialorder %v665, 0.0
      %vm682 = vcmp.gt.f32.partialorder %v666, 0.0
      %vm683 = vcmp.gt.f32.partialorder %v667, 0.0
      %vm684 = vcmp.gt.f32.partialorder %v668, 0.0
      %vm685 = vcmp.gt.f32.partialorder %v669, 0.0
      %vm686 = vcmp.gt.f32.partialorder %v670, 0.0
      %v687 = vsel %vm671, 1, 0
      %v688 = vsel %vm672, 1, 0
      %v689 = vsel %vm673, 1, 0
      %v690 = vsel %vm674, 1, 0
      %v691 = vsel %vm675, 1, 0
      %v692 = vsel %vm676, 1, 0
      %v693 = vsel %vm677, 1, 0
      %v694 = vsel %vm678, 1, 0
      %v695 = vsel %vm679, 1, 0
      %v696 = vsel %vm680, 1, 0
      %v697 = vsel %vm681, 1, 0
      %v698 = vsel %vm682, 1, 0
      %v699 = vsel %vm683, 1, 0
      %v700 = vsel %vm684, 1, 0
      %v701 = vsel %vm685, 1, 0
      %v702 = vsel %vm686, 1, 0
      %v703 = vcvt.s32.f32 %v687
      %v704 = vcvt.s32.f32 %v688
      %v705 = vcvt.s32.f32 %v689
      %v706 = vcvt.s32.f32 %v690
      %v707 = vcvt.s32.f32 %v691
      %v708 = vcvt.s32.f32 %v692
      %v709 = vcvt.s32.f32 %v693
      %v710 = vcvt.s32.f32 %v694
      %v711 = vcvt.s32.f32 %v695
      %v712 = vcvt.s32.f32 %v696
      %v713 = vcvt.s32.f32 %v697
      %v714 = vcvt.s32.f32 %v698
      %v715 = vcvt.s32.f32 %v699
      %v716 = vcvt.s32.f32 %v700
      %v717 = vcvt.s32.f32 %v701
      %v718 = vcvt.s32.f32 %v702
      %v719 = vsub.f32 1.0, %v703
      %v720 = vsub.f32 1.0, %v704
      %v721 = vsub.f32 1.0, %v705
      %v722 = vsub.f32 1.0, %v706
      %v723 = vsub.f32 1.0, %v707
      %v724 = vsub.f32 1.0, %v708
      %v725 = vsub.f32 1.0, %v709
      %v726 = vsub.f32 1.0, %v710
      %v727 = vsub.f32 1.0, %v711
      %v728 = vsub.f32 1.0, %v712
      %v729 = vsub.f32 1.0, %v713
      %v730 = vsub.f32 1.0, %v714
      %v731 = vsub.f32 1.0, %v715
      %v732 = vsub.f32 1.0, %v716
      %v733 = vsub.f32 1.0, %v717
      %v734 = vsub.f32 1.0, %v718
      %v735 = vadd.f32 %v639, %v719
      %v736 = vadd.f32 %v640, %v720
      %v737 = vadd.f32 %v641, %v721
      %v738 = vadd.f32 %v642, %v722
      %v739 = vadd.f32 %v643, %v723
      %v740 = vadd.f32 %v644, %v724
      %v741 = vadd.f32 %v645, %v725
      %v742 = vadd.f32 %v646, %v726
      %v743 = vadd.f32 %v647, %v727
      %v744 = vadd.f32 %v648, %v728
      %v745 = vadd.f32 %v649, %v729
      %v746 = vadd.f32 %v650, %v730
      %v747 = vadd.f32 %v651, %v731
      %v748 = vadd.f32 %v652, %v732
      %v749 = vadd.f32 %v653, %v733
      %v750 = vadd.f32 %v654, %v734
      %v751 = vand.u32 2147483647, %v735
      %v752 = vand.u32 2147483647, %v736
      %v753 = vand.u32 2147483647, %v737
      %v754 = vand.u32 2147483647, %v738
      %v755 = vand.u32 2147483647, %v739
      %v756 = vand.u32 2147483647, %v740
      %v757 = vand.u32 2147483647, %v741
      %v758 = vand.u32 2147483647, %v742
      %v759 = vand.u32 2147483647, %v743
      %v760 = vand.u32 2147483647, %v744
      %v761 = vand.u32 2147483647, %v745
      %v762 = vand.u32 2147483647, %v746
      %v763 = vand.u32 2147483647, %v747
      %v764 = vand.u32 2147483647, %v748
      %v765 = vand.u32 2147483647, %v749
      %v766 = vand.u32 2147483647, %v750
      %v767 = vlog2.pop %v751
      %v768 = vmul.f32 %v767, 0.6931472
      %v769 = vlog2.pop %v752
      %v770 = vmul.f32 %v769, 0.6931472
      %v771 = vlog2.pop %v753
      %v772 = vmul.f32 %v771, 0.6931472
      %v773 = vlog2.pop %v754
      %v774 = vmul.f32 %v773, 0.6931472
      %v775 = vlog2.pop %v755
      %v776 = vmul.f32 %v775, 0.6931472
      %v777 = vlog2.pop %v756
      %v778 = vmul.f32 %v777, 0.6931472
      %v779 = vlog2.pop %v757
      %v780 = vmul.f32 %v779, 0.6931472
      %v781 = vlog2.pop %v758
      %v782 = vmul.f32 %v781, 0.6931472
      %v783 = vlog2.pop %v759
      %v784 = vmul.f32 %v783, 0.6931472
      %v785 = vlog2.pop %v760
      %v786 = vmul.f32 %v785, 0.6931472
      %v787 = vlog2.pop %v761
      %v788 = vmul.f32 %v787, 0.6931472
      %v789 = vlog2.pop %v762
      %v790 = vmul.f32 %v789, 0.6931472
      %v791 = vlog2.pop %v763
      %v792 = vmul.f32 %v791, 0.6931472
      %v793 = vlog2.pop %v764
      %v794 = vmul.f32 %v793, 0.6931472
      %v795 = vlog2.pop %v765
      %v796 = vmul.f32 %v795, 0.6931472
      %v797 = vlog2.pop %v766
      %v798 = vmul.f32 %v797, 0.6931472
      %vm799 = vcmp.lt.f32.partialorder %v735, 0.0
      %vm800 = vcmp.lt.f32.partialorder %v736, 0.0
      %vm801 = vcmp.lt.f32.partialorder %v737, 0.0
      %vm802 = vcmp.lt.f32.partialorder %v738, 0.0
      %vm803 = vcmp.lt.f32.partialorder %v739, 0.0
      %vm804 = vcmp.lt.f32.partialorder %v740, 0.0
      %vm805 = vcmp.lt.f32.partialorder %v741, 0.0
      %vm806 = vcmp.lt.f32.partialorder %v742, 0.0
      %vm807 = vcmp.lt.f32.partialorder %v743, 0.0
      %vm808 = vcmp.lt.f32.partialorder %v744, 0.0
      %vm809 = vcmp.lt.f32.partialorder %v745, 0.0
      %vm810 = vcmp.lt.f32.partialorder %v746, 0.0
      %vm811 = vcmp.lt.f32.partialorder %v747, 0.0
      %vm812 = vcmp.lt.f32.partialorder %v748, 0.0
      %vm813 = vcmp.lt.f32.partialorder %v749, 0.0
      %vm814 = vcmp.lt.f32.partialorder %v750, 0.0
      %v815 = vsel %vm799, 1, 0
      %v816 = vsel %vm800, 1, 0
      %v817 = vsel %vm801, 1, 0
      %v818 = vsel %vm802, 1, 0
      %v819 = vsel %vm803, 1, 0
      %v820 = vsel %vm804, 1, 0
      %v821 = vsel %vm805, 1, 0
      %v822 = vsel %vm806, 1, 0
      %v823 = vsel %vm807, 1, 0
      %v824 = vsel %vm808, 1, 0
      %v825 = vsel %vm809, 1, 0
      %v826 = vsel %vm810, 1, 0
      %v827 = vsel %vm811, 1, 0
      %v828 = vsel %vm812, 1, 0
      %v829 = vsel %vm813, 1, 0
      %v830 = vsel %vm814, 1, 0
      %v831 = vcvt.s32.f32 %v815
      %v832 = vcvt.s32.f32 %v816
      %v833 = vcvt.s32.f32 %v817
      %v834 = vcvt.s32.f32 %v818
      %v835 = vcvt.s32.f32 %v819
      %v836 = vcvt.s32.f32 %v820
      %v837 = vcvt.s32.f32 %v821
      %v838 = vcvt.s32.f32 %v822
      %v839 = vcvt.s32.f32 %v823
      %v840 = vcvt.s32.f32 %v824
      %v841 = vcvt.s32.f32 %v825
      %v842 = vcvt.s32.f32 %v826
      %v843 = vcvt.s32.f32 %v827
      %v844 = vcvt.s32.f32 %v828
      %v845 = vcvt.s32.f32 %v829
      %v846 = vcvt.s32.f32 %v830
      %v847 = vpack.c.bf16 %v770, %v768
      %v848 = vpack.c.bf16 %v774, %v772
      %v849 = vpack.c.bf16 %v778, %v776
      %v850 = vpack.c.bf16 %v782, %v780
      %v851 = vpack.c.bf16 %v786, %v784
      %v852 = vpack.c.bf16 %v790, %v788
      %v853 = vpack.c.bf16 %v794, %v792
      %v854 = vpack.c.bf16 %v798, %v796
      %v855 = vpack.c.bf16 %v832, %v831
      %v856 = vpack.c.bf16 %v834, %v833
      %v857 = vpack.c.bf16 %v836, %v835
      %v858 = vpack.c.bf16 %v838, %v837
      %v859 = vpack.c.bf16 %v840, %v839
      %v860 = vpack.c.bf16 %v842, %v841
      %v861 = vpack.c.bf16 %v844, %v843
      %v862 = vpack.c.bf16 %v846, %v845
      %v879 = vunpack.c.l.b16 %v253
      %v880 = vunpack.c.l.b16 %v254
      %v881 = vunpack.c.l.b16 %v255
      %v882 = vunpack.c.l.b16 %v256
      %v883 = vunpack.c.l.b16 %v257
      %v884 = vunpack.c.l.b16 %v258
      %v885 = vunpack.c.l.b16 %v259
      %v886 = vunpack.c.l.b16 %v260
      %v887 = vunpack.c.l.b16 %v261
      %v888 = vunpack.c.l.b16 %v262
      %v889 = vunpack.c.l.b16 %v263
      %v890 = vunpack.c.l.b16 %v264
      %v891 = vunpack.c.l.b16 %v265
      %v892 = vunpack.c.l.b16 %v266
      %v893 = vunpack.c.l.b16 %v267
      %v894 = vunpack.c.l.b16 %v268
      %v895 = vpack.c.b16 %v880, %v879
      %v896 = vpack.c.b16 %v882, %v881
      %v897 = vpack.c.b16 %v884, %v883
      %v898 = vpack.c.b16 %v886, %v885
      %v899 = vpack.c.b16 %v888, %v887
      %v900 = vpack.c.b16 %v890, %v889
      %v901 = vpack.c.b16 %v892, %v891
      %v902 = vpack.c.b16 %v894, %v893
      %911 = vmatprep.subr.bf16.mxu0 0
      %912 = vmatpush1.bf16.msra.mxu0 %v895
      %913 = vmatprep.subr.bf16.mxu0 0
      %914 = vmatpush1.bf16.msra.mxu0 %v896
      %915 = vmatprep.subr.bf16.mxu0 0
      %916 = vmatpush1.bf16.msra.mxu0 %v897
      %917 = vmatprep.subr.bf16.mxu0 0
      %918 = vmatpush1.bf16.msra.mxu0 %v898
      %919 = vmatprep.subr.bf16.mxu0 0
      %920 = vmatpush1.bf16.msra.mxu0 %v899
      %921 = vmatprep.subr.bf16.mxu0 0
      %922 = vmatpush1.bf16.msra.mxu0 %v900
      %923 = vmatprep.subr.bf16.mxu0 0
      %924 = vmatpush1.bf16.msra.mxu0 %v901
      %925 = vmatprep.subr.bf16.mxu0 0
      %926 = vmatpush1.bf16.msra.mxu0 %v902
      %927 = vmatprep.subr.bf16.mxu0 0
      %928 = vmatpush1.bf16.msra.mxu0 0
      %929 = vmatprep.subr.bf16.mxu0 0
      %930 = vmatpush1.bf16.msra.mxu0 0
      %931 = vmatprep.subr.bf16.mxu0 0
      %932 = vmatpush1.bf16.msra.mxu0 0
      %933 = vmatprep.subr.bf16.mxu0 0
      %934 = vmatpush1.bf16.msra.mxu0 0
      %935 = vmatprep.subr.bf16.mxu0 0
      %936 = vmatpush1.bf16.msra.mxu0 0
      %937 = vmatprep.subr.bf16.mxu0 0
      %938 = vmatpush1.bf16.msra.mxu0 0
      %939 = vmatprep.subr.bf16.mxu0 0
      %940 = vmatpush1.bf16.msra.mxu0 0
      %941 = vmatprep.subr.bf16.mxu0 0
      %942 = vmatpush1.bf16.msra.mxu0 0
      %943 = vmatprep.mubr.bf16.mxu0 0
      %944 = vmatmul.mubr.bf16.gmra.mrb[0].mxu0 %v847
      %v945 = vpop.f32.mrb[0].mxu0
      %v946 = vadd.f32 0.0, %v945
      %v947 = vpop.f32.mrb[0].mxu0
      %v948 = vpop.f32.mrb[0].mxu0
      %v949 = vadd.f32 0.0, %v948
      %v950 = vpop.f32.mrb[0].mxu0
      %951 = vmatprep.mubr.bf16.mxu0 0
      %952 = vmatmul.mubr.bf16.gmra.mrb[0].mxu0 %v848
      %v953 = vpop.f32.mrb[0].mxu0
      %v954 = vadd.f32 0.0, %v953
      %v955 = vpop.f32.mrb[0].mxu0
      %v956 = vpop.f32.mrb[0].mxu0
      %v957 = vadd.f32 0.0, %v956
      %v958 = vpop.f32.mrb[0].mxu0
      %959 = vmatprep.mubr.bf16.mxu0 0
      %960 = vmatmul.mubr.bf16.gmra.mrb[0].mxu0 %v849
      %v961 = vpop.f32.mrb[0].mxu0
      %v962 = vadd.f32 0.0, %v961
      %v963 = vpop.f32.mrb[0].mxu0
      %v964 = vpop.f32.mrb[0].mxu0
      %v965 = vadd.f32 0.0, %v964
      %v966 = vpop.f32.mrb[0].mxu0
      %967 = vmatprep.mubr.bf16.mxu0 0
      %968 = vmatmul.mubr.bf16.gmra.mrb[0].mxu0 %v850
      %v969 = vpop.f32.mrb[0].mxu0
      %v970 = vadd.f32 0.0, %v969
      %v971 = vpop.f32.mrb[0].mxu0
      %v972 = vpop.f32.mrb[0].mxu0
      %v973 = vadd.f32 0.0, %v972
      %v974 = vpop.f32.mrb[0].mxu0
      %975 = vmatprep.mubr.bf16.mxu0 0
      %976 = vmatmul.mubr.bf16.gmra.mrb[0].mxu0 %v851
      %v977 = vpop.f32.mrb[0].mxu0
      %v978 = vadd.f32 0.0, %v977
      %v979 = vpop.f32.mrb[0].mxu0
      %v980 = vpop.f32.mrb[0].mxu0
      %v981 = vadd.f32 0.0, %v980
      %v982 = vpop.f32.mrb[0].mxu0
      %983 = vmatprep.mubr.bf16.mxu0 0
      %984 = vmatmul.mubr.bf16.gmra.mrb[0].mxu0 %v852
      %v985 = vpop.f32.mrb[0].mxu0
      %v986 = vadd.f32 0.0, %v985
      %v987 = vpop.f32.mrb[0].mxu0
      %v988 = vpop.f32.mrb[0].mxu0
      %v989 = vadd.f32 0.0, %v988
      %v990 = vpop.f32.mrb[0].mxu0
      %991 = vmatprep.mubr.bf16.mxu0 0
      %992 = vmatmul.mubr.bf16.gmra.mrb[0].mxu0 %v853
      %v993 = vpop.f32.mrb[0].mxu0
      %v994 = vadd.f32 0.0, %v993
      %v995 = vpop.f32.mrb[0].mxu0
      %v996 = vpop.f32.mrb[0].mxu0
      %v997 = vadd.f32 0.0, %v996
      %v998 = vpop.f32.mrb[0].mxu0
      %999 = vmatprep.mubr.bf16.mxu0 0
      %1000 = vmatmul.mubr.bf16.gmra.mrb[0].mxu0 %v854
      %v1001 = vpop.f32.mrb[0].mxu0
      %v1002 = vadd.f32 0.0, %v1001
      %v1003 = vpop.f32.mrb[0].mxu0
      %v1004 = vpop.f32.mrb[0].mxu0
      %v1005 = vadd.f32 0.0, %v1004
      %v1006 = vpop.f32.mrb[0].mxu0
      %1007 = vmatprep.mubr.bf16.mxu0 0
      %1008 = vmatmul.mubr.bf16.gmra.mrb[0].mxu0 %v855
      %v1009 = vpop.f32.mrb[0].mxu0
      %v1010 = vadd.f32 0.0, %v1009
      %v1011 = vpop.f32.mrb[0].mxu0
      %v1012 = vpop.f32.mrb[0].mxu0
      %v1013 = vadd.f32 0.0, %v1012
      %v1014 = vpop.f32.mrb[0].mxu0
      %1015 = vmatprep.mubr.bf16.mxu0 0
      %1016 = vmatmul.mubr.bf16.gmra.mrb[0].mxu0 %v856
      %v1017 = vpop.f32.mrb[0].mxu0
      %v1018 = vadd.f32 0.0, %v1017
      %v1019 = vpop.f32.mrb[0].mxu0
      %v1020 = vpop.f32.mrb[0].mxu0
      %v1021 = vadd.f32 0.0, %v1020
      %v1022 = vpop.f32.mrb[0].mxu0
      %1023 = vmatprep.mubr.bf16.mxu0 0
      %1024 = vmatmul.mubr.bf16.gmra.mrb[0].mxu0 %v857
      %v1025 = vpop.f32.mrb[0].mxu0
      %v1026 = vadd.f32 0.0, %v1025
      %v1027 = vpop.f32.mrb[0].mxu0
      %v1028 = vpop.f32.mrb[0].mxu0
      %v1029 = vadd.f32 0.0, %v1028
      %v1030 = vpop.f32.mrb[0].mxu0
      %1031 = vmatprep.mubr.bf16.mxu0 0
      %1032 = vmatmul.mubr.bf16.gmra.mrb[0].mxu0 %v858
      %v1033 = vpop.f32.mrb[0].mxu0
      %v1034 = vadd.f32 0.0, %v1033
      %v1035 = vpop.f32.mrb[0].mxu0
      %v1036 = vpop.f32.mrb[0].mxu0
      %v1037 = vadd.f32 0.0, %v1036
      %v1038 = vpop.f32.mrb[0].mxu0
      %1039 = vmatprep.mubr.bf16.mxu0 0
      %1040 = vmatmul.mubr.bf16.gmra.mrb[0].mxu0 %v859
      %v1041 = vpop.f32.mrb[0].mxu0
      %v1042 = vadd.f32 0.0, %v1041
      %v1043 = vpop.f32.mrb[0].mxu0
      %v1044 = vpop.f32.mrb[0].mxu0
      %v1045 = vadd.f32 0.0, %v1044
      %v1046 = vpop.f32.mrb[0].mxu0
      %1047 = vmatprep.mubr.bf16.mxu0 0
      %1048 = vmatmul.mubr.bf16.gmra.mrb[0].mxu0 %v860
      %v1049 = vpop.f32.mrb[0].mxu0
      %v1050 = vadd.f32 0.0, %v1049
      %v1051 = vpop.f32.mrb[0].mxu0
      %v1052 = vpop.f32.mrb[0].mxu0
      %v1053 = vadd.f32 0.0, %v1052
      %v1054 = vpop.f32.mrb[0].mxu0
      %1055 = vmatprep.mubr.bf16.mxu0 0
      %1056 = vmatmul.mubr.bf16.gmra.mrb[0].mxu0 %v861
      %v1057 = vpop.f32.mrb[0].mxu0
      %v1058 = vadd.f32 0.0, %v1057
      %v1059 = vpop.f32.mrb[0].mxu0
      %v1060 = vpop.f32.mrb[0].mxu0
      %v1061 = vadd.f32 0.0, %v1060
      %v1062 = vpop.f32.mrb[0].mxu0
      %1063 = vmatprep.mubr.bf16.mxu0 0
      %1064 = vmatmul.mubr.bf16.gmra.mrb[0].mxu0 %v862
      %v1065 = vpop.f32.mrb[0].mxu0
      %v1066 = vadd.f32 0.0, %v1065
      %v1067 = vpop.f32.mrb[0].mxu0
      %v1068 = vpop.f32.mrb[0].mxu0
      %v1069 = vadd.f32 0.0, %v1068
      %v1070 = vpop.f32.mrb[0].mxu0
      %1071 = vdwg.mxu0
      %v1072 = vmul.f32 %v1010, 0.5
      %v1073 = vmul.f32 %v1013, 0.5
      %v1074 = vmul.f32 %v1018, 0.5
      %v1075 = vmul.f32 %v1021, 0.5
      %v1076 = vmul.f32 %v1026, 0.5
      %v1077 = vmul.f32 %v1029, 0.5
      %v1078 = vmul.f32 %v1034, 0.5
      %v1079 = vmul.f32 %v1037, 0.5
      %v1080 = vmul.f32 %v1042, 0.5
      %v1081 = vmul.f32 %v1045, 0.5
      %v1082 = vmul.f32 %v1050, 0.5
      %v1083 = vmul.f32 %v1053, 0.5
      %v1084 = vmul.f32 %v1058, 0.5
      %v1085 = vmul.f32 %v1061, 0.5
      %v1086 = vmul.f32 %v1066, 0.5
      %v1087 = vmul.f32 %v1069, 0.5
      %v1088 = vfloor.f32 %v1072
      %v1089 = vfloor.f32 %v1073
      %v1090 = vfloor.f32 %v1074
      %v1091 = vfloor.f32 %v1075
      %v1092 = vfloor.f32 %v1076
      %v1093 = vfloor.f32 %v1077
      %v1094 = vfloor.f32 %v1078
      %v1095 = vfloor.f32 %v1079
      %v1096 = vfloor.f32 %v1080
      %v1097 = vfloor.f32 %v1081
      %v1098 = vfloor.f32 %v1082
      %v1099 = vfloor.f32 %v1083
      %v1100 = vfloor.f32 %v1084
      %v1101 = vfloor.f32 %v1085
      %v1102 = vfloor.f32 %v1086
      %v1103 = vfloor.f32 %v1087
      %v1104 = vmul.f32 %v1088, 2.0
      %v1105 = vmul.f32 %v1089, 2.0
      %v1106 = vmul.f32 %v1090, 2.0
      %v1107 = vmul.f32 %v1091, 2.0
      %v1108 = vmul.f32 %v1092, 2.0
      %v1109 = vmul.f32 %v1093, 2.0
      %v1110 = vmul.f32 %v1094, 2.0
      %v1111 = vmul.f32 %v1095, 2.0
      %v1112 = vmul.f32 %v1096, 2.0
      %v1113 = vmul.f32 %v1097, 2.0
      %v1114 = vmul.f32 %v1098, 2.0
      %v1115 = vmul.f32 %v1099, 2.0
      %v1116 = vmul.f32 %v1100, 2.0
      %v1117 = vmul.f32 %v1101, 2.0
      %v1118 = vmul.f32 %v1102, 2.0
      %v1119 = vmul.f32 %v1103, 2.0
      %v1120 = vsub.f32 %v1010, %v1104
      %v1121 = vsub.f32 %v1013, %v1105
      %v1122 = vsub.f32 %v1018, %v1106
      %v1123 = vsub.f32 %v1021, %v1107
      %v1124 = vsub.f32 %v1026, %v1108
      %v1125 = vsub.f32 %v1029, %v1109
      %v1126 = vsub.f32 %v1034, %v1110
      %v1127 = vsub.f32 %v1037, %v1111
      %v1128 = vsub.f32 %v1042, %v1112
      %v1129 = vsub.f32 %v1045, %v1113
      %v1130 = vsub.f32 %v1050, %v1114
      %v1131 = vsub.f32 %v1053, %v1115
      %v1132 = vsub.f32 %v1058, %v1116
      %v1133 = vsub.f32 %v1061, %v1117
      %v1134 = vsub.f32 %v1066, %v1118
      %v1135 = vsub.f32 %v1069, %v1119
      %v1136 = vmul.f32 %v1120, 2.0
      %v1137 = vmul.f32 %v1121, 2.0
      %v1138 = vmul.f32 %v1122, 2.0
      %v1139 = vmul.f32 %v1123, 2.0
      %v1140 = vmul.f32 %v1124, 2.0
      %v1141 = vmul.f32 %v1125, 2.0
      %v1142 = vmul.f32 %v1126, 2.0
      %v1143 = vmul.f32 %v1127, 2.0
      %v1144 = vmul.f32 %v1128, 2.0
      %v1145 = vmul.f32 %v1129, 2.0
      %v1146 = vmul.f32 %v1130, 2.0
      %v1147 = vmul.f32 %v1131, 2.0
      %v1148 = vmul.f32 %v1132, 2.0
      %v1149 = vmul.f32 %v1133, 2.0
      %v1150 = vmul.f32 %v1134, 2.0
      %v1151 = vmul.f32 %v1135, 2.0
      %v1152 = vsub.f32 1.0, %v1136
      %v1153 = vsub.f32 1.0, %v1137
      %v1154 = vsub.f32 1.0, %v1138
      %v1155 = vsub.f32 1.0, %v1139
      %v1156 = vsub.f32 1.0, %v1140
      %v1157 = vsub.f32 1.0, %v1141
      %v1158 = vsub.f32 1.0, %v1142
      %v1159 = vsub.f32 1.0, %v1143
      %v1160 = vsub.f32 1.0, %v1144
      %v1161 = vsub.f32 1.0, %v1145
      %v1162 = vsub.f32 1.0, %v1146
      %v1163 = vsub.f32 1.0, %v1147
      %v1164 = vsub.f32 1.0, %v1148
      %v1165 = vsub.f32 1.0, %v1149
      %v1166 = vsub.f32 1.0, %v1150
      %v1167 = vsub.f32 1.0, %v1151
      %v1168 = vmul.f32 %v946, 1.442695
      %v1169 = vpow.pop %v1168
      %v1170 = vmul.f32 %v949, 1.442695
      %v1171 = vpow.pop %v1170
      %v1172 = vmul.f32 %v954, 1.442695
      %v1173 = vpow.pop %v1172
      %v1174 = vmul.f32 %v957, 1.442695
      %v1175 = vpow.pop %v1174
      %v1176 = vmul.f32 %v962, 1.442695
      %v1177 = vpow.pop %v1176
      %v1178 = vmul.f32 %v965, 1.442695
      %v1179 = vpow.pop %v1178
      %v1180 = vmul.f32 %v970, 1.442695
      %v1181 = vpow.pop %v1180
      %v1182 = vmul.f32 %v973, 1.442695
      %v1183 = vpow.pop %v1182
      %v1184 = vmul.f32 %v978, 1.442695
      %v1185 = vpow.pop %v1184
      %v1186 = vmul.f32 %v981, 1.442695
      %v1187 = vpow.pop %v1186
      %v1188 = vmul.f32 %v986, 1.442695
      %v1189 = vpow.pop %v1188
      %v1190 = vmul.f32 %v989, 1.442695
      %v1191 = vpow.pop %v1190
      %v1192 = vmul.f32 %v994, 1.442695
      %v1193 = vpow.pop %v1192
      %v1194 = vmul.f32 %v997, 1.442695
      %v1195 = vpow.pop %v1194
      %v1196 = vmul.f32 %v1002, 1.442695
      %v1197 = vpow.pop %v1196
      %v1198 = vmul.f32 %v1005, 1.442695
      %v1199 = vpow.pop %v1198
      %v1200 = vmul.f32 %v1152, %v1169
      %v1201 = vmul.f32 %v1153, %v1171
      %v1202 = vmul.f32 %v1154, %v1173
      %v1203 = vmul.f32 %v1155, %v1175
      %v1204 = vmul.f32 %v1156, %v1177
      %v1205 = vmul.f32 %v1157, %v1179
      %v1206 = vmul.f32 %v1158, %v1181
      %v1207 = vmul.f32 %v1159, %v1183
      %v1208 = vmul.f32 %v1160, %v1185
      %v1209 = vmul.f32 %v1161, %v1187
      %v1210 = vmul.f32 %v1162, %v1189
      %v1211 = vmul.f32 %v1163, %v1191
      %v1212 = vmul.f32 %v1164, %v1193
      %v1213 = vmul.f32 %v1165, %v1195
      %v1214 = vmul.f32 %v1166, %v1197
      %v1215 = vmul.f32 %v1167, %v1199
      %v1216 = vmax.f32 %v1200, -10.0
      %v1217 = vmax.f32 %v1201, -10.0
      %v1218 = vmax.f32 %v1202, -10.0
      %v1219 = vmax.f32 %v1203, -10.0
      %v1220 = vmax.f32 %v1204, -10.0
      %v1221 = vmax.f32 %v1205, -10.0
      %v1222 = vmax.f32 %v1206, -10.0
      %v1223 = vmax.f32 %v1207, -10.0
      %v1224 = vmax.f32 %v1208, -10.0
      %v1225 = vmax.f32 %v1209, -10.0
      %v1226 = vmax.f32 %v1210, -10.0
      %v1227 = vmax.f32 %v1211, -10.0
      %v1228 = vmax.f32 %v1212, -10.0
      %v1229 = vmax.f32 %v1213, -10.0
      %v1230 = vmax.f32 %v1214, -10.0
      %v1231 = vmax.f32 %v1215, -10.0
      %v1232 = vmin.f32 %v1216, 10.0
      %v1233 = vmin.f32 %v1217, 10.0
      %v1234 = vmin.f32 %v1218, 10.0
      %v1235 = vmin.f32 %v1219, 10.0
      %v1236 = vmin.f32 %v1220, 10.0
      %v1237 = vmin.f32 %v1221, 10.0
      %v1238 = vmin.f32 %v1222, 10.0
      %v1239 = vmin.f32 %v1223, 10.0
      %v1240 = vmin.f32 %v1224, 10.0
      %v1241 = vmin.f32 %v1225, 10.0
      %v1242 = vmin.f32 %v1226, 10.0
      %v1243 = vmin.f32 %v1227, 10.0
      %v1244 = vmin.f32 %v1228, 10.0
      %v1245 = vmin.f32 %v1229, 10.0
      %v1246 = vmin.f32 %v1230, 10.0
      %v1247 = vmin.f32 %v1231, 10.0
      %v1248 = vmax.f32 %v1232, -0.999999
      %v1249 = vmax.f32 %v1233, -0.999999
      %v1250 = vmax.f32 %v1234, -0.999999
      %v1251 = vmax.f32 %v1235, -0.999999
      %v1252 = vmax.f32 %v1236, -0.999999
      %v1253 = vmax.f32 %v1237, -0.999999
      %v1254 = vmax.f32 %v1238, -0.999999
      %v1255 = vmax.f32 %v1239, -0.999999
      %v1256 = vmax.f32 %v1240, -0.999999
      %v1257 = vmax.f32 %v1241, -0.999999
      %v1258 = vmax.f32 %v1242, -0.999999
      %v1259 = vmax.f32 %v1243, -0.999999
      %v1260 = vmax.f32 %v1244, -0.999999
      %v1261 = vmax.f32 %v1245, -0.999999
      %v1262 = vmax.f32 %v1246, -0.999999
      %v1263 = vmax.f32 %v1247, -0.999999
      %v1264 = vmin.f32 %v1248, 0.999999
      %v1265 = vmin.f32 %v1249, 0.999999
      %v1266 = vmin.f32 %v1250, 0.999999
      %v1267 = vmin.f32 %v1251, 0.999999
      %v1268 = vmin.f32 %v1252, 0.999999
      %v1269 = vmin.f32 %v1253, 0.999999
      %v1270 = vmin.f32 %v1254, 0.999999
      %v1271 = vmin.f32 %v1255, 0.999999
      %v1272 = vmin.f32 %v1256, 0.999999
      %v1273 = vmin.f32 %v1257, 0.999999
      %v1274 = vmin.f32 %v1258, 0.999999
      %v1275 = vmin.f32 %v1259, 0.999999
      %v1276 = vmin.f32 %v1260, 0.999999
      %v1277 = vmin.f32 %v1261, 0.999999
      %v1278 = vmin.f32 %v1262, 0.999999
      %v1279 = vmin.f32 %v1263, 0.999999
      %v1280 = vadd.f32 %v1264, 1.0
      %v1281 = vadd.f32 %v1265, 1.0
      %v1282 = vadd.f32 %v1266, 1.0
      %v1283 = vadd.f32 %v1267, 1.0
      %v1284 = vadd.f32 %v1268, 1.0
      %v1285 = vadd.f32 %v1269, 1.0
      %v1286 = vadd.f32 %v1270, 1.0
      %v1287 = vadd.f32 %v1271, 1.0
      %v1288 = vadd.f32 %v1272, 1.0
      %v1289 = vadd.f32 %v1273, 1.0
      %v1290 = vadd.f32 %v1274, 1.0
      %v1291 = vadd.f32 %v1275, 1.0
      %v1292 = vadd.f32 %v1276, 1.0
      %v1293 = vadd.f32 %v1277, 1.0
      %v1294 = vadd.f32 %v1278, 1.0
      %v1295 = vadd.f32 %v1279, 1.0
      %v1296 = vsub.f32 1.0, %v1264
      %v1297 = vsub.f32 1.0, %v1265
      %v1298 = vsub.f32 1.0, %v1266
      %v1299 = vsub.f32 1.0, %v1267
      %v1300 = vsub.f32 1.0, %v1268
      %v1301 = vsub.f32 1.0, %v1269
      %v1302 = vsub.f32 1.0, %v1270
      %v1303 = vsub.f32 1.0, %v1271
      %v1304 = vsub.f32 1.0, %v1272
      %v1305 = vsub.f32 1.0, %v1273
      %v1306 = vsub.f32 1.0, %v1274
      %v1307 = vsub.f32 1.0, %v1275
      %v1308 = vsub.f32 1.0, %v1276
      %v1309 = vsub.f32 1.0, %v1277
      %v1310 = vsub.f32 1.0, %v1278
      %v1311 = vsub.f32 1.0, %v1279
      %v1312 = vrcp.pop %v1296
      %v1313 = vrcp.pop %v1297
      %v1314 = vrcp.pop %v1298
      %v1315 = vrcp.pop %v1299
      %v1316 = vrcp.pop %v1300
      %v1317 = vrcp.pop %v1301
      %v1318 = vrcp.pop %v1302
      %v1319 = vrcp.pop %v1303
      %v1320 = vrcp.pop %v1304
      %v1321 = vrcp.pop %v1305
      %v1322 = vrcp.pop %v1306
      %v1323 = vrcp.pop %v1307
      %v1324 = vrcp.pop %v1308
      %v1325 = vrcp.pop %v1309
      %v1326 = vrcp.pop %v1310
      %v1327 = vrcp.pop %v1311
      %v1328 = vmul.f32 %v1280, %v1312
      %v1329 = vmul.f32 %v1281, %v1313
      %v1330 = vmul.f32 %v1282, %v1314
      %v1331 = vmul.f32 %v1283, %v1315
      %v1332 = vmul.f32 %v1284, %v1316
      %v1333 = vmul.f32 %v1285, %v1317
      %v1334 = vmul.f32 %v1286, %v1318
      %v1335 = vmul.f32 %v1287, %v1319
      %v1336 = vmul.f32 %v1288, %v1320
      %v1337 = vmul.f32 %v1289, %v1321
      %v1338 = vmul.f32 %v1290, %v1322
      %v1339 = vmul.f32 %v1291, %v1323
      %v1340 = vmul.f32 %v1292, %v1324
      %v1341 = vmul.f32 %v1293, %v1325
      %v1342 = vmul.f32 %v1294, %v1326
      %v1343 = vmul.f32 %v1295, %v1327
      %v1344 = vlog2.pop %v1328
      %v1345 = vmul.f32 %v1344, 0.6931472
      %v1346 = vlog2.pop %v1329
      %v1347 = vmul.f32 %v1346, 0.6931472
      %v1348 = vlog2.pop %v1330
      %v1349 = vmul.f32 %v1348, 0.6931472
      %v1350 = vlog2.pop %v1331
      %v1351 = vmul.f32 %v1350, 0.6931472
      %v1352 = vlog2.pop %v1332
      %v1353 = vmul.f32 %v1352, 0.6931472
      %v1354 = vlog2.pop %v1333
      %v1355 = vmul.f32 %v1354, 0.6931472
      %v1356 = vlog2.pop %v1334
      %v1357 = vmul.f32 %v1356, 0.6931472
      %v1358 = vlog2.pop %v1335
      %v1359 = vmul.f32 %v1358, 0.6931472
      %v1360 = vlog2.pop %v1336
      %v1361 = vmul.f32 %v1360, 0.6931472
      %v1362 = vlog2.pop %v1337
      %v1363 = vmul.f32 %v1362, 0.6931472
      %v1364 = vlog2.pop %v1338
      %v1365 = vmul.f32 %v1364, 0.6931472
      %v1366 = vlog2.pop %v1339
      %v1367 = vmul.f32 %v1366, 0.6931472
      %v1368 = vlog2.pop %v1340
      %v1369 = vmul.f32 %v1368, 0.6931472
      %v1370 = vlog2.pop %v1341
      %v1371 = vmul.f32 %v1370, 0.6931472
      %v1372 = vlog2.pop %v1342
      %v1373 = vmul.f32 %v1372, 0.6931472
      %v1374 = vlog2.pop %v1343
      %v1375 = vmul.f32 %v1374, 0.6931472
      %s1376 = scalar_lea.vmem %s1, 64
      %v1377 = vld [vmem:[%s1376] sm:$0xf]
      %v1378 = vld [vmem:[%s1376 + $0x4] sm:$0xf]
      %v1379 = vld [vmem:[%s1376 + $0x8] sm:$0xf]
      %v1380 = vld [vmem:[%s1376 + $0xc] sm:$0xf]
      %v1381 = vld [vmem:[%s1376 + $0x10] sm:$0xf]
      %v1382 = vld [vmem:[%s1376 + $0x14] sm:$0xf]
      %v1383 = vld [vmem:[%s1376 + $0x18] sm:$0xf]
      %v1384 = vld [vmem:[%s1376 + $0x1c] sm:$0xf]
      %v1385 = vld [vmem:[%s1376 + $0x20] sm:$0xf]
      %v1386 = vld [vmem:[%s1376 + $0x24] sm:$0xf]
      %v1387 = vld [vmem:[%s1376 + $0x28] sm:$0xf]
      %v1388 = vld [vmem:[%s1376 + $0x2c] sm:$0xf]
      %v1389 = vld [vmem:[%s1376 + $0x30] sm:$0xf]
      %v1390 = vld [vmem:[%s1376 + $0x34] sm:$0xf]
      %v1391 = vld [vmem:[%s1376 + $0x38] sm:$0xf]
      %v1392 = vld [vmem:[%s1376 + $0x3c] sm:$0xf]
      %v1393 = vpack.c.bf16 %v1347, %v1345
      %v1394 = vpack.c.bf16 %v1351, %v1349
      %v1395 = vpack.c.bf16 %v1355, %v1353
      %v1396 = vpack.c.bf16 %v1359, %v1357
      %v1397 = vpack.c.bf16 %v1363, %v1361
      %v1398 = vpack.c.bf16 %v1367, %v1365
      %v1399 = vpack.c.bf16 %v1371, %v1369
      %v1400 = vpack.c.bf16 %v1375, %v1373
      %s1401 = scalar_lea.vmem %s2, 64
      %v1402 = vld [vmem:[%s1401] sm:$0xf]
      %v1403 = vld [vmem:[%s1401 + $0x4] sm:$0xf]
      %v1404 = vld [vmem:[%s1401 + $0x8] sm:$0xf]
      %v1405 = vld [vmem:[%s1401 + $0xc] sm:$0xf]
      %v1406 = vld [vmem:[%s1401 + $0x10] sm:$0xf]
      %v1407 = vld [vmem:[%s1401 + $0x14] sm:$0xf]
      %v1408 = vld [vmem:[%s1401 + $0x18] sm:$0xf]
      %v1409 = vld [vmem:[%s1401 + $0x1c] sm:$0xf]
      %v1410 = vld [vmem:[%s1401 + $0x20] sm:$0xf]
      %v1411 = vld [vmem:[%s1401 + $0x24] sm:$0xf]
      %v1412 = vld [vmem:[%s1401 + $0x28] sm:$0xf]
      %v1413 = vld [vmem:[%s1401 + $0x2c] sm:$0xf]
      %v1414 = vld [vmem:[%s1401 + $0x30] sm:$0xf]
      %v1415 = vld [vmem:[%s1401 + $0x34] sm:$0xf]
      %v1416 = vld [vmem:[%s1401 + $0x38] sm:$0xf]
      %v1417 = vld [vmem:[%s1401 + $0x3c] sm:$0xf]
      %v1434 = vunpack.c.l.b16 %v1402
      %v1435 = vunpack.c.l.b16 %v1403
      %v1436 = vunpack.c.l.b16 %v1404
      %v1437 = vunpack.c.l.b16 %v1405
      %v1438 = vunpack.c.l.b16 %v1406
      %v1439 = vunpack.c.l.b16 %v1407
      %v1440 = vunpack.c.l.b16 %v1408
      %v1441 = vunpack.c.l.b16 %v1409
      %v1442 = vunpack.c.l.b16 %v1410
      %v1443 = vunpack.c.l.b16 %v1411
      %v1444 = vunpack.c.l.b16 %v1412
      %v1445 = vunpack.c.l.b16 %v1413
      %v1446 = vunpack.c.l.b16 %v1414
      %v1447 = vunpack.c.l.b16 %v1415
      %v1448 = vunpack.c.l.b16 %v1416
      %v1449 = vunpack.c.l.b16 %v1417
      %v1450 = vpack.c.b16 %v1435, %v1434
      %v1451 = vpack.c.b16 %v1437, %v1436
      %v1452 = vpack.c.b16 %v1439, %v1438
      %v1453 = vpack.c.b16 %v1441, %v1440
      %v1454 = vpack.c.b16 %v1443, %v1442
      %v1455 = vpack.c.b16 %v1445, %v1444
      %v1456 = vpack.c.b16 %v1447, %v1446
      %v1457 = vpack.c.b16 %v1449, %v1448
      %1466 = vmatprep.subr.bf16.mxu0 0
      %1467 = vmatpush1.bf16.msra.mxu0 %v1450
      %1468 = vmatprep.subr.bf16.mxu0 0
      %1469 = vmatpush1.bf16.msra.mxu0 %v1451
      %1470 = vmatprep.subr.bf16.mxu0 0
      %1471 = vmatpush1.bf16.msra.mxu0 %v1452
      %1472 = vmatprep.subr.bf16.mxu0 0
      %1473 = vmatpush1.bf16.msra.mxu0 %v1453
      %1474 = vmatprep.subr.bf16.mxu0 0
      %1475 = vmatpush1.bf16.msra.mxu0 %v1454
      %1476 = vmatprep.subr.bf16.mxu0 0
      %1477 = vmatpush1.bf16.msra.mxu0 %v1455
      %1478 = vmatprep.subr.bf16.mxu0 0
      %1479 = vmatpush1.bf16.msra.mxu0 %v1456
      %1480 = vmatprep.subr.bf16.mxu0 0
      %1481 = vmatpush1.bf16.msra.mxu0 %v1457
      %1482 = vmatprep.subr.bf16.mxu0 0
      %1483 = vmatpush1.bf16.msra.mxu0 0
      %1484 = vmatprep.subr.bf16.mxu0 0
      %1485 = vmatpush1.bf16.msra.mxu0 0
      %1486 = vmatprep.subr.bf16.mxu0 0
      %1487 = vmatpush1.bf16.msra.mxu0 0
      %1488 = vmatprep.subr.bf16.mxu0 0
      %1489 = vmatpush1.bf16.msra.mxu0 0
      %1490 = vmatprep.subr.bf16.mxu0 0
      %1491 = vmatpush1.bf16.msra.mxu0 0
      %1492 = vmatprep.subr.bf16.mxu0 0
      %1493 = vmatpush1.bf16.msra.mxu0 0
      %1494 = vmatprep.subr.bf16.mxu0 0
      %1495 = vmatpush1.bf16.msra.mxu0 0
      %1496 = vmatprep.subr.bf16.mxu0 0
      %1497 = vmatpush1.bf16.msra.mxu0 0
      %1498 = vmatprep.mubr.bf16.mxu0 0
      %1499 = vmatmul.mubr.bf16.gmra.mrb[0].mxu0 %v1393
      %v1500 = vpop.f32.mrb[0].mxu0
      %v1501 = vadd.f32 0.0, %v1500
      %v1502 = vpop.f32.mrb[0].mxu0
      %v1503 = vpop.f32.mrb[0].mxu0
      %v1504 = vadd.f32 0.0, %v1503
      %v1505 = vpop.f32.mrb[0].mxu0
      %1506 = vmatprep.mubr.bf16.mxu0 0
      %1507 = vmatmul.mubr.bf16.gmra.mrb[0].mxu0 %v1394
      %v1508 = vpop.f32.mrb[0].mxu0
      %v1509 = vadd.f32 0.0, %v1508
      %v1510 = vpop.f32.mrb[0].mxu0
      %v1511 = vpop.f32.mrb[0].mxu0
      %v1512 = vadd.f32 0.0, %v1511
      %v1513 = vpop.f32.mrb[0].mxu0
      %1514 = vmatprep.mubr.bf16.mxu0 0
      %1515 = vmatmul.mubr.bf16.gmra.mrb[0].mxu0 %v1395
      %v1516 = vpop.f32.mrb[0].mxu0
      %v1517 = vadd.f32 0.0, %v1516
      %v1518 = vpop.f32.mrb[0].mxu0
      %v1519 = vpop.f32.mrb[0].mxu0
      %v1520 = vadd.f32 0.0, %v1519
      %v1521 = vpop.f32.mrb[0].mxu0
      %1522 = vmatprep.mubr.bf16.mxu0 0
      %1523 = vmatmul.mubr.bf16.gmra.mrb[0].mxu0 %v1396
      %v1524 = vpop.f32.mrb[0].mxu0
      %v1525 = vadd.f32 0.0, %v1524
      %v1526 = vpop.f32.mrb[0].mxu0
      %v1527 = vpop.f32.mrb[0].mxu0
      %v1528 = vadd.f32 0.0, %v1527
      %v1529 = vpop.f32.mrb[0].mxu0
      %1530 = vmatprep.mubr.bf16.mxu0 0
      %1531 = vmatmul.mubr.bf16.gmra.mrb[0].mxu0 %v1397
      %v1532 = vpop.f32.mrb[0].mxu0
      %v1533 = vadd.f32 0.0, %v1532
      %v1534 = vpop.f32.mrb[0].mxu0
      %v1535 = vpop.f32.mrb[0].mxu0
      %v1536 = vadd.f32 0.0, %v1535
      %v1537 = vpop.f32.mrb[0].mxu0
      %1538 = vmatprep.mubr.bf16.mxu0 0
      %1539 = vmatmul.mubr.bf16.gmra.mrb[0].mxu0 %v1398
      %v1540 = vpop.f32.mrb[0].mxu0
      %v1541 = vadd.f32 0.0, %v1540
      %v1542 = vpop.f32.mrb[0].mxu0
      %v1543 = vpop.f32.mrb[0].mxu0
      %v1544 = vadd.f32 0.0, %v1543
      %v1545 = vpop.f32.mrb[0].mxu0
      %1546 = vmatprep.mubr.bf16.mxu0 0
      %1547 = vmatmul.mubr.bf16.gmra.mrb[0].mxu0 %v1399
      %v1548 = vpop.f32.mrb[0].mxu0
      %v1549 = vadd.f32 0.0, %v1548
      %v1550 = vpop.f32.mrb[0].mxu0
      %v1551 = vpop.f32.mrb[0].mxu0
      %v1552 = vadd.f32 0.0, %v1551
      %v1553 = vpop.f32.mrb[0].mxu0
      %1554 = vmatprep.mubr.bf16.mxu0 0
      %1555 = vmatmul.mubr.bf16.gmra.mrb[0].mxu0 %v1400
      %v1556 = vpop.f32.mrb[0].mxu0
      %v1557 = vadd.f32 0.0, %v1556
      %v1558 = vpop.f32.mrb[0].mxu0
      %v1559 = vpop.f32.mrb[0].mxu0
      %v1560 = vadd.f32 0.0, %v1559
      %v1561 = vpop.f32.mrb[0].mxu0
      %1562 = vdwg.mxu0
      %v1579 = vunpack.c.l.b16 %v1377
      %v1580 = vunpack.c.l.b16 %v1378
      %v1581 = vunpack.c.l.b16 %v1379
      %v1582 = vunpack.c.l.b16 %v1380
      %v1583 = vunpack.c.l.b16 %v1381
      %v1584 = vunpack.c.l.b16 %v1382
      %v1585 = vunpack.c.l.b16 %v1383
      %v1586 = vunpack.c.l.b16 %v1384
      %v1587 = vunpack.c.l.b16 %v1385
      %v1588 = vunpack.c.l.b16 %v1386
      %v1589 = vunpack.c.l.b16 %v1387
      %v1590 = vunpack.c.l.b16 %v1388
      %v1591 = vunpack.c.l.b16 %v1389
      %v1592 = vunpack.c.l.b16 %v1390
      %v1593 = vunpack.c.l.b16 %v1391
      %v1594 = vunpack.c.l.b16 %v1392
      %v1595 = vpack.c.b16 %v1580, %v1579
      %v1596 = vpack.c.b16 %v1582, %v1581
      %v1597 = vpack.c.b16 %v1584, %v1583
      %v1598 = vpack.c.b16 %v1586, %v1585
      %v1599 = vpack.c.b16 %v1588, %v1587
      %v1600 = vpack.c.b16 %v1590, %v1589
      %v1601 = vpack.c.b16 %v1592, %v1591
      %v1602 = vpack.c.b16 %v1594, %v1593
      %1611 = vmatprep.subr.bf16.mxu0 0
      %1612 = vmatpush1.bf16.msra.mxu0 %v1595
      %1613 = vmatprep.subr.bf16.mxu0 0
      %1614 = vmatpush1.bf16.msra.mxu0 %v1596
      %1615 = vmatprep.subr.bf16.mxu0 0
      %1616 = vmatpush1.bf16.msra.mxu0 %v1597
      %1617 = vmatprep.subr.bf16.mxu0 0
      %1618 = vmatpush1.bf16.msra.mxu0 %v1598
      %1619 = vmatprep.subr.bf16.mxu0 0
      %1620 = vmatpush1.bf16.msra.mxu0 %v1599
      %1621 = vmatprep.subr.bf16.mxu0 0
      %1622 = vmatpush1.bf16.msra.mxu0 %v1600
      %1623 = vmatprep.subr.bf16.mxu0 0
      %1624 = vmatpush1.bf16.msra.mxu0 %v1601
      %1625 = vmatprep.subr.bf16.mxu0 0
      %1626 = vmatpush1.bf16.msra.mxu0 %v1602
      %1627 = vmatprep.subr.bf16.mxu0 0
      %1628 = vmatpush1.bf16.msra.mxu0 0
      %1629 = vmatprep.subr.bf16.mxu0 0
      %1630 = vmatpush1.bf16.msra.mxu0 0
      %1631 = vmatprep.subr.bf16.mxu0 0
      %1632 = vmatpush1.bf16.msra.mxu0 0
      %1633 = vmatprep.subr.bf16.mxu0 0
      %1634 = vmatpush1.bf16.msra.mxu0 0
      %1635 = vmatprep.subr.bf16.mxu0 0
      %1636 = vmatpush1.bf16.msra.mxu0 0
      %1637 = vmatprep.subr.bf16.mxu0 0
      %1638 = vmatpush1.bf16.msra.mxu0 0
      %1639 = vmatprep.subr.bf16.mxu0 0
      %1640 = vmatpush1.bf16.msra.mxu0 0
      %1641 = vmatprep.subr.bf16.mxu0 0
      %1642 = vmatpush1.bf16.msra.mxu0 0
      %1643 = vmatprep.mubr.bf16.mxu0 0
      %1644 = vmatmul.mubr.bf16.gmra.mrb[0].mxu0 %v245
      %v1645 = vpop.f32.mrb[0].mxu0
      %v1646 = vadd.f32 %v1501, %v1645
      %v1647 = vpop.f32.mrb[0].mxu0
      %v1648 = vpop.f32.mrb[0].mxu0
      %v1649 = vadd.f32 %v1504, %v1648
      %v1650 = vpop.f32.mrb[0].mxu0
      %1651 = vmatprep.mubr.bf16.mxu0 0
      %1652 = vmatmul.mubr.bf16.gmra.mrb[0].mxu0 %v246
      %v1653 = vpop.f32.mrb[0].mxu0
      %v1654 = vadd.f32 %v1509, %v1653
      %v1655 = vpop.f32.mrb[0].mxu0
      %v1656 = vpop.f32.mrb[0].mxu0
      %v1657 = vadd.f32 %v1512, %v1656
      %v1658 = vpop.f32.mrb[0].mxu0
      %1659 = vmatprep.mubr.bf16.mxu0 0
      %1660 = vmatmul.mubr.bf16.gmra.mrb[0].mxu0 %v247
      %v1661 = vpop.f32.mrb[0].mxu0
      %v1662 = vadd.f32 %v1517, %v1661
      %v1663 = vpop.f32.mrb[0].mxu0
      %v1664 = vpop.f32.mrb[0].mxu0
      %v1665 = vadd.f32 %v1520, %v1664
      %v1666 = vpop.f32.mrb[0].mxu0
      %1667 = vmatprep.mubr.bf16.mxu0 0
      %1668 = vmatmul.mubr.bf16.gmra.mrb[0].mxu0 %v248
      %v1669 = vpop.f32.mrb[0].mxu0
      %v1670 = vadd.f32 %v1525, %v1669
      %v1671 = vpop.f32.mrb[0].mxu0
      %v1672 = vpop.f32.mrb[0].mxu0
      %v1673 = vadd.f32 %v1528, %v1672
      %v1674 = vpop.f32.mrb[0].mxu0
      %1675 = vmatprep.mubr.bf16.mxu0 0
      %1676 = vmatmul.mubr.bf16.gmra.mrb[0].mxu0 %v249
      %v1677 = vpop.f32.mrb[0].mxu0
      %v1678 = vadd.f32 %v1533, %v1677
      %v1679 = vpop.f32.mrb[0].mxu0
      %v1680 = vpop.f32.mrb[0].mxu0
      %v1681 = vadd.f32 %v1536, %v1680
      %v1682 = vpop.f32.mrb[0].mxu0
      %1683 = vmatprep.mubr.bf16.mxu0 0
      %1684 = vmatmul.mubr.bf16.gmra.mrb[0].mxu0 %v250
      %v1685 = vpop.f32.mrb[0].mxu0
      %v1686 = vadd.f32 %v1541, %v1685
      %v1687 = vpop.f32.mrb[0].mxu0
      %v1688 = vpop.f32.mrb[0].mxu0
      %v1689 = vadd.f32 %v1544, %v1688
      %v1690 = vpop.f32.mrb[0].mxu0
      %1691 = vmatprep.mubr.bf16.mxu0 0
      %1692 = vmatmul.mubr.bf16.gmra.mrb[0].mxu0 %v251
      %v1693 = vpop.f32.mrb[0].mxu0
      %v1694 = vadd.f32 %v1549, %v1693
      %v1695 = vpop.f32.mrb[0].mxu0
      %v1696 = vpop.f32.mrb[0].mxu0
      %v1697 = vadd.f32 %v1552, %v1696
      %v1698 = vpop.f32.mrb[0].mxu0
      %1699 = vmatprep.mubr.bf16.mxu0 0
      %1700 = vmatmul.mubr.bf16.gmra.mrb[0].mxu0 %v252
      %v1701 = vpop.f32.mrb[0].mxu0
      %v1702 = vadd.f32 %v1557, %v1701
      %v1703 = vpop.f32.mrb[0].mxu0
      %v1704 = vpop.f32.mrb[0].mxu0
      %v1705 = vadd.f32 %v1560, %v1704
      %v1706 = vpop.f32.mrb[0].mxu0
      %1707 = vdwg.mxu0
      %v1708 = vmax.f32 %v1646, -10.0
      %v1709 = vmax.f32 %v1649, -10.0
      %v1710 = vmax.f32 %v1654, -10.0
      %v1711 = vmax.f32 %v1657, -10.0
      %v1712 = vmax.f32 %v1662, -10.0
      %v1713 = vmax.f32 %v1665, -10.0
      %v1714 = vmax.f32 %v1670, -10.0
      %v1715 = vmax.f32 %v1673, -10.0
      %v1716 = vmax.f32 %v1678, -10.0
      %v1717 = vmax.f32 %v1681, -10.0
      %v1718 = vmax.f32 %v1686, -10.0
      %v1719 = vmax.f32 %v1689, -10.0
      %v1720 = vmax.f32 %v1694, -10.0
      %v1721 = vmax.f32 %v1697, -10.0
      %v1722 = vmax.f32 %v1702, -10.0
      %v1723 = vmax.f32 %v1705, -10.0
      %v1724 = vmin.f32 %v1708, 10.0
      %v1725 = vmin.f32 %v1709, 10.0
      %v1726 = vmin.f32 %v1710, 10.0
      %v1727 = vmin.f32 %v1711, 10.0
      %v1728 = vmin.f32 %v1712, 10.0
      %v1729 = vmin.f32 %v1713, 10.0
      %v1730 = vmin.f32 %v1714, 10.0
      %v1731 = vmin.f32 %v1715, 10.0
      %v1732 = vmin.f32 %v1716, 10.0
      %v1733 = vmin.f32 %v1717, 10.0
      %v1734 = vmin.f32 %v1718, 10.0
      %v1735 = vmin.f32 %v1719, 10.0
      %v1736 = vmin.f32 %v1720, 10.0
      %v1737 = vmin.f32 %v1721, 10.0
      %v1738 = vmin.f32 %v1722, 10.0
      %v1739 = vmin.f32 %v1723, 10.0
      %v1740 = vmul.f32 %v1724, 0.5
      %v1741 = vmul.f32 %v1725, 0.5
      %v1742 = vmul.f32 %v1726, 0.5
      %v1743 = vmul.f32 %v1727, 0.5
      %v1744 = vmul.f32 %v1728, 0.5
      %v1745 = vmul.f32 %v1729, 0.5
      %v1746 = vmul.f32 %v1730, 0.5
      %v1747 = vmul.f32 %v1731, 0.5
      %v1748 = vmul.f32 %v1732, 0.5
      %v1749 = vmul.f32 %v1733, 0.5
      %v1750 = vmul.f32 %v1734, 0.5
      %v1751 = vmul.f32 %v1735, 0.5
      %v1752 = vmul.f32 %v1736, 0.5
      %v1753 = vmul.f32 %v1737, 0.5
      %v1754 = vmul.f32 %v1738, 0.5
      %v1755 = vmul.f32 %v1739, 0.5
      %v1756 = vtanh.pop %v1740
      %v1757 = vtanh.pop %v1741
      %v1758 = vtanh.pop %v1742
      %v1759 = vtanh.pop %v1743
      %v1760 = vtanh.pop %v1744
      %v1761 = vtanh.pop %v1745
      %v1762 = vtanh.pop %v1746
      %v1763 = vtanh.pop %v1747
      %v1764 = vtanh.pop %v1748
      %v1765 = vtanh.pop %v1749
      %v1766 = vtanh.pop %v1750
      %v1767 = vtanh.pop %v1751
      %v1768 = vtanh.pop %v1752
      %v1769 = vtanh.pop %v1753
      %v1770 = vtanh.pop %v1754
      %v1771 = vtanh.pop %v1755
      %v1772 = vand.u32 2147483647, %v1756
      %v1773 = vand.u32 2147483647, %v1757
      %v1774 = vand.u32 2147483647, %v1758
      %v1775 = vand.u32 2147483647, %v1759
      %v1776 = vand.u32 2147483647, %v1760
      %v1777 = vand.u32 2147483647, %v1761
      %v1778 = vand.u32 2147483647, %v1762
      %v1779 = vand.u32 2147483647, %v1763
      %v1780 = vand.u32 2147483647, %v1764
      %v1781 = vand.u32 2147483647, %v1765
      %v1782 = vand.u32 2147483647, %v1766
      %v1783 = vand.u32 2147483647, %v1767
      %v1784 = vand.u32 2147483647, %v1768
      %v1785 = vand.u32 2147483647, %v1769
      %v1786 = vand.u32 2147483647, %v1770
      %v1787 = vand.u32 2147483647, %v1771
      %vm1788 = vcmp.gt.f32.partialorder %v1772, 0.0
      %vm1789 = vcmp.gt.f32.partialorder %v1773, 0.0
      %vm1790 = vcmp.gt.f32.partialorder %v1774, 0.0
      %vm1791 = vcmp.gt.f32.partialorder %v1775, 0.0
      %vm1792 = vcmp.gt.f32.partialorder %v1776, 0.0
      %vm1793 = vcmp.gt.f32.partialorder %v1777, 0.0
      %vm1794 = vcmp.gt.f32.partialorder %v1778, 0.0
      %vm1795 = vcmp.gt.f32.partialorder %v1779, 0.0
      %vm1796 = vcmp.gt.f32.partialorder %v1780, 0.0
      %vm1797 = vcmp.gt.f32.partialorder %v1781, 0.0
      %vm1798 = vcmp.gt.f32.partialorder %v1782, 0.0
      %vm1799 = vcmp.gt.f32.partialorder %v1783, 0.0
      %vm1800 = vcmp.gt.f32.partialorder %v1784, 0.0
      %vm1801 = vcmp.gt.f32.partialorder %v1785, 0.0
      %vm1802 = vcmp.gt.f32.partialorder %v1786, 0.0
      %vm1803 = vcmp.gt.f32.partialorder %v1787, 0.0
      %v1804 = vsel %vm1788, 1, 0
      %v1805 = vsel %vm1789, 1, 0
      %v1806 = vsel %vm1790, 1, 0
      %v1807 = vsel %vm1791, 1, 0
      %v1808 = vsel %vm1792, 1, 0
      %v1809 = vsel %vm1793, 1, 0
      %v1810 = vsel %vm1794, 1, 0
      %v1811 = vsel %vm1795, 1, 0
      %v1812 = vsel %vm1796, 1, 0
      %v1813 = vsel %vm1797, 1, 0
      %v1814 = vsel %vm1798, 1, 0
      %v1815 = vsel %vm1799, 1, 0
      %v1816 = vsel %vm1800, 1, 0
      %v1817 = vsel %vm1801, 1, 0
      %v1818 = vsel %vm1802, 1, 0
      %v1819 = vsel %vm1803, 1, 0
      %v1820 = vcvt.s32.f32 %v1804
      %v1821 = vcvt.s32.f32 %v1805
      %v1822 = vcvt.s32.f32 %v1806
      %v1823 = vcvt.s32.f32 %v1807
      %v1824 = vcvt.s32.f32 %v1808
      %v1825 = vcvt.s32.f32 %v1809
      %v1826 = vcvt.s32.f32 %v1810
      %v1827 = vcvt.s32.f32 %v1811
      %v1828 = vcvt.s32.f32 %v1812
      %v1829 = vcvt.s32.f32 %v1813
      %v1830 = vcvt.s32.f32 %v1814
      %v1831 = vcvt.s32.f32 %v1815
      %v1832 = vcvt.s32.f32 %v1816
      %v1833 = vcvt.s32.f32 %v1817
      %v1834 = vcvt.s32.f32 %v1818
      %v1835 = vcvt.s32.f32 %v1819
      %v1836 = vsub.f32 1.0, %v1820
      %v1837 = vsub.f32 1.0, %v1821
      %v1838 = vsub.f32 1.0, %v1822
      %v1839 = vsub.f32 1.0, %v1823
      %v1840 = vsub.f32 1.0, %v1824
      %v1841 = vsub.f32 1.0, %v1825
      %v1842 = vsub.f32 1.0, %v1826
      %v1843 = vsub.f32 1.0, %v1827
      %v1844 = vsub.f32 1.0, %v1828
      %v1845 = vsub.f32 1.0, %v1829
      %v1846 = vsub.f32 1.0, %v1830
      %v1847 = vsub.f32 1.0, %v1831
      %v1848 = vsub.f32 1.0, %v1832
      %v1849 = vsub.f32 1.0, %v1833
      %v1850 = vsub.f32 1.0, %v1834
      %v1851 = vsub.f32 1.0, %v1835
      %v1852 = vadd.f32 %v1756, %v1836
      %v1853 = vadd.f32 %v1757, %v1837
      %v1854 = vadd.f32 %v1758, %v1838
      %v1855 = vadd.f32 %v1759, %v1839
      %v1856 = vadd.f32 %v1760, %v1840
      %v1857 = vadd.f32 %v1761, %v1841
      %v1858 = vadd.f32 %v1762, %v1842
      %v1859 = vadd.f32 %v1763, %v1843
      %v1860 = vadd.f32 %v1764, %v1844
      %v1861 = vadd.f32 %v1765, %v1845
      %v1862 = vadd.f32 %v1766, %v1846
      %v1863 = vadd.f32 %v1767, %v1847
      %v1864 = vadd.f32 %v1768, %v1848
      %v1865 = vadd.f32 %v1769, %v1849
      %v1866 = vadd.f32 %v1770, %v1850
      %v1867 = vadd.f32 %v1771, %v1851
      %v1868 = vand.u32 2147483647, %v1852
      %v1869 = vand.u32 2147483647, %v1853
      %v1870 = vand.u32 2147483647, %v1854
      %v1871 = vand.u32 2147483647, %v1855
      %v1872 = vand.u32 2147483647, %v1856
      %v1873 = vand.u32 2147483647, %v1857
      %v1874 = vand.u32 2147483647, %v1858
      %v1875 = vand.u32 2147483647, %v1859
      %v1876 = vand.u32 2147483647, %v1860
      %v1877 = vand.u32 2147483647, %v1861
      %v1878 = vand.u32 2147483647, %v1862
      %v1879 = vand.u32 2147483647, %v1863
      %v1880 = vand.u32 2147483647, %v1864
      %v1881 = vand.u32 2147483647, %v1865
      %v1882 = vand.u32 2147483647, %v1866
      %v1883 = vand.u32 2147483647, %v1867
      %v1884 = vlog2.pop %v1868
      %v1885 = vmul.f32 %v1884, 0.6931472
      %v1886 = vlog2.pop %v1869
      %v1887 = vmul.f32 %v1886, 0.6931472
      %v1888 = vlog2.pop %v1870
      %v1889 = vmul.f32 %v1888, 0.6931472
      %v1890 = vlog2.pop %v1871
      %v1891 = vmul.f32 %v1890, 0.6931472
      %v1892 = vlog2.pop %v1872
      %v1893 = vmul.f32 %v1892, 0.6931472
      %v1894 = vlog2.pop %v1873
      %v1895 = vmul.f32 %v1894, 0.6931472
      %v1896 = vlog2.pop %v1874
      %v1897 = vmul.f32 %v1896, 0.6931472
      %v1898 = vlog2.pop %v1875
      %v1899 = vmul.f32 %v1898, 0.6931472
      %v1900 = vlog2.pop %v1876
      %v1901 = vmul.f32 %v1900, 0.6931472
      %v1902 = vlog2.pop %v1877
      %v1903 = vmul.f32 %v1902, 0.6931472
      %v1904 = vlog2.pop %v1878
      %v1905 = vmul.f32 %v1904, 0.6931472
      %v1906 = vlog2.pop %v1879
      %v1907 = vmul.f32 %v1906, 0.6931472
      %v1908 = vlog2.pop %v1880
      %v1909 = vmul.f32 %v1908, 0.6931472
      %v1910 = vlog2.pop %v1881
      %v1911 = vmul.f32 %v1910, 0.6931472
      %v1912 = vlog2.pop %v1882
      %v1913 = vmul.f32 %v1912, 0.6931472
      %v1914 = vlog2.pop %v1883
      %v1915 = vmul.f32 %v1914, 0.6931472
      %vm1916 = vcmp.lt.f32.partialorder %v1852, 0.0
      %vm1917 = vcmp.lt.f32.partialorder %v1853, 0.0
      %vm1918 = vcmp.lt.f32.partialorder %v1854, 0.0
      %vm1919 = vcmp.lt.f32.partialorder %v1855, 0.0
      %vm1920 = vcmp.lt.f32.partialorder %v1856, 0.0
      %vm1921 = vcmp.lt.f32.partialorder %v1857, 0.0
      %vm1922 = vcmp.lt.f32.partialorder %v1858, 0.0
      %vm1923 = vcmp.lt.f32.partialorder %v1859, 0.0
      %vm1924 = vcmp.lt.f32.partialorder %v1860, 0.0
      %vm1925 = vcmp.lt.f32.partialorder %v1861, 0.0
      %vm1926 = vcmp.lt.f32.partialorder %v1862, 0.0
      %vm1927 = vcmp.lt.f32.partialorder %v1863, 0.0
      %vm1928 = vcmp.lt.f32.partialorder %v1864, 0.0
      %vm1929 = vcmp.lt.f32.partialorder %v1865, 0.0
      %vm1930 = vcmp.lt.f32.partialorder %v1866, 0.0
      %vm1931 = vcmp.lt.f32.partialorder %v1867, 0.0
      %v1932 = vsel %vm1916, 1, 0
      %v1933 = vsel %vm1917, 1, 0
      %v1934 = vsel %vm1918, 1, 0
      %v1935 = vsel %vm1919, 1, 0
      %v1936 = vsel %vm1920, 1, 0
      %v1937 = vsel %vm1921, 1, 0
      %v1938 = vsel %vm1922, 1, 0
      %v1939 = vsel %vm1923, 1, 0
      %v1940 = vsel %vm1924, 1, 0
      %v1941 = vsel %vm1925, 1, 0
      %v1942 = vsel %vm1926, 1, 0
      %v1943 = vsel %vm1927, 1, 0
      %v1944 = vsel %vm1928, 1, 0
      %v1945 = vsel %vm1929, 1, 0
      %v1946 = vsel %vm1930, 1, 0
      %v1947 = vsel %vm1931, 1, 0
      %v1948 = vcvt.s32.f32 %v1932
      %v1949 = vcvt.s32.f32 %v1933
      %v1950 = vcvt.s32.f32 %v1934
      %v1951 = vcvt.s32.f32 %v1935
      %v1952 = vcvt.s32.f32 %v1936
      %v1953 = vcvt.s32.f32 %v1937
      %v1954 = vcvt.s32.f32 %v1938
      %v1955 = vcvt.s32.f32 %v1939
      %v1956 = vcvt.s32.f32 %v1940
      %v1957 = vcvt.s32.f32 %v1941
      %v1958 = vcvt.s32.f32 %v1942
      %v1959 = vcvt.s32.f32 %v1943
      %v1960 = vcvt.s32.f32 %v1944
      %v1961 = vcvt.s32.f32 %v1945
      %v1962 = vcvt.s32.f32 %v1946
      %v1963 = vcvt.s32.f32 %v1947
      %v1964 = vpack.c.bf16 %v1887, %v1885
      %v1965 = vpack.c.bf16 %v1891, %v1889
      %v1966 = vpack.c.bf16 %v1895, %v1893
      %v1967 = vpack.c.bf16 %v1899, %v1897
      %v1968 = vpack.c.bf16 %v1903, %v1901
      %v1969 = vpack.c.bf16 %v1907, %v1905
      %v1970 = vpack.c.bf16 %v1911, %v1909
      %v1971 = vpack.c.bf16 %v1915, %v1913
      %v1972 = vpack.c.bf16 %v1949, %v1948
      %v1973 = vpack.c.bf16 %v1951, %v1950
      %v1974 = vpack.c.bf16 %v1953, %v1952
      %v1975 = vpack.c.bf16 %v1955, %v1954
      %v1976 = vpack.c.bf16 %v1957, %v1956
      %v1977 = vpack.c.bf16 %v1959, %v1958
      %v1978 = vpack.c.bf16 %v1961, %v1960
      %v1979 = vpack.c.bf16 %v1963, %v1962
      %1980 = vmatprep.subr.bf16.mxu0 0
      %1981 = vmatpush1.bf16.msra.mxu0 %v895
      %1982 = vmatprep.subr.bf16.mxu0 0
      %1983 = vmatpush1.bf16.msra.mxu0 %v896
      %1984 = vmatprep.subr.bf16.mxu0 0
      %1985 = vmatpush1.bf16.msra.mxu0 %v897
      %1986 = vmatprep.subr.bf16.mxu0 0
      %1987 = vmatpush1.bf16.msra.mxu0 %v898
      %1988 = vmatprep.subr.bf16.mxu0 0
      %1989 = vmatpush1.bf16.msra.mxu0 %v899
      %1990 = vmatprep.subr.bf16.mxu0 0
      %1991 = vmatpush1.bf16.msra.mxu0 %v900
      %1992 = vmatprep.subr.bf16.mxu0 0
      %1993 = vmatpush1.bf16.msra.mxu0 %v901
      %1994 = vmatprep.subr.bf16.mxu0 0
      %1995 = vmatpush1.bf16.msra.mxu0 %v902
      %1996 = vmatprep.subr.bf16.mxu0 0
      %1997 = vmatpush1.bf16.msra.mxu0 0
      %1998 = vmatprep.subr.bf16.mxu0 0
      %1999 = vmatpush1.bf16.msra.mxu0 0
      %2000 = vmatprep.subr.bf16.mxu0 0
      %2001 = vmatpush1.bf16.msra.mxu0 0
      %2002 = vmatprep.subr.bf16.mxu0 0
      %2003 = vmatpush1.bf16.msra.mxu0 0
      %2004 = vmatprep.subr.bf16.mxu0 0
      %2005 = vmatpush1.bf16.msra.mxu0 0
      %2006 = vmatprep.subr.bf16.mxu0 0
      %2007 = vmatpush1.bf16.msra.mxu0 0
      %2008 = vmatprep.subr.bf16.mxu0 0
      %2009 = vmatpush1.bf16.msra.mxu0 0
      %2010 = vmatprep.subr.bf16.mxu0 0
      %2011 = vmatpush1.bf16.msra.mxu0 0
      %2012 = vmatprep.mubr.bf16.mxu0 0
      %2013 = vmatmul.mubr.bf16.gmra.mrb[0].mxu0 %v1964
      %v2014 = vpop.f32.mrb[0].mxu0
      %v2015 = vadd.f32 0.0, %v2014
      %v2016 = vpop.f32.mrb[0].mxu0
      %v2017 = vpop.f32.mrb[0].mxu0
      %v2018 = vadd.f32 0.0, %v2017
      %v2019 = vpop.f32.mrb[0].mxu0
      %2020 = vmatprep.mubr.bf16.mxu0 0
      %2021 = vmatmul.mubr.bf16.gmra.mrb[0].mxu0 %v1965
      %v2022 = vpop.f32.mrb[0].mxu0
      %v2023 = vadd.f32 0.0, %v2022
      %v2024 = vpop.f32.mrb[0].mxu0
      %v2025 = vpop.f32.mrb[0].mxu0
      %v2026 = vadd.f32 0.0, %v2025
      %v2027 = vpop.f32.mrb[0].mxu0
      %2028 = vmatprep.mubr.bf16.mxu0 0
      %2029 = vmatmul.mubr.bf16.gmra.mrb[0].mxu0 %v1966
      %v2030 = vpop.f32.mrb[0].mxu0
      %v2031 = vadd.f32 0.0, %v2030
      %v2032 = vpop.f32.mrb[0].mxu0
      %v2033 = vpop.f32.mrb[0].mxu0
      %v2034 = vadd.f32 0.0, %v2033
      %v2035 = vpop.f32.mrb[0].mxu0
      %2036 = vmatprep.mubr.bf16.mxu0 0
      %2037 = vmatmul.mubr.bf16.gmra.mrb[0].mxu0 %v1967
      %v2038 = vpop.f32.mrb[0].mxu0
      %v2039 = vadd.f32 0.0, %v2038
      %v2040 = vpop.f32.mrb[0].mxu0
      %v2041 = vpop.f32.mrb[0].mxu0
      %v2042 = vadd.f32 0.0, %v2041
      %v2043 = vpop.f32.mrb[0].mxu0
      %2044 = vmatprep.mubr.bf16.mxu0 0
      %2045 = vmatmul.mubr.bf16.gmra.mrb[0].mxu0 %v1968
      %v2046 = vpop.f32.mrb[0].mxu0
      %v2047 = vadd.f32 0.0, %v2046
      %v2048 = vpop.f32.mrb[0].mxu0
      %v2049 = vpop.f32.mrb[0].mxu0
      %v2050 = vadd.f32 0.0, %v2049
      %v2051 = vpop.f32.mrb[0].mxu0
      %2052 = vmatprep.mubr.bf16.mxu0 0
      %2053 = vmatmul.mubr.bf16.gmra.mrb[0].mxu0 %v1969
      %v2054 = vpop.f32.mrb[0].mxu0
      %v2055 = vadd.f32 0.0, %v2054
      %v2056 = vpop.f32.mrb[0].mxu0
      %v2057 = vpop.f32.mrb[0].mxu0
      %v2058 = vadd.f32 0.0, %v2057
      %v2059 = vpop.f32.mrb[0].mxu0
      %2060 = vmatprep.mubr.bf16.mxu0 0
      %2061 = vmatmul.mubr.bf16.gmra.mrb[0].mxu0 %v1970
      %v2062 = vpop.f32.mrb[0].mxu0
      %v2063 = vadd.f32 0.0, %v2062
      %v2064 = vpop.f32.mrb[0].mxu0
      %v2065 = vpop.f32.mrb[0].mxu0
      %v2066 = vadd.f32 0.0, %v2065
      %v2067 = vpop.f32.mrb[0].mxu0
      %2068 = vmatprep.mubr.bf16.mxu0 0
      %2069 = vmatmul.mubr.bf16.gmra.mrb[0].mxu0 %v1971
      %v2070 = vpop.f32.mrb[0].mxu0
      %v2071 = vadd.f32 0.0, %v2070
      %v2072 = vpop.f32.mrb[0].mxu0
      %v2073 = vpop.f32.mrb[0].mxu0
      %v2074 = vadd.f32 0.0, %v2073
      %v2075 = vpop.f32.mrb[0].mxu0
      %2076 = vmatprep.mubr.bf16.mxu0 0
      %2077 = vmatmul.mubr.bf16.gmra.mrb[0].mxu0 %v1972
      %v2078 = vpop.f32.mrb[0].mxu0
      %v2079 = vadd.f32 0.0, %v2078
      %v2080 = vpop.f32.mrb[0].mxu0
      %v2081 = vpop.f32.mrb[0].mxu0
      %v2082 = vadd.f32 0.0, %v2081
      %v2083 = vpop.f32.mrb[0].mxu0
      %2084 = vmatprep.mubr.bf16.mxu0 0
      %2085 = vmatmul.mubr.bf16.gmra.mrb[0].mxu0 %v1973
      %v2086 = vpop.f32.mrb[0].mxu0
      %v2087 = vadd.f32 0.0, %v2086
      %v2088 = vpop.f32.mrb[0].mxu0
      %v2089 = vpop.f32.mrb[0].mxu0
      %v2090 = vadd.f32 0.0, %v2089
      %v2091 = vpop.f32.mrb[0].mxu0
      %2092 = vmatprep.mubr.bf16.mxu0 0
      %2093 = vmatmul.mubr.bf16.gmra.mrb[0].mxu0 %v1974
      %v2094 = vpop.f32.mrb[0].mxu0
      %v2095 = vadd.f32 0.0, %v2094
      %v2096 = vpop.f32.mrb[0].mxu0
      %v2097 = vpop.f32.mrb[0].mxu0
      %v2098 = vadd.f32 0.0, %v2097
      %v2099 = vpop.f32.mrb[0].mxu0
      %2100 = vmatprep.mubr.bf16.mxu0 0
      %2101 = vmatmul.mubr.bf16.gmra.mrb[0].mxu0 %v1975
      %v2102 = vpop.f32.mrb[0].mxu0
      %v2103 = vadd.f32 0.0, %v2102
      %v2104 = vpop.f32.mrb[0].mxu0
      %v2105 = vpop.f32.mrb[0].mxu0
      %v2106 = vadd.f32 0.0, %v2105
      %v2107 = vpop.f32.mrb[0].mxu0
      %2108 = vmatprep.mubr.bf16.mxu0 0
      %2109 = vmatmul.mubr.bf16.gmra.mrb[0].mxu0 %v1976
      %v2110 = vpop.f32.mrb[0].mxu0
      %v2111 = vadd.f32 0.0, %v2110
      %v2112 = vpop.f32.mrb[0].mxu0
      %v2113 = vpop.f32.mrb[0].mxu0
      %v2114 = vadd.f32 0.0, %v2113
      %v2115 = vpop.f32.mrb[0].mxu0
      %2116 = vmatprep.mubr.bf16.mxu0 0
      %2117 = vmatmul.mubr.bf16.gmra.mrb[0].mxu0 %v1977
      %v2118 = vpop.f32.mrb[0].mxu0
      %v2119 = vadd.f32 0.0, %v2118
      %v2120 = vpop.f32.mrb[0].mxu0
      %v2121 = vpop.f32.mrb[0].mxu0
      %v2122 = vadd.f32 0.0, %v2121
      %v2123 = vpop.f32.mrb[0].mxu0
      %2124 = vmatprep.mubr.bf16.mxu0 0
      %2125 = vmatmul.mubr.bf16.gmra.mrb[0].mxu0 %v1978
      %v2126 = vpop.f32.mrb[0].mxu0
      %v2127 = vadd.f32 0.0, %v2126
      %v2128 = vpop.f32.mrb[0].mxu0
      %v2129 = vpop.f32.mrb[0].mxu0
      %v2130 = vadd.f32 0.0, %v2129
      %v2131 = vpop.f32.mrb[0].mxu0
      %2132 = vmatprep.mubr.bf16.mxu0 0
      %2133 = vmatmul.mubr.bf16.gmra.mrb[0].mxu0 %v1979
      %v2134 = vpop.f32.mrb[0].mxu0
      %v2135 = vadd.f32 0.0, %v2134
      %v2136 = vpop.f32.mrb[0].mxu0
      %v2137 = vpop.f32.mrb[0].mxu0
      %v2138 = vadd.f32 0.0, %v2137
      %v2139 = vpop.f32.mrb[0].mxu0
      %2140 = vdwg.mxu0
      %v2141 = vmul.f32 %v2079, 0.5
      %v2142 = vmul.f32 %v2082, 0.5
      %v2143 = vmul.f32 %v2087, 0.5
      %v2144 = vmul.f32 %v2090, 0.5
      %v2145 = vmul.f32 %v2095, 0.5
      %v2146 = vmul.f32 %v2098, 0.5
      %v2147 = vmul.f32 %v2103, 0.5
      %v2148 = vmul.f32 %v2106, 0.5
      %v2149 = vmul.f32 %v2111, 0.5
      %v2150 = vmul.f32 %v2114, 0.5
      %v2151 = vmul.f32 %v2119, 0.5
      %v2152 = vmul.f32 %v2122, 0.5
      %v2153 = vmul.f32 %v2127, 0.5
      %v2154 = vmul.f32 %v2130, 0.5
      %v2155 = vmul.f32 %v2135, 0.5
      %v2156 = vmul.f32 %v2138, 0.5
      %v2157 = vfloor.f32 %v2141
      %v2158 = vfloor.f32 %v2142
      %v2159 = vfloor.f32 %v2143
      %v2160 = vfloor.f32 %v2144
      %v2161 = vfloor.f32 %v2145
      %v2162 = vfloor.f32 %v2146
      %v2163 = vfloor.f32 %v2147
      %v2164 = vfloor.f32 %v2148
      %v2165 = vfloor.f32 %v2149
      %v2166 = vfloor.f32 %v2150
      %v2167 = vfloor.f32 %v2151
      %v2168 = vfloor.f32 %v2152
      %v2169 = vfloor.f32 %v2153
      %v2170 = vfloor.f32 %v2154
      %v2171 = vfloor.f32 %v2155
      %v2172 = vfloor.f32 %v2156
      %v2173 = vmul.f32 %v2157, 2.0
      %v2174 = vmul.f32 %v2158, 2.0
      %v2175 = vmul.f32 %v2159, 2.0
      %v2176 = vmul.f32 %v2160, 2.0
      %v2177 = vmul.f32 %v2161, 2.0
      %v2178 = vmul.f32 %v2162, 2.0
      %v2179 = vmul.f32 %v2163, 2.0
      %v2180 = vmul.f32 %v2164, 2.0
      %v2181 = vmul.f32 %v2165, 2.0
      %v2182 = vmul.f32 %v2166, 2.0
      %v2183 = vmul.f32 %v2167, 2.0
      %v2184 = vmul.f32 %v2168, 2.0
      %v2185 = vmul.f32 %v2169, 2.0
      %v2186 = vmul.f32 %v2170, 2.0
      %v2187 = vmul.f32 %v2171, 2.0
      %v2188 = vmul.f32 %v2172, 2.0
      %v2189 = vsub.f32 %v2079, %v2173
      %v2190 = vsub.f32 %v2082, %v2174
      %v2191 = vsub.f32 %v2087, %v2175
      %v2192 = vsub.f32 %v2090, %v2176
      %v2193 = vsub.f32 %v2095, %v2177
      %v2194 = vsub.f32 %v2098, %v2178
      %v2195 = vsub.f32 %v2103, %v2179
      %v2196 = vsub.f32 %v2106, %v2180
      %v2197 = vsub.f32 %v2111, %v2181
      %v2198 = vsub.f32 %v2114, %v2182
      %v2199 = vsub.f32 %v2119, %v2183
      %v2200 = vsub.f32 %v2122, %v2184
      %v2201 = vsub.f32 %v2127, %v2185
      %v2202 = vsub.f32 %v2130, %v2186
      %v2203 = vsub.f32 %v2135, %v2187
      %v2204 = vsub.f32 %v2138, %v2188
      %v2205 = vmul.f32 %v2189, 2.0
      %v2206 = vmul.f32 %v2190, 2.0
      %v2207 = vmul.f32 %v2191, 2.0
      %v2208 = vmul.f32 %v2192, 2.0
      %v2209 = vmul.f32 %v2193, 2.0
      %v2210 = vmul.f32 %v2194, 2.0
      %v2211 = vmul.f32 %v2195, 2.0
      %v2212 = vmul.f32 %v2196, 2.0
      %v2213 = vmul.f32 %v2197, 2.0
      %v2214 = vmul.f32 %v2198, 2.0
      %v2215 = vmul.f32 %v2199, 2.0
      %v2216 = vmul.f32 %v2200, 2.0
      %v2217 = vmul.f32 %v2201, 2.0
      %v2218 = vmul.f32 %v2202, 2.0
      %v2219 = vmul.f32 %v2203, 2.0
      %v2220 = vmul.f32 %v2204, 2.0
      %v2221 = vsub.f32 1.0, %v2205
      %v2222 = vsub.f32 1.0, %v2206
      %v2223 = vsub.f32 1.0, %v2207
      %v2224 = vsub.f32 1.0, %v2208
      %v2225 = vsub.f32 1.0, %v2209
      %v2226 = vsub.f32 1.0, %v2210
      %v2227 = vsub.f32 1.0, %v2211
      %v2228 = vsub.f32 1.0, %v2212
      %v2229 = vsub.f32 1.0, %v2213
      %v2230 = vsub.f32 1.0, %v2214
      %v2231 = vsub.f32 1.0, %v2215
      %v2232 = vsub.f32 1.0, %v2216
      %v2233 = vsub.f32 1.0, %v2217
      %v2234 = vsub.f32 1.0, %v2218
      %v2235 = vsub.f32 1.0, %v2219
      %v2236 = vsub.f32 1.0, %v2220
      %v2237 = vmul.f32 %v2015, 1.442695
      %v2238 = vpow.pop %v2237
      %v2239 = vmul.f32 %v2018, 1.442695
      %v2240 = vpow.pop %v2239
      %v2241 = vmul.f32 %v2023, 1.442695
      %v2242 = vpow.pop %v2241
      %v2243 = vmul.f32 %v2026, 1.442695
      %v2244 = vpow.pop %v2243
      %v2245 = vmul.f32 %v2031, 1.442695
      %v2246 = vpow.pop %v2245
      %v2247 = vmul.f32 %v2034, 1.442695
      %v2248 = vpow.pop %v2247
      %v2249 = vmul.f32 %v2039, 1.442695
      %v2250 = vpow.pop %v2249
      %v2251 = vmul.f32 %v2042, 1.442695
      %v2252 = vpow.pop %v2251
      %v2253 = vmul.f32 %v2047, 1.442695
      %v2254 = vpow.pop %v2253
      %v2255 = vmul.f32 %v2050, 1.442695
      %v2256 = vpow.pop %v2255
      %v2257 = vmul.f32 %v2055, 1.442695
      %v2258 = vpow.pop %v2257
      %v2259 = vmul.f32 %v2058, 1.442695
      %v2260 = vpow.pop %v2259
      %v2261 = vmul.f32 %v2063, 1.442695
      %v2262 = vpow.pop %v2261
      %v2263 = vmul.f32 %v2066, 1.442695
      %v2264 = vpow.pop %v2263
      %v2265 = vmul.f32 %v2071, 1.442695
      %v2266 = vpow.pop %v2265
      %v2267 = vmul.f32 %v2074, 1.442695
      %v2268 = vpow.pop %v2267
      %v2269 = vmul.f32 %v2221, %v2238
      %v2270 = vmul.f32 %v2222, %v2240
      %v2271 = vmul.f32 %v2223, %v2242
      %v2272 = vmul.f32 %v2224, %v2244
      %v2273 = vmul.f32 %v2225, %v2246
      %v2274 = vmul.f32 %v2226, %v2248
      %v2275 = vmul.f32 %v2227, %v2250
      %v2276 = vmul.f32 %v2228, %v2252
      %v2277 = vmul.f32 %v2229, %v2254
      %v2278 = vmul.f32 %v2230, %v2256
      %v2279 = vmul.f32 %v2231, %v2258
      %v2280 = vmul.f32 %v2232, %v2260
      %v2281 = vmul.f32 %v2233, %v2262
      %v2282 = vmul.f32 %v2234, %v2264
      %v2283 = vmul.f32 %v2235, %v2266
      %v2284 = vmul.f32 %v2236, %v2268
      %v2285 = vmax.f32 %v2269, -0.999999
      %v2286 = vmax.f32 %v2270, -0.999999
      %v2287 = vmax.f32 %v2271, -0.999999
      %v2288 = vmax.f32 %v2272, -0.999999
      %v2289 = vmax.f32 %v2273, -0.999999
      %v2290 = vmax.f32 %v2274, -0.999999
      %v2291 = vmax.f32 %v2275, -0.999999
      %v2292 = vmax.f32 %v2276, -0.999999
      %v2293 = vmax.f32 %v2277, -0.999999
      %v2294 = vmax.f32 %v2278, -0.999999
      %v2295 = vmax.f32 %v2279, -0.999999
      %v2296 = vmax.f32 %v2280, -0.999999
      %v2297 = vmax.f32 %v2281, -0.999999
      %v2298 = vmax.f32 %v2282, -0.999999
      %v2299 = vmax.f32 %v2283, -0.999999
      %v2300 = vmax.f32 %v2284, -0.999999
      %v2301 = vmin.f32 %v2285, 0.999999
      %v2302 = vmin.f32 %v2286, 0.999999
      %v2303 = vmin.f32 %v2287, 0.999999
      %v2304 = vmin.f32 %v2288, 0.999999
      %v2305 = vmin.f32 %v2289, 0.999999
      %v2306 = vmin.f32 %v2290, 0.999999
      %v2307 = vmin.f32 %v2291, 0.999999
      %v2308 = vmin.f32 %v2292, 0.999999
      %v2309 = vmin.f32 %v2293, 0.999999
      %v2310 = vmin.f32 %v2294, 0.999999
      %v2311 = vmin.f32 %v2295, 0.999999
      %v2312 = vmin.f32 %v2296, 0.999999
      %v2313 = vmin.f32 %v2297, 0.999999
      %v2314 = vmin.f32 %v2298, 0.999999
      %v2315 = vmin.f32 %v2299, 0.999999
      %v2316 = vmin.f32 %v2300, 0.999999
      %v2317 = vadd.f32 %v2301, 1.0
      %v2318 = vadd.f32 %v2302, 1.0
      %v2319 = vadd.f32 %v2303, 1.0
      %v2320 = vadd.f32 %v2304, 1.0
      %v2321 = vadd.f32 %v2305, 1.0
      %v2322 = vadd.f32 %v2306, 1.0
      %v2323 = vadd.f32 %v2307, 1.0
      %v2324 = vadd.f32 %v2308, 1.0
      %v2325 = vadd.f32 %v2309, 1.0
      %v2326 = vadd.f32 %v2310, 1.0
      %v2327 = vadd.f32 %v2311, 1.0
      %v2328 = vadd.f32 %v2312, 1.0
      %v2329 = vadd.f32 %v2313, 1.0
      %v2330 = vadd.f32 %v2314, 1.0
      %v2331 = vadd.f32 %v2315, 1.0
      %v2332 = vadd.f32 %v2316, 1.0
      %v2333 = vsub.f32 1.0, %v2301
      %v2334 = vsub.f32 1.0, %v2302
      %v2335 = vsub.f32 1.0, %v2303
      %v2336 = vsub.f32 1.0, %v2304
      %v2337 = vsub.f32 1.0, %v2305
      %v2338 = vsub.f32 1.0, %v2306
      %v2339 = vsub.f32 1.0, %v2307
      %v2340 = vsub.f32 1.0, %v2308
      %v2341 = vsub.f32 1.0, %v2309
      %v2342 = vsub.f32 1.0, %v2310
      %v2343 = vsub.f32 1.0, %v2311
      %v2344 = vsub.f32 1.0, %v2312
      %v2345 = vsub.f32 1.0, %v2313
      %v2346 = vsub.f32 1.0, %v2314
      %v2347 = vsub.f32 1.0, %v2315
      %v2348 = vsub.f32 1.0, %v2316
      %v2349 = vrcp.pop %v2333
      %v2350 = vrcp.pop %v2334
      %v2351 = vrcp.pop %v2335
      %v2352 = vrcp.pop %v2336
      %v2353 = vrcp.pop %v2337
      %v2354 = vrcp.pop %v2338
      %v2355 = vrcp.pop %v2339
      %v2356 = vrcp.pop %v2340
      %v2357 = vrcp.pop %v2341
      %v2358 = vrcp.pop %v2342
      %v2359 = vrcp.pop %v2343
      %v2360 = vrcp.pop %v2344
      %v2361 = vrcp.pop %v2345
      %v2362 = vrcp.pop %v2346
      %v2363 = vrcp.pop %v2347
      %v2364 = vrcp.pop %v2348
      %v2365 = vmul.f32 %v2317, %v2349
      %v2366 = vmul.f32 %v2318, %v2350
      %v2367 = vmul.f32 %v2319, %v2351
      %v2368 = vmul.f32 %v2320, %v2352
      %v2369 = vmul.f32 %v2321, %v2353
      %v2370 = vmul.f32 %v2322, %v2354
      %v2371 = vmul.f32 %v2323, %v2355
      %v2372 = vmul.f32 %v2324, %v2356
      %v2373 = vmul.f32 %v2325, %v2357
      %v2374 = vmul.f32 %v2326, %v2358
      %v2375 = vmul.f32 %v2327, %v2359
      %v2376 = vmul.f32 %v2328, %v2360
      %v2377 = vmul.f32 %v2329, %v2361
      %v2378 = vmul.f32 %v2330, %v2362
      %v2379 = vmul.f32 %v2331, %v2363
      %v2380 = vmul.f32 %v2332, %v2364
      %v2381 = vlog2.pop %v2365
      %v2382 = vmul.f32 %v2381, 0.6931472
      %v2383 = vlog2.pop %v2366
      %v2384 = vmul.f32 %v2383, 0.6931472
      %v2385 = vlog2.pop %v2367
      %v2386 = vmul.f32 %v2385, 0.6931472
      %v2387 = vlog2.pop %v2368
      %v2388 = vmul.f32 %v2387, 0.6931472
      %v2389 = vlog2.pop %v2369
      %v2390 = vmul.f32 %v2389, 0.6931472
      %v2391 = vlog2.pop %v2370
      %v2392 = vmul.f32 %v2391, 0.6931472
      %v2393 = vlog2.pop %v2371
      %v2394 = vmul.f32 %v2393, 0.6931472
      %v2395 = vlog2.pop %v2372
      %v2396 = vmul.f32 %v2395, 0.6931472
      %v2397 = vlog2.pop %v2373
      %v2398 = vmul.f32 %v2397, 0.6931472
      %v2399 = vlog2.pop %v2374
      %v2400 = vmul.f32 %v2399, 0.6931472
      %v2401 = vlog2.pop %v2375
      %v2402 = vmul.f32 %v2401, 0.6931472
      %v2403 = vlog2.pop %v2376
      %v2404 = vmul.f32 %v2403, 0.6931472
      %v2405 = vlog2.pop %v2377
      %v2406 = vmul.f32 %v2405, 0.6931472
      %v2407 = vlog2.pop %v2378
      %v2408 = vmul.f32 %v2407, 0.6931472
      %v2409 = vlog2.pop %v2379
      %v2410 = vmul.f32 %v2409, 0.6931472
      %v2411 = vlog2.pop %v2380
      %v2412 = vmul.f32 %v2411, 0.6931472
      %s2413 = scalar_lea.vmem %s1, 128
      %v2414 = vld [vmem:[%s2413] sm:$0xf]
      %v2415 = vld [vmem:[%s2413 + $0x4] sm:$0xf]
      %v2416 = vld [vmem:[%s2413 + $0x8] sm:$0xf]
      %v2417 = vld [vmem:[%s2413 + $0xc] sm:$0xf]
      %v2418 = vld [vmem:[%s2413 + $0x10] sm:$0xf]
      %v2419 = vld [vmem:[%s2413 + $0x14] sm:$0xf]
      %v2420 = vld [vmem:[%s2413 + $0x18] sm:$0xf]
      %v2421 = vld [vmem:[%s2413 + $0x1c] sm:$0xf]
      %v2422 = vld [vmem:[%s2413 + $0x20] sm:$0xf]
      %v2423 = vld [vmem:[%s2413 + $0x24] sm:$0xf]
      %v2424 = vld [vmem:[%s2413 + $0x28] sm:$0xf]
      %v2425 = vld [vmem:[%s2413 + $0x2c] sm:$0xf]
      %v2426 = vld [vmem:[%s2413 + $0x30] sm:$0xf]
      %v2427 = vld [vmem:[%s2413 + $0x34] sm:$0xf]
      %v2428 = vld [vmem:[%s2413 + $0x38] sm:$0xf]
      %v2429 = vld [vmem:[%s2413 + $0x3c] sm:$0xf]
      %v2430 = vpack.c.bf16 %v2384, %v2382
      %v2431 = vpack.c.bf16 %v2388, %v2386
      %v2432 = vpack.c.bf16 %v2392, %v2390
      %v2433 = vpack.c.bf16 %v2396, %v2394
      %v2434 = vpack.c.bf16 %v2400, %v2398
      %v2435 = vpack.c.bf16 %v2404, %v2402
      %v2436 = vpack.c.bf16 %v2408, %v2406
      %v2437 = vpack.c.bf16 %v2412, %v2410
      %s2438 = scalar_lea.vmem %s2, 128
      %v2439 = vld [vmem:[%s2438] sm:$0xf]
      %v2440 = vld [vmem:[%s2438 + $0x4] sm:$0xf]
      %v2441 = vld [vmem:[%s2438 + $0x8] sm:$0xf]
      %v2442 = vld [vmem:[%s2438 + $0xc] sm:$0xf]
      %v2443 = vld [vmem:[%s2438 + $0x10] sm:$0xf]
      %v2444 = vld [vmem:[%s2438 + $0x14] sm:$0xf]
      %v2445 = vld [vmem:[%s2438 + $0x18] sm:$0xf]
      %v2446 = vld [vmem:[%s2438 + $0x1c] sm:$0xf]
      %v2447 = vld [vmem:[%s2438 + $0x20] sm:$0xf]
      %v2448 = vld [vmem:[%s2438 + $0x24] sm:$0xf]
      %v2449 = vld [vmem:[%s2438 + $0x28] sm:$0xf]
      %v2450 = vld [vmem:[%s2438 + $0x2c] sm:$0xf]
      %v2451 = vld [vmem:[%s2438 + $0x30] sm:$0xf]
      %v2452 = vld [vmem:[%s2438 + $0x34] sm:$0xf]
      %v2453 = vld [vmem:[%s2438 + $0x38] sm:$0xf]
      %v2454 = vld [vmem:[%s2438 + $0x3c] sm:$0xf]
      %v2471 = vunpack.c.l.b16 %v2439
      %v2472 = vunpack.c.l.b16 %v2440
      %v2473 = vunpack.c.l.b16 %v2441
      %v2474 = vunpack.c.l.b16 %v2442
      %v2475 = vunpack.c.l.b16 %v2443
      %v2476 = vunpack.c.l.b16 %v2444
      %v2477 = vunpack.c.l.b16 %v2445
      %v2478 = vunpack.c.l.b16 %v2446
      %v2479 = vunpack.c.l.b16 %v2447
      %v2480 = vunpack.c.l.b16 %v2448
      %v2481 = vunpack.c.l.b16 %v2449
      %v2482 = vunpack.c.l.b16 %v2450
      %v2483 = vunpack.c.l.b16 %v2451
      %v2484 = vunpack.c.l.b16 %v2452
      %v2485 = vunpack.c.l.b16 %v2453
      %v2486 = vunpack.c.l.b16 %v2454
      %v2487 = vpack.c.b16 %v2472, %v2471
      %v2488 = vpack.c.b16 %v2474, %v2473
      %v2489 = vpack.c.b16 %v2476, %v2475
      %v2490 = vpack.c.b16 %v2478, %v2477
      %v2491 = vpack.c.b16 %v2480, %v2479
      %v2492 = vpack.c.b16 %v2482, %v2481
      %v2493 = vpack.c.b16 %v2484, %v2483
      %v2494 = vpack.c.b16 %v2486, %v2485
      %2503 = vmatprep.subr.bf16.mxu0 0
      %2504 = vmatpush1.bf16.msra.mxu0 %v2487
      %2505 = vmatprep.subr.bf16.mxu0 0
      %2506 = vmatpush1.bf16.msra.mxu0 %v2488
      %2507 = vmatprep.subr.bf16.mxu0 0
      %2508 = vmatpush1.bf16.msra.mxu0 %v2489
      %2509 = vmatprep.subr.bf16.mxu0 0
      %2510 = vmatpush1.bf16.msra.mxu0 %v2490
      %2511 = vmatprep.subr.bf16.mxu0 0
      %2512 = vmatpush1.bf16.msra.mxu0 %v2491
      %2513 = vmatprep.subr.bf16.mxu0 0
      %2514 = vmatpush1.bf16.msra.mxu0 %v2492
      %2515 = vmatprep.subr.bf16.mxu0 0
      %2516 = vmatpush1.bf16.msra.mxu0 %v2493
      %2517 = vmatprep.subr.bf16.mxu0 0
      %2518 = vmatpush1.bf16.msra.mxu0 %v2494
      %2519 = vmatprep.subr.bf16.mxu0 0
      %2520 = vmatpush1.bf16.msra.mxu0 0
      %2521 = vmatprep.subr.bf16.mxu0 0
      %2522 = vmatpush1.bf16.msra.mxu0 0
      %2523 = vmatprep.subr.bf16.mxu0 0
      %2524 = vmatpush1.bf16.msra.mxu0 0
      %2525 = vmatprep.subr.bf16.mxu0 0
      %2526 = vmatpush1.bf16.msra.mxu0 0
      %2527 = vmatprep.subr.bf16.mxu0 0
      %2528 = vmatpush1.bf16.msra.mxu0 0
      %2529 = vmatprep.subr.bf16.mxu0 0
      %2530 = vmatpush1.bf16.msra.mxu0 0
      %2531 = vmatprep.subr.bf16.mxu0 0
      %2532 = vmatpush1.bf16.msra.mxu0 0
      %2533 = vmatprep.subr.bf16.mxu0 0
      %2534 = vmatpush1.bf16.msra.mxu0 0
      %2535 = vmatprep.mubr.bf16.mxu0 0
      %2536 = vmatmul.mubr.bf16.gmra.mrb[0].mxu0 %v2430
      %v2537 = vpop.f32.mrb[0].mxu0
      %v2538 = vadd.f32 0.0, %v2537
      %v2539 = vpop.f32.mrb[0].mxu0
      %v2540 = vpop.f32.mrb[0].mxu0
      %v2541 = vadd.f32 0.0, %v2540
      %v2542 = vpop.f32.mrb[0].mxu0
      %2543 = vmatprep.mubr.bf16.mxu0 0
      %2544 = vmatmul.mubr.bf16.gmra.mrb[0].mxu0 %v2431
      %v2545 = vpop.f32.mrb[0].mxu0
      %v2546 = vadd.f32 0.0, %v2545
      %v2547 = vpop.f32.mrb[0].mxu0
      %v2548 = vpop.f32.mrb[0].mxu0
      %v2549 = vadd.f32 0.0, %v2548
      %v2550 = vpop.f32.mrb[0].mxu0
      %2551 = vmatprep.mubr.bf16.mxu0 0
      %2552 = vmatmul.mubr.bf16.gmra.mrb[0].mxu0 %v2432
      %v2553 = vpop.f32.mrb[0].mxu0
      %v2554 = vadd.f32 0.0, %v2553
      %v2555 = vpop.f32.mrb[0].mxu0
      %v2556 = vpop.f32.mrb[0].mxu0
      %v2557 = vadd.f32 0.0, %v2556
      %v2558 = vpop.f32.mrb[0].mxu0
      %2559 = vmatprep.mubr.bf16.mxu0 0
      %2560 = vmatmul.mubr.bf16.gmra.mrb[0].mxu0 %v2433
      %v2561 = vpop.f32.mrb[0].mxu0
      %v2562 = vadd.f32 0.0, %v2561
      %v2563 = vpop.f32.mrb[0].mxu0
      %v2564 = vpop.f32.mrb[0].mxu0
      %v2565 = vadd.f32 0.0, %v2564
      %v2566 = vpop.f32.mrb[0].mxu0
      %2567 = vmatprep.mubr.bf16.mxu0 0
      %2568 = vmatmul.mubr.bf16.gmra.mrb[0].mxu0 %v2434
      %v2569 = vpop.f32.mrb[0].mxu0
      %v2570 = vadd.f32 0.0, %v2569
      %v2571 = vpop.f32.mrb[0].mxu0
      %v2572 = vpop.f32.mrb[0].mxu0
      %v2573 = vadd.f32 0.0, %v2572
      %v2574 = vpop.f32.mrb[0].mxu0
      %2575 = vmatprep.mubr.bf16.mxu0 0
      %2576 = vmatmul.mubr.bf16.gmra.mrb[0].mxu0 %v2435
      %v2577 = vpop.f32.mrb[0].mxu0
      %v2578 = vadd.f32 0.0, %v2577
      %v2579 = vpop.f32.mrb[0].mxu0
      %v2580 = vpop.f32.mrb[0].mxu0
      %v2581 = vadd.f32 0.0, %v2580
      %v2582 = vpop.f32.mrb[0].mxu0
      %2583 = vmatprep.mubr.bf16.mxu0 0
      %2584 = vmatmul.mubr.bf16.gmra.mrb[0].mxu0 %v2436
      %v2585 = vpop.f32.mrb[0].mxu0
      %v2586 = vadd.f32 0.0, %v2585
      %v2587 = vpop.f32.mrb[0].mxu0
      %v2588 = vpop.f32.mrb[0].mxu0
      %v2589 = vadd.f32 0.0, %v2588
      %v2590 = vpop.f32.mrb[0].mxu0
      %2591 = vmatprep.mubr.bf16.mxu0 0
      %2592 = vmatmul.mubr.bf16.gmra.mrb[0].mxu0 %v2437
      %v2593 = vpop.f32.mrb[0].mxu0
      %v2594 = vadd.f32 0.0, %v2593
      %v2595 = vpop.f32.mrb[0].mxu0
      %v2596 = vpop.f32.mrb[0].mxu0
      %v2597 = vadd.f32 0.0, %v2596
      %v2598 = vpop.f32.mrb[0].mxu0
      %2599 = vdwg.mxu0
      %v2616 = vunpack.c.l.b16 %v2414
      %v2617 = vunpack.c.l.b16 %v2415
      %v2618 = vunpack.c.l.b16 %v2416
      %v2619 = vunpack.c.l.b16 %v2417
      %v2620 = vunpack.c.l.b16 %v2418
      %v2621 = vunpack.c.l.b16 %v2419
      %v2622 = vunpack.c.l.b16 %v2420
      %v2623 = vunpack.c.l.b16 %v2421
      %v2624 = vunpack.c.l.b16 %v2422
      %v2625 = vunpack.c.l.b16 %v2423
      %v2626 = vunpack.c.l.b16 %v2424
      %v2627 = vunpack.c.l.b16 %v2425
      %v2628 = vunpack.c.l.b16 %v2426
      %v2629 = vunpack.c.l.b16 %v2427
      %v2630 = vunpack.c.l.b16 %v2428
      %v2631 = vunpack.c.l.b16 %v2429
      %v2632 = vpack.c.b16 %v2617, %v2616
      %v2633 = vpack.c.b16 %v2619, %v2618
      %v2634 = vpack.c.b16 %v2621, %v2620
      %v2635 = vpack.c.b16 %v2623, %v2622
      %v2636 = vpack.c.b16 %v2625, %v2624
      %v2637 = vpack.c.b16 %v2627, %v2626
      %v2638 = vpack.c.b16 %v2629, %v2628
      %v2639 = vpack.c.b16 %v2631, %v2630
      %2648 = vmatprep.subr.bf16.mxu0 0
      %2649 = vmatpush1.bf16.msra.mxu0 %v2632
      %2650 = vmatprep.subr.bf16.mxu0 0
      %2651 = vmatpush1.bf16.msra.mxu0 %v2633
      %2652 = vmatprep.subr.bf16.mxu0 0
      %2653 = vmatpush1.bf16.msra.mxu0 %v2634
      %2654 = vmatprep.subr.bf16.mxu0 0
      %2655 = vmatpush1.bf16.msra.mxu0 %v2635
      %2656 = vmatprep.subr.bf16.mxu0 0
      %2657 = vmatpush1.bf16.msra.mxu0 %v2636
      %2658 = vmatprep.subr.bf16.mxu0 0
      %2659 = vmatpush1.bf16.msra.mxu0 %v2637
      %2660 = vmatprep.subr.bf16.mxu0 0
      %2661 = vmatpush1.bf16.msra.mxu0 %v2638
      %2662 = vmatprep.subr.bf16.mxu0 0
      %2663 = vmatpush1.bf16.msra.mxu0 %v2639
      %2664 = vmatprep.subr.bf16.mxu0 0
      %2665 = vmatpush1.bf16.msra.mxu0 0
      %2666 = vmatprep.subr.bf16.mxu0 0
      %2667 = vmatpush1.bf16.msra.mxu0 0
      %2668 = vmatprep.subr.bf16.mxu0 0
      %2669 = vmatpush1.bf16.msra.mxu0 0
      %2670 = vmatprep.subr.bf16.mxu0 0
      %2671 = vmatpush1.bf16.msra.mxu0 0
      %2672 = vmatprep.subr.bf16.mxu0 0
      %2673 = vmatpush1.bf16.msra.mxu0 0
      %2674 = vmatprep.subr.bf16.mxu0 0
      %2675 = vmatpush1.bf16.msra.mxu0 0
      %2676 = vmatprep.subr.bf16.mxu0 0
      %2677 = vmatpush1.bf16.msra.mxu0 0
      %2678 = vmatprep.subr.bf16.mxu0 0
      %2679 = vmatpush1.bf16.msra.mxu0 0
      %2680 = vmatprep.mubr.bf16.mxu0 0
      %2681 = vmatmul.mubr.bf16.gmra.mrb[0].mxu0 %v245
      %v2682 = vpop.f32.mrb[0].mxu0
      %v2683 = vadd.f32 %v2538, %v2682
      %v2684 = vpop.f32.mrb[0].mxu0
      %v2685 = vpop.f32.mrb[0].mxu0
      %v2686 = vadd.f32 %v2541, %v2685
      %v2687 = vpop.f32.mrb[0].mxu0
      %2688 = vmatprep.mubr.bf16.mxu0 0
      %2689 = vmatmul.mubr.bf16.gmra.mrb[0].mxu0 %v246
      %v2690 = vpop.f32.mrb[0].mxu0
      %v2691 = vadd.f32 %v2546, %v2690
      %v2692 = vpop.f32.mrb[0].mxu0
      %v2693 = vpop.f32.mrb[0].mxu0
      %v2694 = vadd.f32 %v2549, %v2693
      %v2695 = vpop.f32.mrb[0].mxu0
      %2696 = vmatprep.mubr.bf16.mxu0 0
      %2697 = vmatmul.mubr.bf16.gmra.mrb[0].mxu0 %v247
      %v2698 = vpop.f32.mrb[0].mxu0
      %v2699 = vadd.f32 %v2554, %v2698
      %v2700 = vpop.f32.mrb[0].mxu0
      %v2701 = vpop.f32.mrb[0].mxu0
      %v2702 = vadd.f32 %v2557, %v2701
      %v2703 = vpop.f32.mrb[0].mxu0
      %2704 = vmatprep.mubr.bf16.mxu0 0
      %2705 = vmatmul.mubr.bf16.gmra.mrb[0].mxu0 %v248
      %v2706 = vpop.f32.mrb[0].mxu0
      %v2707 = vadd.f32 %v2562, %v2706
      %v2708 = vpop.f32.mrb[0].mxu0
      %v2709 = vpop.f32.mrb[0].mxu0
      %v2710 = vadd.f32 %v2565, %v2709
      %v2711 = vpop.f32.mrb[0].mxu0
      %2712 = vmatprep.mubr.bf16.mxu0 0
      %2713 = vmatmul.mubr.bf16.gmra.mrb[0].mxu0 %v249
      %v2714 = vpop.f32.mrb[0].mxu0
      %v2715 = vadd.f32 %v2570, %v2714
      %v2716 = vpop.f32.mrb[0].mxu0
      %v2717 = vpop.f32.mrb[0].mxu0
      %v2718 = vadd.f32 %v2573, %v2717
      %v2719 = vpop.f32.mrb[0].mxu0
      %2720 = vmatprep.mubr.bf16.mxu0 0
      %2721 = vmatmul.mubr.bf16.gmra.mrb[0].mxu0 %v250
      %v2722 = vpop.f32.mrb[0].mxu0
      %v2723 = vadd.f32 %v2578, %v2722
      %v2724 = vpop.f32.mrb[0].mxu0
      %v2725 = vpop.f32.mrb[0].mxu0
      %v2726 = vadd.f32 %v2581, %v2725
      %v2727 = vpop.f32.mrb[0].mxu0
      %2728 = vmatprep.mubr.bf16.mxu0 0
      %2729 = vmatmul.mubr.bf16.gmra.mrb[0].mxu0 %v251
      %v2730 = vpop.f32.mrb[0].mxu0
      %v2731 = vadd.f32 %v2586, %v2730
      %v2732 = vpop.f32.mrb[0].mxu0
      %v2733 = vpop.f32.mrb[0].mxu0
      %v2734 = vadd.f32 %v2589, %v2733
      %v2735 = vpop.f32.mrb[0].mxu0
      %2736 = vmatprep.mubr.bf16.mxu0 0
      %2737 = vmatmul.mubr.bf16.gmra.mrb[0].mxu0 %v252
      %v2738 = vpop.f32.mrb[0].mxu0
      %v2739 = vadd.f32 %v2594, %v2738
      %v2740 = vpop.f32.mrb[0].mxu0
      %v2741 = vpop.f32.mrb[0].mxu0
      %v2742 = vadd.f32 %v2597, %v2741
      %v2743 = vpop.f32.mrb[0].mxu0
      %2744 = vdwg.mxu0
      %v2745 = vmax.f32 %v2683, -10.0
      %v2746 = vmax.f32 %v2686, -10.0
      %v2747 = vmax.f32 %v2691, -10.0
      %v2748 = vmax.f32 %v2694, -10.0
      %v2749 = vmax.f32 %v2699, -10.0
      %v2750 = vmax.f32 %v2702, -10.0
      %v2751 = vmax.f32 %v2707, -10.0
      %v2752 = vmax.f32 %v2710, -10.0
      %v2753 = vmax.f32 %v2715, -10.0
      %v2754 = vmax.f32 %v2718, -10.0
      %v2755 = vmax.f32 %v2723, -10.0
      %v2756 = vmax.f32 %v2726, -10.0
      %v2757 = vmax.f32 %v2731, -10.0
      %v2758 = vmax.f32 %v2734, -10.0
      %v2759 = vmax.f32 %v2739, -10.0
      %v2760 = vmax.f32 %v2742, -10.0
      %v2761 = vmin.f32 %v2745, 10.0
      %v2762 = vmin.f32 %v2746, 10.0
      %v2763 = vmin.f32 %v2747, 10.0
      %v2764 = vmin.f32 %v2748, 10.0
      %v2765 = vmin.f32 %v2749, 10.0
      %v2766 = vmin.f32 %v2750, 10.0
      %v2767 = vmin.f32 %v2751, 10.0
      %v2768 = vmin.f32 %v2752, 10.0
      %v2769 = vmin.f32 %v2753, 10.0
      %v2770 = vmin.f32 %v2754, 10.0
      %v2771 = vmin.f32 %v2755, 10.0
      %v2772 = vmin.f32 %v2756, 10.0
      %v2773 = vmin.f32 %v2757, 10.0
      %v2774 = vmin.f32 %v2758, 10.0
      %v2775 = vmin.f32 %v2759, 10.0
      %v2776 = vmin.f32 %v2760, 10.0
      %v2777 = vmul.f32 %v2761, 0.5
      %v2778 = vmul.f32 %v2762, 0.5
      %v2779 = vmul.f32 %v2763, 0.5
      %v2780 = vmul.f32 %v2764, 0.5
      %v2781 = vmul.f32 %v2765, 0.5
      %v2782 = vmul.f32 %v2766, 0.5
      %v2783 = vmul.f32 %v2767, 0.5
      %v2784 = vmul.f32 %v2768, 0.5
      %v2785 = vmul.f32 %v2769, 0.5
      %v2786 = vmul.f32 %v2770, 0.5
      %v2787 = vmul.f32 %v2771, 0.5
      %v2788 = vmul.f32 %v2772, 0.5
      %v2789 = vmul.f32 %v2773, 0.5
      %v2790 = vmul.f32 %v2774, 0.5
      %v2791 = vmul.f32 %v2775, 0.5
      %v2792 = vmul.f32 %v2776, 0.5
      %v2793 = vtanh.pop %v2777
      %v2794 = vtanh.pop %v2778
      %v2795 = vtanh.pop %v2779
      %v2796 = vtanh.pop %v2780
      %v2797 = vtanh.pop %v2781
      %v2798 = vtanh.pop %v2782
      %v2799 = vtanh.pop %v2783
      %v2800 = vtanh.pop %v2784
      %v2801 = vtanh.pop %v2785
      %v2802 = vtanh.pop %v2786
      %v2803 = vtanh.pop %v2787
      %v2804 = vtanh.pop %v2788
      %v2805 = vtanh.pop %v2789
      %v2806 = vtanh.pop %v2790
      %v2807 = vtanh.pop %v2791
      %v2808 = vtanh.pop %v2792
      %v2809 = vand.u32 2147483647, %v2793
      %v2810 = vand.u32 2147483647, %v2794
      %v2811 = vand.u32 2147483647, %v2795
      %v2812 = vand.u32 2147483647, %v2796
      %v2813 = vand.u32 2147483647, %v2797
      %v2814 = vand.u32 2147483647, %v2798
      %v2815 = vand.u32 2147483647, %v2799
      %v2816 = vand.u32 2147483647, %v2800
      %v2817 = vand.u32 2147483647, %v2801
      %v2818 = vand.u32 2147483647, %v2802
      %v2819 = vand.u32 2147483647, %v2803
      %v2820 = vand.u32 2147483647, %v2804
      %v2821 = vand.u32 2147483647, %v2805
      %v2822 = vand.u32 2147483647, %v2806
      %v2823 = vand.u32 2147483647, %v2807
      %v2824 = vand.u32 2147483647, %v2808
      %vm2825 = vcmp.gt.f32.partialorder %v2809, 0.0
      %vm2826 = vcmp.gt.f32.partialorder %v2810, 0.0
      %vm2827 = vcmp.gt.f32.partialorder %v2811, 0.0
      %vm2828 = vcmp.gt.f32.partialorder %v2812, 0.0
      %vm2829 = vcmp.gt.f32.partialorder %v2813, 0.0
      %vm2830 = vcmp.gt.f32.partialorder %v2814, 0.0
      %vm2831 = vcmp.gt.f32.partialorder %v2815, 0.0
      %vm2832 = vcmp.gt.f32.partialorder %v2816, 0.0
      %vm2833 = vcmp.gt.f32.partialorder %v2817, 0.0
      %vm2834 = vcmp.gt.f32.partialorder %v2818, 0.0
      %vm2835 = vcmp.gt.f32.partialorder %v2819, 0.0
      %vm2836 = vcmp.gt.f32.partialorder %v2820, 0.0
      %vm2837 = vcmp.gt.f32.partialorder %v2821, 0.0
      %vm2838 = vcmp.gt.f32.partialorder %v2822, 0.0
      %vm2839 = vcmp.gt.f32.partialorder %v2823, 0.0
      %vm2840 = vcmp.gt.f32.partialorder %v2824, 0.0
      %v2841 = vsel %vm2825, 1, 0
      %v2842 = vsel %vm2826, 1, 0
      %v2843 = vsel %vm2827, 1, 0
      %v2844 = vsel %vm2828, 1, 0
      %v2845 = vsel %vm2829, 1, 0
      %v2846 = vsel %vm2830, 1, 0
      %v2847 = vsel %vm2831, 1, 0
      %v2848 = vsel %vm2832, 1, 0
      %v2849 = vsel %vm2833, 1, 0
      %v2850 = vsel %vm2834, 1, 0
      %v2851 = vsel %vm2835, 1, 0
      %v2852 = vsel %vm2836, 1, 0
      %v2853 = vsel %vm2837, 1, 0
      %v2854 = vsel %vm2838, 1, 0
      %v2855 = vsel %vm2839, 1, 0
      %v2856 = vsel %vm2840, 1, 0
      %v2857 = vcvt.s32.f32 %v2841
      %v2858 = vcvt.s32.f32 %v2842
      %v2859 = vcvt.s32.f32 %v2843
      %v2860 = vcvt.s32.f32 %v2844
      %v2861 = vcvt.s32.f32 %v2845
      %v2862 = vcvt.s32.f32 %v2846
      %v2863 = vcvt.s32.f32 %v2847
      %v2864 = vcvt.s32.f32 %v2848
      %v2865 = vcvt.s32.f32 %v2849
      %v2866 = vcvt.s32.f32 %v2850
      %v2867 = vcvt.s32.f32 %v2851
      %v2868 = vcvt.s32.f32 %v2852
      %v2869 = vcvt.s32.f32 %v2853
      %v2870 = vcvt.s32.f32 %v2854
      %v2871 = vcvt.s32.f32 %v2855
      %v2872 = vcvt.s32.f32 %v2856
      %v2873 = vsub.f32 1.0, %v2857
      %v2874 = vsub.f32 1.0, %v2858
      %v2875 = vsub.f32 1.0, %v2859
      %v2876 = vsub.f32 1.0, %v2860
      %v2877 = vsub.f32 1.0, %v2861
      %v2878 = vsub.f32 1.0, %v2862
      %v2879 = vsub.f32 1.0, %v2863
      %v2880 = vsub.f32 1.0, %v2864
      %v2881 = vsub.f32 1.0, %v2865
      %v2882 = vsub.f32 1.0, %v2866
      %v2883 = vsub.f32 1.0, %v2867
      %v2884 = vsub.f32 1.0, %v2868
      %v2885 = vsub.f32 1.0, %v2869
      %v2886 = vsub.f32 1.0, %v2870
      %v2887 = vsub.f32 1.0, %v2871
      %v2888 = vsub.f32 1.0, %v2872
      %v2889 = vadd.f32 %v2793, %v2873
      %v2890 = vadd.f32 %v2794, %v2874
      %v2891 = vadd.f32 %v2795, %v2875
      %v2892 = vadd.f32 %v2796, %v2876
      %v2893 = vadd.f32 %v2797, %v2877
      %v2894 = vadd.f32 %v2798, %v2878
      %v2895 = vadd.f32 %v2799, %v2879
      %v2896 = vadd.f32 %v2800, %v2880
      %v2897 = vadd.f32 %v2801, %v2881
      %v2898 = vadd.f32 %v2802, %v2882
      %v2899 = vadd.f32 %v2803, %v2883
      %v2900 = vadd.f32 %v2804, %v2884
      %v2901 = vadd.f32 %v2805, %v2885
      %v2902 = vadd.f32 %v2806, %v2886
      %v2903 = vadd.f32 %v2807, %v2887
      %v2904 = vadd.f32 %v2808, %v2888
      %v2905 = vand.u32 2147483647, %v2889
      %v2906 = vand.u32 2147483647, %v2890
      %v2907 = vand.u32 2147483647, %v2891
      %v2908 = vand.u32 2147483647, %v2892
      %v2909 = vand.u32 2147483647, %v2893
      %v2910 = vand.u32 2147483647, %v2894
      %v2911 = vand.u32 2147483647, %v2895
      %v2912 = vand.u32 2147483647, %v2896
      %v2913 = vand.u32 2147483647, %v2897
      %v2914 = vand.u32 2147483647, %v2898
      %v2915 = vand.u32 2147483647, %v2899
      %v2916 = vand.u32 2147483647, %v2900
      %v2917 = vand.u32 2147483647, %v2901
      %v2918 = vand.u32 2147483647, %v2902
      %v2919 = vand.u32 2147483647, %v2903
      %v2920 = vand.u32 2147483647, %v2904
      %v2921 = vlog2.pop %v2905
      %v2922 = vmul.f32 %v2921, 0.6931472
      %v2923 = vlog2.pop %v2906
      %v2924 = vmul.f32 %v2923, 0.6931472
      %v2925 = vlog2.pop %v2907
      %v2926 = vmul.f32 %v2925, 0.6931472
      %v2927 = vlog2.pop %v2908
      %v2928 = vmul.f32 %v2927, 0.6931472
      %v2929 = vlog2.pop %v2909
      %v2930 = vmul.f32 %v2929, 0.6931472
      %v2931 = vlog2.pop %v2910
      %v2932 = vmul.f32 %v2931, 0.6931472
      %v2933 = vlog2.pop %v2911
      %v2934 = vmul.f32 %v2933, 0.6931472
      %v2935 = vlog2.pop %v2912
      %v2936 = vmul.f32 %v2935, 0.6931472
      %v2937 = vlog2.pop %v2913
      %v2938 = vmul.f32 %v2937, 0.6931472
      %v2939 = vlog2.pop %v2914
      %v2940 = vmul.f32 %v2939, 0.6931472
      %v2941 = vlog2.pop %v2915
      %v2942 = vmul.f32 %v2941, 0.6931472
      %v2943 = vlog2.pop %v2916
      %v2944 = vmul.f32 %v2943, 0.6931472
      %v2945 = vlog2.pop %v2917
      %v2946 = vmul.f32 %v2945, 0.6931472
      %v2947 = vlog2.pop %v2918
      %v2948 = vmul.f32 %v2947, 0.6931472
      %v2949 = vlog2.pop %v2919
      %v2950 = vmul.f32 %v2949, 0.6931472
      %v2951 = vlog2.pop %v2920
      %v2952 = vmul.f32 %v2951, 0.6931472
      %vm2953 = vcmp.lt.f32.partialorder %v2889, 0.0
      %vm2954 = vcmp.lt.f32.partialorder %v2890, 0.0
      %vm2955 = vcmp.lt.f32.partialorder %v2891, 0.0
      %vm2956 = vcmp.lt.f32.partialorder %v2892, 0.0
      %vm2957 = vcmp.lt.f32.partialorder %v2893, 0.0
      %vm2958 = vcmp.lt.f32.partialorder %v2894, 0.0
      %vm2959 = vcmp.lt.f32.partialorder %v2895, 0.0
      %vm2960 = vcmp.lt.f32.partialorder %v2896, 0.0
      %vm2961 = vcmp.lt.f32.partialorder %v2897, 0.0
      %vm2962 = vcmp.lt.f32.partialorder %v2898, 0.0
      %vm2963 = vcmp.lt.f32.partialorder %v2899, 0.0
      %vm2964 = vcmp.lt.f32.partialorder %v2900, 0.0
      %vm2965 = vcmp.lt.f32.partialorder %v2901, 0.0
      %vm2966 = vcmp.lt.f32.partialorder %v2902, 0.0
      %vm2967 = vcmp.lt.f32.partialorder %v2903, 0.0
      %vm2968 = vcmp.lt.f32.partialorder %v2904, 0.0
      %v2969 = vsel %vm2953, 1, 0
      %v2970 = vsel %vm2954, 1, 0
      %v2971 = vsel %vm2955, 1, 0
      %v2972 = vsel %vm2956, 1, 0
      %v2973 = vsel %vm2957, 1, 0
      %v2974 = vsel %vm2958, 1, 0
      %v2975 = vsel %vm2959, 1, 0
      %v2976 = vsel %vm2960, 1, 0
      %v2977 = vsel %vm2961, 1, 0
      %v2978 = vsel %vm2962, 1, 0
      %v2979 = vsel %vm2963, 1, 0
      %v2980 = vsel %vm2964, 1, 0
      %v2981 = vsel %vm2965, 1, 0
      %v2982 = vsel %vm2966, 1, 0
      %v2983 = vsel %vm2967, 1, 0
      %v2984 = vsel %vm2968, 1, 0
      %v2985 = vcvt.s32.f32 %v2969
      %v2986 = vcvt.s32.f32 %v2970
      %v2987 = vcvt.s32.f32 %v2971
      %v2988 = vcvt.s32.f32 %v2972
      %v2989 = vcvt.s32.f32 %v2973
      %v2990 = vcvt.s32.f32 %v2974
      %v2991 = vcvt.s32.f32 %v2975
      %v2992 = vcvt.s32.f32 %v2976
      %v2993 = vcvt.s32.f32 %v2977
      %v2994 = vcvt.s32.f32 %v2978
      %v2995 = vcvt.s32.f32 %v2979
      %v2996 = vcvt.s32.f32 %v2980
      %v2997 = vcvt.s32.f32 %v2981
      %v2998 = vcvt.s32.f32 %v2982
      %v2999 = vcvt.s32.f32 %v2983
      %v3000 = vcvt.s32.f32 %v2984
      %v3001 = vpack.c.bf16 %v2924, %v2922
      %v3002 = vpack.c.bf16 %v2928, %v2926
      %v3003 = vpack.c.bf16 %v2932, %v2930
      %v3004 = vpack.c.bf16 %v2936, %v2934
      %v3005 = vpack.c.bf16 %v2940, %v2938
      %v3006 = vpack.c.bf16 %v2944, %v2942
      %v3007 = vpack.c.bf16 %v2948, %v2946
      %v3008 = vpack.c.bf16 %v2952, %v2950
      %v3009 = vpack.c.bf16 %v2986, %v2985
      %v3010 = vpack.c.bf16 %v2988, %v2987
      %v3011 = vpack.c.bf16 %v2990, %v2989
      %v3012 = vpack.c.bf16 %v2992, %v2991
      %v3013 = vpack.c.bf16 %v2994, %v2993
      %v3014 = vpack.c.bf16 %v2996, %v2995
      %v3015 = vpack.c.bf16 %v2998, %v2997
      %v3016 = vpack.c.bf16 %v3000, %v2999
      %3017 = vmatprep.subr.bf16.mxu0 0
      %3018 = vmatpush1.bf16.msra.mxu0 %v895
      %3019 = vmatprep.subr.bf16.mxu0 0
      %3020 = vmatpush1.bf16.msra.mxu0 %v896
      %3021 = vmatprep.subr.bf16.mxu0 0
      %3022 = vmatpush1.bf16.msra.mxu0 %v897
      %3023 = vmatprep.subr.bf16.mxu0 0
      %3024 = vmatpush1.bf16.msra.mxu0 %v898
      %3025 = vmatprep.subr.bf16.mxu0 0
      %3026 = vmatpush1.bf16.msra.mxu0 %v899
      %3027 = vmatprep.subr.bf16.mxu0 0
      %3028 = vmatpush1.bf16.msra.mxu0 %v900
      %3029 = vmatprep.subr.bf16.mxu0 0
      %3030 = vmatpush1.bf16.msra.mxu0 %v901
      %3031 = vmatprep.subr.bf16.mxu0 0
      %3032 = vmatpush1.bf16.msra.mxu0 %v902
      %3033 = vmatprep.subr.bf16.mxu0 0
      %3034 = vmatpush1.bf16.msra.mxu0 0
      %3035 = vmatprep.subr.bf16.mxu0 0
      %3036 = vmatpush1.bf16.msra.mxu0 0
      %3037 = vmatprep.subr.bf16.mxu0 0
      %3038 = vmatpush1.bf16.msra.mxu0 0
      %3039 = vmatprep.subr.bf16.mxu0 0
      %3040 = vmatpush1.bf16.msra.mxu0 0
      %3041 = vmatprep.subr.bf16.mxu0 0
      %3042 = vmatpush1.bf16.msra.mxu0 0
      %3043 = vmatprep.subr.bf16.mxu0 0
      %3044 = vmatpush1.bf16.msra.mxu0 0
      %3045 = vmatprep.subr.bf16.mxu0 0
      %3046 = vmatpush1.bf16.msra.mxu0 0
      %3047 = vmatprep.subr.bf16.mxu0 0
      %3048 = vmatpush1.bf16.msra.mxu0 0
      %3049 = vmatprep.mubr.bf16.mxu0 0
      %3050 = vmatmul.mubr.bf16.gmra.mrb[0].mxu0 %v3001
      %v3051 = vpop.f32.mrb[0].mxu0
      %v3052 = vadd.f32 0.0, %v3051
      %v3053 = vpop.f32.mrb[0].mxu0
      %v3054 = vpop.f32.mrb[0].mxu0
      %v3055 = vadd.f32 0.0, %v3054
      %v3056 = vpop.f32.mrb[0].mxu0
      %3057 = vmatprep.mubr.bf16.mxu0 0
      %3058 = vmatmul.mubr.bf16.gmra.mrb[0].mxu0 %v3002
      %v3059 = vpop.f32.mrb[0].mxu0
      %v3060 = vadd.f32 0.0, %v3059
      %v3061 = vpop.f32.mrb[0].mxu0
      %v3062 = vpop.f32.mrb[0].mxu0
      %v3063 = vadd.f32 0.0, %v3062
      %v3064 = vpop.f32.mrb[0].mxu0
      %3065 = vmatprep.mubr.bf16.mxu0 0
      %3066 = vmatmul.mubr.bf16.gmra.mrb[0].mxu0 %v3003
      %v3067 = vpop.f32.mrb[0].mxu0
      %v3068 = vadd.f32 0.0, %v3067
      %v3069 = vpop.f32.mrb[0].mxu0
      %v3070 = vpop.f32.mrb[0].mxu0
      %v3071 = vadd.f32 0.0, %v3070
      %v3072 = vpop.f32.mrb[0].mxu0
      %3073 = vmatprep.mubr.bf16.mxu0 0
      %3074 = vmatmul.mubr.bf16.gmra.mrb[0].mxu0 %v3004
      %v3075 = vpop.f32.mrb[0].mxu0
      %v3076 = vadd.f32 0.0, %v3075
      %v3077 = vpop.f32.mrb[0].mxu0
      %v3078 = vpop.f32.mrb[0].mxu0
      %v3079 = vadd.f32 0.0, %v3078
      %v3080 = vpop.f32.mrb[0].mxu0
      %3081 = vmatprep.mubr.bf16.mxu0 0
      %3082 = vmatmul.mubr.bf16.gmra.mrb[0].mxu0 %v3005
      %v3083 = vpop.f32.mrb[0].mxu0
      %v3084 = vadd.f32 0.0, %v3083
      %v3085 = vpop.f32.mrb[0].mxu0
      %v3086 = vpop.f32.mrb[0].mxu0
      %v3087 = vadd.f32 0.0, %v3086
      %v3088 = vpop.f32.mrb[0].mxu0
      %3089 = vmatprep.mubr.bf16.mxu0 0
      %3090 = vmatmul.mubr.bf16.gmra.mrb[0].mxu0 %v3006
      %v3091 = vpop.f32.mrb[0].mxu0
      %v3092 = vadd.f32 0.0, %v3091
      %v3093 = vpop.f32.mrb[0].mxu0
      %v3094 = vpop.f32.mrb[0].mxu0
      %v3095 = vadd.f32 0.0, %v3094
      %v3096 = vpop.f32.mrb[0].mxu0
      %3097 = vmatprep.mubr.bf16.mxu0 0
      %3098 = vmatmul.mubr.bf16.gmra.mrb[0].mxu0 %v3007
      %v3099 = vpop.f32.mrb[0].mxu0
      %v3100 = vadd.f32 0.0, %v3099
      %v3101 = vpop.f32.mrb[0].mxu0
      %v3102 = vpop.f32.mrb[0].mxu0
      %v3103 = vadd.f32 0.0, %v3102
      %v3104 = vpop.f32.mrb[0].mxu0
      %3105 = vmatprep.mubr.bf16.mxu0 0
      %3106 = vmatmul.mubr.bf16.gmra.mrb[0].mxu0 %v3008
      %v3107 = vpop.f32.mrb[0].mxu0
      %v3108 = vadd.f32 0.0, %v3107
      %v3109 = vpop.f32.mrb[0].mxu0
      %v3110 = vpop.f32.mrb[0].mxu0
      %v3111 = vadd.f32 0.0, %v3110
      %v3112 = vpop.f32.mrb[0].mxu0
      %3113 = vmatprep.mubr.bf16.mxu0 0
      %3114 = vmatmul.mubr.bf16.gmra.mrb[0].mxu0 %v3009
      %v3115 = vpop.f32.mrb[0].mxu0
      %v3116 = vadd.f32 0.0, %v3115
      %v3117 = vpop.f32.mrb[0].mxu0
      %v3118 = vpop.f32.mrb[0].mxu0
      %v3119 = vadd.f32 0.0, %v3118
      %v3120 = vpop.f32.mrb[0].mxu0
      %3121 = vmatprep.mubr.bf16.mxu0 0
      %3122 = vmatmul.mubr.bf16.gmra.mrb[0].mxu0 %v3010
      %v3123 = vpop.f32.mrb[0].mxu0
      %v3124 = vadd.f32 0.0, %v3123
      %v3125 = vpop.f32.mrb[0].mxu0
      %v3126 = vpop.f32.mrb[0].mxu0
      %v3127 = vadd.f32 0.0, %v3126
      %v3128 = vpop.f32.mrb[0].mxu0
      %3129 = vmatprep.mubr.bf16.mxu0 0
      %3130 = vmatmul.mubr.bf16.gmra.mrb[0].mxu0 %v3011
      %v3131 = vpop.f32.mrb[0].mxu0
      %v3132 = vadd.f32 0.0, %v3131
      %v3133 = vpop.f32.mrb[0].mxu0
      %v3134 = vpop.f32.mrb[0].mxu0
      %v3135 = vadd.f32 0.0, %v3134
      %v3136 = vpop.f32.mrb[0].mxu0
      %3137 = vmatprep.mubr.bf16.mxu0 0
      %3138 = vmatmul.mubr.bf16.gmra.mrb[0].mxu0 %v3012
      %v3139 = vpop.f32.mrb[0].mxu0
      %v3140 = vadd.f32 0.0, %v3139
      %v3141 = vpop.f32.mrb[0].mxu0
      %v3142 = vpop.f32.mrb[0].mxu0
      %v3143 = vadd.f32 0.0, %v3142
      %v3144 = vpop.f32.mrb[0].mxu0
      %3145 = vmatprep.mubr.bf16.mxu0 0
      %3146 = vmatmul.mubr.bf16.gmra.mrb[0].mxu0 %v3013
      %v3147 = vpop.f32.mrb[0].mxu0
      %v3148 = vadd.f32 0.0, %v3147
      %v3149 = vpop.f32.mrb[0].mxu0
      %v3150 = vpop.f32.mrb[0].mxu0
      %v3151 = vadd.f32 0.0, %v3150
      %v3152 = vpop.f32.mrb[0].mxu0
      %3153 = vmatprep.mubr.bf16.mxu0 0
      %3154 = vmatmul.mubr.bf16.gmra.mrb[0].mxu0 %v3014
      %v3155 = vpop.f32.mrb[0].mxu0
      %v3156 = vadd.f32 0.0, %v3155
      %v3157 = vpop.f32.mrb[0].mxu0
      %v3158 = vpop.f32.mrb[0].mxu0
      %v3159 = vadd.f32 0.0, %v3158
      %v3160 = vpop.f32.mrb[0].mxu0
      %3161 = vmatprep.mubr.bf16.mxu0 0
      %3162 = vmatmul.mubr.bf16.gmra.mrb[0].mxu0 %v3015
      %v3163 = vpop.f32.mrb[0].mxu0
      %v3164 = vadd.f32 0.0, %v3163
      %v3165 = vpop.f32.mrb[0].mxu0
      %v3166 = vpop.f32.mrb[0].mxu0
      %v3167 = vadd.f32 0.0, %v3166
      %v3168 = vpop.f32.mrb[0].mxu0
      %3169 = vmatprep.mubr.bf16.mxu0 0
      %3170 = vmatmul.mubr.bf16.gmra.mrb[0].mxu0 %v3016
      %v3171 = vpop.f32.mrb[0].mxu0
      %v3172 = vadd.f32 0.0, %v3171
      %v3173 = vpop.f32.mrb[0].mxu0
      %v3174 = vpop.f32.mrb[0].mxu0
      %v3175 = vadd.f32 0.0, %v3174
      %v3176 = vpop.f32.mrb[0].mxu0
      %3177 = vdwg.mxu0
      %v3178 = vmul.f32 %v3116, 0.5
      %v3179 = vmul.f32 %v3119, 0.5
      %v3180 = vmul.f32 %v3124, 0.5
      %v3181 = vmul.f32 %v3127, 0.5
      %v3182 = vmul.f32 %v3132, 0.5
      %v3183 = vmul.f32 %v3135, 0.5
      %v3184 = vmul.f32 %v3140, 0.5
      %v3185 = vmul.f32 %v3143, 0.5
      %v3186 = vmul.f32 %v3148, 0.5
      %v3187 = vmul.f32 %v3151, 0.5
      %v3188 = vmul.f32 %v3156, 0.5
      %v3189 = vmul.f32 %v3159, 0.5
      %v3190 = vmul.f32 %v3164, 0.5
      %v3191 = vmul.f32 %v3167, 0.5
      %v3192 = vmul.f32 %v3172, 0.5
      %v3193 = vmul.f32 %v3175, 0.5
      %v3194 = vfloor.f32 %v3178
      %v3195 = vfloor.f32 %v3179
      %v3196 = vfloor.f32 %v3180
      %v3197 = vfloor.f32 %v3181
      %v3198 = vfloor.f32 %v3182
      %v3199 = vfloor.f32 %v3183
      %v3200 = vfloor.f32 %v3184
      %v3201 = vfloor.f32 %v3185
      %v3202 = vfloor.f32 %v3186
      %v3203 = vfloor.f32 %v3187
      %v3204 = vfloor.f32 %v3188
      %v3205 = vfloor.f32 %v3189
      %v3206 = vfloor.f32 %v3190
      %v3207 = vfloor.f32 %v3191
      %v3208 = vfloor.f32 %v3192
      %v3209 = vfloor.f32 %v3193
      %v3210 = vmul.f32 %v3194, 2.0
      %v3211 = vmul.f32 %v3195, 2.0
      %v3212 = vmul.f32 %v3196, 2.0
      %v3213 = vmul.f32 %v3197, 2.0
      %v3214 = vmul.f32 %v3198, 2.0
      %v3215 = vmul.f32 %v3199, 2.0
      %v3216 = vmul.f32 %v3200, 2.0
      %v3217 = vmul.f32 %v3201, 2.0
      %v3218 = vmul.f32 %v3202, 2.0
      %v3219 = vmul.f32 %v3203, 2.0
      %v3220 = vmul.f32 %v3204, 2.0
      %v3221 = vmul.f32 %v3205, 2.0
      %v3222 = vmul.f32 %v3206, 2.0
      %v3223 = vmul.f32 %v3207, 2.0
      %v3224 = vmul.f32 %v3208, 2.0
      %v3225 = vmul.f32 %v3209, 2.0
      %v3226 = vsub.f32 %v3116, %v3210
      %v3227 = vsub.f32 %v3119, %v3211
      %v3228 = vsub.f32 %v3124, %v3212
      %v3229 = vsub.f32 %v3127, %v3213
      %v3230 = vsub.f32 %v3132, %v3214
      %v3231 = vsub.f32 %v3135, %v3215
      %v3232 = vsub.f32 %v3140, %v3216
      %v3233 = vsub.f32 %v3143, %v3217
      %v3234 = vsub.f32 %v3148, %v3218
      %v3235 = vsub.f32 %v3151, %v3219
      %v3236 = vsub.f32 %v3156, %v3220
      %v3237 = vsub.f32 %v3159, %v3221
      %v3238 = vsub.f32 %v3164, %v3222
      %v3239 = vsub.f32 %v3167, %v3223
      %v3240 = vsub.f32 %v3172, %v3224
      %v3241 = vsub.f32 %v3175, %v3225
      %v3242 = vmul.f32 %v3226, 2.0
      %v3243 = vmul.f32 %v3227, 2.0
      %v3244 = vmul.f32 %v3228, 2.0
      %v3245 = vmul.f32 %v3229, 2.0
      %v3246 = vmul.f32 %v3230, 2.0
      %v3247 = vmul.f32 %v3231, 2.0
      %v3248 = vmul.f32 %v3232, 2.0
      %v3249 = vmul.f32 %v3233, 2.0
      %v3250 = vmul.f32 %v3234, 2.0
      %v3251 = vmul.f32 %v3235, 2.0
      %v3252 = vmul.f32 %v3236, 2.0
      %v3253 = vmul.f32 %v3237, 2.0
      %v3254 = vmul.f32 %v3238, 2.0
      %v3255 = vmul.f32 %v3239, 2.0
      %v3256 = vmul.f32 %v3240, 2.0
      %v3257 = vmul.f32 %v3241, 2.0
      %v3258 = vsub.f32 1.0, %v3242
      %v3259 = vsub.f32 1.0, %v3243
      %v3260 = vsub.f32 1.0, %v3244
      %v3261 = vsub.f32 1.0, %v3245
      %v3262 = vsub.f32 1.0, %v3246
      %v3263 = vsub.f32 1.0, %v3247
      %v3264 = vsub.f32 1.0, %v3248
      %v3265 = vsub.f32 1.0, %v3249
      %v3266 = vsub.f32 1.0, %v3250
      %v3267 = vsub.f32 1.0, %v3251
      %v3268 = vsub.f32 1.0, %v3252
      %v3269 = vsub.f32 1.0, %v3253
      %v3270 = vsub.f32 1.0, %v3254
      %v3271 = vsub.f32 1.0, %v3255
      %v3272 = vsub.f32 1.0, %v3256
      %v3273 = vsub.f32 1.0, %v3257
      %v3274 = vmul.f32 %v3052, 1.442695
      %v3275 = vpow.pop %v3274
      %v3276 = vmul.f32 %v3055, 1.442695
      %v3277 = vpow.pop %v3276
      %v3278 = vmul.f32 %v3060, 1.442695
      %v3279 = vpow.pop %v3278
      %v3280 = vmul.f32 %v3063, 1.442695
      %v3281 = vpow.pop %v3280
      %v3282 = vmul.f32 %v3068, 1.442695
      %v3283 = vpow.pop %v3282
      %v3284 = vmul.f32 %v3071, 1.442695
      %v3285 = vpow.pop %v3284
      %v3286 = vmul.f32 %v3076, 1.442695
      %v3287 = vpow.pop %v3286
      %v3288 = vmul.f32 %v3079, 1.442695
      %v3289 = vpow.pop %v3288
      %v3290 = vmul.f32 %v3084, 1.442695
      %v3291 = vpow.pop %v3290
      %v3292 = vmul.f32 %v3087, 1.442695
      %v3293 = vpow.pop %v3292
      %v3294 = vmul.f32 %v3092, 1.442695
      %v3295 = vpow.pop %v3294
      %v3296 = vmul.f32 %v3095, 1.442695
      %v3297 = vpow.pop %v3296
      %v3298 = vmul.f32 %v3100, 1.442695
      %v3299 = vpow.pop %v3298
      %v3300 = vmul.f32 %v3103, 1.442695
      %v3301 = vpow.pop %v3300
      %v3302 = vmul.f32 %v3108, 1.442695
      %v3303 = vpow.pop %v3302
      %v3304 = vmul.f32 %v3111, 1.442695
      %v3305 = vpow.pop %v3304
      %v3306 = vmul.f32 %v3258, %v3275
      %v3307 = vmul.f32 %v3259, %v3277
      %v3308 = vmul.f32 %v3260, %v3279
      %v3309 = vmul.f32 %v3261, %v3281
      %v3310 = vmul.f32 %v3262, %v3283
      %v3311 = vmul.f32 %v3263, %v3285
      %v3312 = vmul.f32 %v3264, %v3287
      %v3313 = vmul.f32 %v3265, %v3289
      %v3314 = vmul.f32 %v3266, %v3291
      %v3315 = vmul.f32 %v3267, %v3293
      %v3316 = vmul.f32 %v3268, %v3295
      %v3317 = vmul.f32 %v3269, %v3297
      %v3318 = vmul.f32 %v3270, %v3299
      %v3319 = vmul.f32 %v3271, %v3301
      %v3320 = vmul.f32 %v3272, %v3303
      %v3321 = vmul.f32 %v3273, %v3305
      %v3322 = vmax.f32 %v3306, -0.999999
      %v3323 = vmax.f32 %v3307, -0.999999
      %v3324 = vmax.f32 %v3308, -0.999999
      %v3325 = vmax.f32 %v3309, -0.999999
      %v3326 = vmax.f32 %v3310, -0.999999
      %v3327 = vmax.f32 %v3311, -0.999999
      %v3328 = vmax.f32 %v3312, -0.999999
      %v3329 = vmax.f32 %v3313, -0.999999
      %v3330 = vmax.f32 %v3314, -0.999999
      %v3331 = vmax.f32 %v3315, -0.999999
      %v3332 = vmax.f32 %v3316, -0.999999
      %v3333 = vmax.f32 %v3317, -0.999999
      %v3334 = vmax.f32 %v3318, -0.999999
      %v3335 = vmax.f32 %v3319, -0.999999
      %v3336 = vmax.f32 %v3320, -0.999999
      %v3337 = vmax.f32 %v3321, -0.999999
      %v3338 = vmin.f32 %v3322, 0.999999
      %v3339 = vmin.f32 %v3323, 0.999999
      %v3340 = vmin.f32 %v3324, 0.999999
      %v3341 = vmin.f32 %v3325, 0.999999
      %v3342 = vmin.f32 %v3326, 0.999999
      %v3343 = vmin.f32 %v3327, 0.999999
      %v3344 = vmin.f32 %v3328, 0.999999
      %v3345 = vmin.f32 %v3329, 0.999999
      %v3346 = vmin.f32 %v3330, 0.999999
      %v3347 = vmin.f32 %v3331, 0.999999
      %v3348 = vmin.f32 %v3332, 0.999999
      %v3349 = vmin.f32 %v3333, 0.999999
      %v3350 = vmin.f32 %v3334, 0.999999
      %v3351 = vmin.f32 %v3335, 0.999999
      %v3352 = vmin.f32 %v3336, 0.999999
      %v3353 = vmin.f32 %v3337, 0.999999
      %v3354 = vadd.f32 %v3338, 1.0
      %v3355 = vadd.f32 %v3339, 1.0
      %v3356 = vadd.f32 %v3340, 1.0
      %v3357 = vadd.f32 %v3341, 1.0
      %v3358 = vadd.f32 %v3342, 1.0
      %v3359 = vadd.f32 %v3343, 1.0
      %v3360 = vadd.f32 %v3344, 1.0
      %v3361 = vadd.f32 %v3345, 1.0
      %v3362 = vadd.f32 %v3346, 1.0
      %v3363 = vadd.f32 %v3347, 1.0
      %v3364 = vadd.f32 %v3348, 1.0
      %v3365 = vadd.f32 %v3349, 1.0
      %v3366 = vadd.f32 %v3350, 1.0
      %v3367 = vadd.f32 %v3351, 1.0
      %v3368 = vadd.f32 %v3352, 1.0
      %v3369 = vadd.f32 %v3353, 1.0
      %v3370 = vsub.f32 1.0, %v3338
      %v3371 = vsub.f32 1.0, %v3339
      %v3372 = vsub.f32 1.0, %v3340
      %v3373 = vsub.f32 1.0, %v3341
      %v3374 = vsub.f32 1.0, %v3342
      %v3375 = vsub.f32 1.0, %v3343
      %v3376 = vsub.f32 1.0, %v3344
      %v3377 = vsub.f32 1.0, %v3345
      %v3378 = vsub.f32 1.0, %v3346
      %v3379 = vsub.f32 1.0, %v3347
      %v3380 = vsub.f32 1.0, %v3348
      %v3381 = vsub.f32 1.0, %v3349
      %v3382 = vsub.f32 1.0, %v3350
      %v3383 = vsub.f32 1.0, %v3351
      %v3384 = vsub.f32 1.0, %v3352
      %v3385 = vsub.f32 1.0, %v3353
      %v3386 = vrcp.pop %v3370
      %v3387 = vrcp.pop %v3371
      %v3388 = vrcp.pop %v3372
      %v3389 = vrcp.pop %v3373
      %v3390 = vrcp.pop %v3374
      %v3391 = vrcp.pop %v3375
      %v3392 = vrcp.pop %v3376
      %v3393 = vrcp.pop %v3377
      %v3394 = vrcp.pop %v3378
      %v3395 = vrcp.pop %v3379
      %v3396 = vrcp.pop %v3380
      %v3397 = vrcp.pop %v3381
      %v3398 = vrcp.pop %v3382
      %v3399 = vrcp.pop %v3383
      %v3400 = vrcp.pop %v3384
      %v3401 = vrcp.pop %v3385
      %v3402 = vmul.f32 %v3354, %v3386
      %v3403 = vmul.f32 %v3355, %v3387
      %v3404 = vmul.f32 %v3356, %v3388
      %v3405 = vmul.f32 %v3357, %v3389
      %v3406 = vmul.f32 %v3358, %v3390
      %v3407 = vmul.f32 %v3359, %v3391
      %v3408 = vmul.f32 %v3360, %v3392
      %v3409 = vmul.f32 %v3361, %v3393
      %v3410 = vmul.f32 %v3362, %v3394
      %v3411 = vmul.f32 %v3363, %v3395
      %v3412 = vmul.f32 %v3364, %v3396
      %v3413 = vmul.f32 %v3365, %v3397
      %v3414 = vmul.f32 %v3366, %v3398
      %v3415 = vmul.f32 %v3367, %v3399
      %v3416 = vmul.f32 %v3368, %v3400
      %v3417 = vmul.f32 %v3369, %v3401
      %v3418 = vlog2.pop %v3402
      %v3419 = vmul.f32 %v3418, 0.6931472
      %v3420 = vlog2.pop %v3403
      %v3421 = vmul.f32 %v3420, 0.6931472
      %v3422 = vlog2.pop %v3404
      %v3423 = vmul.f32 %v3422, 0.6931472
      %v3424 = vlog2.pop %v3405
      %v3425 = vmul.f32 %v3424, 0.6931472
      %v3426 = vlog2.pop %v3406
      %v3427 = vmul.f32 %v3426, 0.6931472
      %v3428 = vlog2.pop %v3407
      %v3429 = vmul.f32 %v3428, 0.6931472
      %v3430 = vlog2.pop %v3408
      %v3431 = vmul.f32 %v3430, 0.6931472
      %v3432 = vlog2.pop %v3409
      %v3433 = vmul.f32 %v3432, 0.6931472
      %v3434 = vlog2.pop %v3410
      %v3435 = vmul.f32 %v3434, 0.6931472
      %v3436 = vlog2.pop %v3411
      %v3437 = vmul.f32 %v3436, 0.6931472
      %v3438 = vlog2.pop %v3412
      %v3439 = vmul.f32 %v3438, 0.6931472
      %v3440 = vlog2.pop %v3413
      %v3441 = vmul.f32 %v3440, 0.6931472
      %v3442 = vlog2.pop %v3414
      %v3443 = vmul.f32 %v3442, 0.6931472
      %v3444 = vlog2.pop %v3415
      %v3445 = vmul.f32 %v3444, 0.6931472
      %v3446 = vlog2.pop %v3416
      %v3447 = vmul.f32 %v3446, 0.6931472
      %v3448 = vlog2.pop %v3417
      %v3449 = vmul.f32 %v3448, 0.6931472
      %s3450 = scalar_lea.vmem %s1, 192
      %v3451 = vld [vmem:[%s3450] sm:$0xf]
      %v3452 = vld [vmem:[%s3450 + $0x4] sm:$0xf]
      %v3453 = vld [vmem:[%s3450 + $0x8] sm:$0xf]
      %v3454 = vld [vmem:[%s3450 + $0xc] sm:$0xf]
      %v3455 = vld [vmem:[%s3450 + $0x10] sm:$0xf]
      %v3456 = vld [vmem:[%s3450 + $0x14] sm:$0xf]
      %v3457 = vld [vmem:[%s3450 + $0x18] sm:$0xf]
      %v3458 = vld [vmem:[%s3450 + $0x1c] sm:$0xf]
      %v3459 = vld [vmem:[%s3450 + $0x20] sm:$0xf]
      %v3460 = vld [vmem:[%s3450 + $0x24] sm:$0xf]
      %v3461 = vld [vmem:[%s3450 + $0x28] sm:$0xf]
      %v3462 = vld [vmem:[%s3450 + $0x2c] sm:$0xf]
      %v3463 = vld [vmem:[%s3450 + $0x30] sm:$0xf]
      %v3464 = vld [vmem:[%s3450 + $0x34] sm:$0xf]
      %v3465 = vld [vmem:[%s3450 + $0x38] sm:$0xf]
      %v3466 = vld [vmem:[%s3450 + $0x3c] sm:$0xf]
      %v3467 = vpack.c.bf16 %v3421, %v3419
      %v3468 = vpack.c.bf16 %v3425, %v3423
      %v3469 = vpack.c.bf16 %v3429, %v3427
      %v3470 = vpack.c.bf16 %v3433, %v3431
      %v3471 = vpack.c.bf16 %v3437, %v3435
      %v3472 = vpack.c.bf16 %v3441, %v3439
      %v3473 = vpack.c.bf16 %v3445, %v3443
      %v3474 = vpack.c.bf16 %v3449, %v3447
      %s3475 = scalar_lea.vmem %s2, 192
      %v3476 = vld [vmem:[%s3475] sm:$0xf]
      %v3477 = vld [vmem:[%s3475 + $0x4] sm:$0xf]
      %v3478 = vld [vmem:[%s3475 + $0x8] sm:$0xf]
      %v3479 = vld [vmem:[%s3475 + $0xc] sm:$0xf]
      %v3480 = vld [vmem:[%s3475 + $0x10] sm:$0xf]
      %v3481 = vld [vmem:[%s3475 + $0x14] sm:$0xf]
      %v3482 = vld [vmem:[%s3475 + $0x18] sm:$0xf]
      %v3483 = vld [vmem:[%s3475 + $0x1c] sm:$0xf]
      %v3484 = vld [vmem:[%s3475 + $0x20] sm:$0xf]
      %v3485 = vld [vmem:[%s3475 + $0x24] sm:$0xf]
      %v3486 = vld [vmem:[%s3475 + $0x28] sm:$0xf]
      %v3487 = vld [vmem:[%s3475 + $0x2c] sm:$0xf]
      %v3488 = vld [vmem:[%s3475 + $0x30] sm:$0xf]
      %v3489 = vld [vmem:[%s3475 + $0x34] sm:$0xf]
      %v3490 = vld [vmem:[%s3475 + $0x38] sm:$0xf]
      %v3491 = vld [vmem:[%s3475 + $0x3c] sm:$0xf]
      %v3508 = vunpack.c.l.b16 %v3476
      %v3509 = vunpack.c.l.b16 %v3477
      %v3510 = vunpack.c.l.b16 %v3478
      %v3511 = vunpack.c.l.b16 %v3479
      %v3512 = vunpack.c.l.b16 %v3480
      %v3513 = vunpack.c.l.b16 %v3481
      %v3514 = vunpack.c.l.b16 %v3482
      %v3515 = vunpack.c.l.b16 %v3483
      %v3516 = vunpack.c.l.b16 %v3484
      %v3517 = vunpack.c.l.b16 %v3485
      %v3518 = vunpack.c.l.b16 %v3486
      %v3519 = vunpack.c.l.b16 %v3487
      %v3520 = vunpack.c.l.b16 %v3488
      %v3521 = vunpack.c.l.b16 %v3489
      %v3522 = vunpack.c.l.b16 %v3490
      %v3523 = vunpack.c.l.b16 %v3491
      %v3524 = vpack.c.b16 %v3509, %v3508
      %v3525 = vpack.c.b16 %v3511, %v3510
      %v3526 = vpack.c.b16 %v3513, %v3512
      %v3527 = vpack.c.b16 %v3515, %v3514
      %v3528 = vpack.c.b16 %v3517, %v3516
      %v3529 = vpack.c.b16 %v3519, %v3518
      %v3530 = vpack.c.b16 %v3521, %v3520
      %v3531 = vpack.c.b16 %v3523, %v3522
      %3540 = vmatprep.subr.bf16.mxu0 0
      %3541 = vmatpush1.bf16.msra.mxu0 %v3524
      %3542 = vmatprep.subr.bf16.mxu0 0
      %3543 = vmatpush1.bf16.msra.mxu0 %v3525
      %3544 = vmatprep.subr.bf16.mxu0 0
      %3545 = vmatpush1.bf16.msra.mxu0 %v3526
      %3546 = vmatprep.subr.bf16.mxu0 0
      %3547 = vmatpush1.bf16.msra.mxu0 %v3527
      %3548 = vmatprep.subr.bf16.mxu0 0
      %3549 = vmatpush1.bf16.msra.mxu0 %v3528
      %3550 = vmatprep.subr.bf16.mxu0 0
      %3551 = vmatpush1.bf16.msra.mxu0 %v3529
      %3552 = vmatprep.subr.bf16.mxu0 0
      %3553 = vmatpush1.bf16.msra.mxu0 %v3530
      %3554 = vmatprep.subr.bf16.mxu0 0
      %3555 = vmatpush1.bf16.msra.mxu0 %v3531
      %3556 = vmatprep.subr.bf16.mxu0 0
      %3557 = vmatpush1.bf16.msra.mxu0 0
      %3558 = vmatprep.subr.bf16.mxu0 0
      %3559 = vmatpush1.bf16.msra.mxu0 0
      %3560 = vmatprep.subr.bf16.mxu0 0
      %3561 = vmatpush1.bf16.msra.mxu0 0
      %3562 = vmatprep.subr.bf16.mxu0 0
      %3563 = vmatpush1.bf16.msra.mxu0 0
      %3564 = vmatprep.subr.bf16.mxu0 0
      %3565 = vmatpush1.bf16.msra.mxu0 0
      %3566 = vmatprep.subr.bf16.mxu0 0
      %3567 = vmatpush1.bf16.msra.mxu0 0
      %3568 = vmatprep.subr.bf16.mxu0 0
      %3569 = vmatpush1.bf16.msra.mxu0 0
      %3570 = vmatprep.subr.bf16.mxu0 0
      %3571 = vmatpush1.bf16.msra.mxu0 0
      %3572 = vmatprep.mubr.bf16.mxu0 0
      %3573 = vmatmul.mubr.bf16.gmra.mrb[0].mxu0 %v3467
      %v3574 = vpop.f32.mrb[0].mxu0
      %v3575 = vadd.f32 0.0, %v3574
      %v3576 = vpop.f32.mrb[0].mxu0
      %v3577 = vpop.f32.mrb[0].mxu0
      %v3578 = vadd.f32 0.0, %v3577
      %v3579 = vpop.f32.mrb[0].mxu0
      %3580 = vmatprep.mubr.bf16.mxu0 0
      %3581 = vmatmul.mubr.bf16.gmra.mrb[0].mxu0 %v3468
      %v3582 = vpop.f32.mrb[0].mxu0
      %v3583 = vadd.f32 0.0, %v3582
      %v3584 = vpop.f32.mrb[0].mxu0
      %v3585 = vpop.f32.mrb[0].mxu0
      %v3586 = vadd.f32 0.0, %v3585
      %v3587 = vpop.f32.mrb[0].mxu0
      %3588 = vmatprep.mubr.bf16.mxu0 0
      %3589 = vmatmul.mubr.bf16.gmra.mrb[0].mxu0 %v3469
      %v3590 = vpop.f32.mrb[0].mxu0
      %v3591 = vadd.f32 0.0, %v3590
      %v3592 = vpop.f32.mrb[0].mxu0
      %v3593 = vpop.f32.mrb[0].mxu0
      %v3594 = vadd.f32 0.0, %v3593
      %v3595 = vpop.f32.mrb[0].mxu0
      %3596 = vmatprep.mubr.bf16.mxu0 0
      %3597 = vmatmul.mubr.bf16.gmra.mrb[0].mxu0 %v3470
      %v3598 = vpop.f32.mrb[0].mxu0
      %v3599 = vadd.f32 0.0, %v3598
      %v3600 = vpop.f32.mrb[0].mxu0
      %v3601 = vpop.f32.mrb[0].mxu0
      %v3602 = vadd.f32 0.0, %v3601
      %v3603 = vpop.f32.mrb[0].mxu0
      %3604 = vmatprep.mubr.bf16.mxu0 0
      %3605 = vmatmul.mubr.bf16.gmra.mrb[0].mxu0 %v3471
      %v3606 = vpop.f32.mrb[0].mxu0
      %v3607 = vadd.f32 0.0, %v3606
      %v3608 = vpop.f32.mrb[0].mxu0
      %v3609 = vpop.f32.mrb[0].mxu0
      %v3610 = vadd.f32 0.0, %v3609
      %v3611 = vpop.f32.mrb[0].mxu0
      %3612 = vmatprep.mubr.bf16.mxu0 0
      %3613 = vmatmul.mubr.bf16.gmra.mrb[0].mxu0 %v3472
      %v3614 = vpop.f32.mrb[0].mxu0
      %v3615 = vadd.f32 0.0, %v3614
      %v3616 = vpop.f32.mrb[0].mxu0
      %v3617 = vpop.f32.mrb[0].mxu0
      %v3618 = vadd.f32 0.0, %v3617
      %v3619 = vpop.f32.mrb[0].mxu0
      %3620 = vmatprep.mubr.bf16.mxu0 0
      %3621 = vmatmul.mubr.bf16.gmra.mrb[0].mxu0 %v3473
      %v3622 = vpop.f32.mrb[0].mxu0
      %v3623 = vadd.f32 0.0, %v3622
      %v3624 = vpop.f32.mrb[0].mxu0
      %v3625 = vpop.f32.mrb[0].mxu0
      %v3626 = vadd.f32 0.0, %v3625
      %v3627 = vpop.f32.mrb[0].mxu0
      %3628 = vmatprep.mubr.bf16.mxu0 0
      %3629 = vmatmul.mubr.bf16.gmra.mrb[0].mxu0 %v3474
      %v3630 = vpop.f32.mrb[0].mxu0
      %v3631 = vadd.f32 0.0, %v3630
      %v3632 = vpop.f32.mrb[0].mxu0
      %v3633 = vpop.f32.mrb[0].mxu0
      %v3634 = vadd.f32 0.0, %v3633
      %v3635 = vpop.f32.mrb[0].mxu0
      %3636 = vdwg.mxu0
      %v3653 = vunpack.c.l.b16 %v3451
      %v3654 = vunpack.c.l.b16 %v3452
      %v3655 = vunpack.c.l.b16 %v3453
      %v3656 = vunpack.c.l.b16 %v3454
      %v3657 = vunpack.c.l.b16 %v3455
      %v3658 = vunpack.c.l.b16 %v3456
      %v3659 = vunpack.c.l.b16 %v3457
      %v3660 = vunpack.c.l.b16 %v3458
      %v3661 = vunpack.c.l.b16 %v3459
      %v3662 = vunpack.c.l.b16 %v3460
      %v3663 = vunpack.c.l.b16 %v3461
      %v3664 = vunpack.c.l.b16 %v3462
      %v3665 = vunpack.c.l.b16 %v3463
      %v3666 = vunpack.c.l.b16 %v3464
      %v3667 = vunpack.c.l.b16 %v3465
      %v3668 = vunpack.c.l.b16 %v3466
      %v3669 = vpack.c.b16 %v3654, %v3653
      %v3670 = vpack.c.b16 %v3656, %v3655
      %v3671 = vpack.c.b16 %v3658, %v3657
      %v3672 = vpack.c.b16 %v3660, %v3659
      %v3673 = vpack.c.b16 %v3662, %v3661
      %v3674 = vpack.c.b16 %v3664, %v3663
      %v3675 = vpack.c.b16 %v3666, %v3665
      %v3676 = vpack.c.b16 %v3668, %v3667
      %3685 = vmatprep.subr.bf16.mxu0 0
      %3686 = vmatpush1.bf16.msra.mxu0 %v3669
      %3687 = vmatprep.subr.bf16.mxu0 0
      %3688 = vmatpush1.bf16.msra.mxu0 %v3670
      %3689 = vmatprep.subr.bf16.mxu0 0
      %3690 = vmatpush1.bf16.msra.mxu0 %v3671
      %3691 = vmatprep.subr.bf16.mxu0 0
      %3692 = vmatpush1.bf16.msra.mxu0 %v3672
      %3693 = vmatprep.subr.bf16.mxu0 0
      %3694 = vmatpush1.bf16.msra.mxu0 %v3673
      %3695 = vmatprep.subr.bf16.mxu0 0
      %3696 = vmatpush1.bf16.msra.mxu0 %v3674
      %3697 = vmatprep.subr.bf16.mxu0 0
      %3698 = vmatpush1.bf16.msra.mxu0 %v3675
      %3699 = vmatprep.subr.bf16.mxu0 0
      %3700 = vmatpush1.bf16.msra.mxu0 %v3676
      %3701 = vmatprep.subr.bf16.mxu0 0
      %3702 = vmatpush1.bf16.msra.mxu0 0
      %3703 = vmatprep.subr.bf16.mxu0 0
      %3704 = vmatpush1.bf16.msra.mxu0 0
      %3705 = vmatprep.subr.bf16.mxu0 0
      %3706 = vmatpush1.bf16.msra.mxu0 0
      %3707 = vmatprep.subr.bf16.mxu0 0
      %3708 = vmatpush1.bf16.msra.mxu0 0
      %3709 = vmatprep.subr.bf16.mxu0 0
      %3710 = vmatpush1.bf16.msra.mxu0 0
      %3711 = vmatprep.subr.bf16.mxu0 0
      %3712 = vmatpush1.bf16.msra.mxu0 0
      %3713 = vmatprep.subr.bf16.mxu0 0
      %3714 = vmatpush1.bf16.msra.mxu0 0
      %3715 = vmatprep.subr.bf16.mxu0 0
      %3716 = vmatpush1.bf16.msra.mxu0 0
      %3717 = vmatprep.mubr.bf16.mxu0 0
      %3718 = vmatmul.mubr.bf16.gmra.mrb[0].mxu0 %v245
      %v3719 = vpop.f32.mrb[0].mxu0
      %v3720 = vadd.f32 %v3575, %v3719
      %v3721 = vpop.f32.mrb[0].mxu0
      %v3722 = vpop.f32.mrb[0].mxu0
      %v3723 = vadd.f32 %v3578, %v3722
      %v3724 = vpop.f32.mrb[0].mxu0
      %3725 = vmatprep.mubr.bf16.mxu0 0
      %3726 = vmatmul.mubr.bf16.gmra.mrb[0].mxu0 %v246
      %v3727 = vpop.f32.mrb[0].mxu0
      %v3728 = vadd.f32 %v3583, %v3727
      %v3729 = vpop.f32.mrb[0].mxu0
      %v3730 = vpop.f32.mrb[0].mxu0
      %v3731 = vadd.f32 %v3586, %v3730
      %v3732 = vpop.f32.mrb[0].mxu0
      %3733 = vmatprep.mubr.bf16.mxu0 0
      %3734 = vmatmul.mubr.bf16.gmra.mrb[0].mxu0 %v247
      %v3735 = vpop.f32.mrb[0].mxu0
      %v3736 = vadd.f32 %v3591, %v3735
      %v3737 = vpop.f32.mrb[0].mxu0
      %v3738 = vpop.f32.mrb[0].mxu0
      %v3739 = vadd.f32 %v3594, %v3738
      %v3740 = vpop.f32.mrb[0].mxu0
      %3741 = vmatprep.mubr.bf16.mxu0 0
      %3742 = vmatmul.mubr.bf16.gmra.mrb[0].mxu0 %v248
      %v3743 = vpop.f32.mrb[0].mxu0
      %v3744 = vadd.f32 %v3599, %v3743
      %v3745 = vpop.f32.mrb[0].mxu0
      %v3746 = vpop.f32.mrb[0].mxu0
      %v3747 = vadd.f32 %v3602, %v3746
      %v3748 = vpop.f32.mrb[0].mxu0
      %3749 = vmatprep.mubr.bf16.mxu0 0
      %3750 = vmatmul.mubr.bf16.gmra.mrb[0].mxu0 %v249
      %v3751 = vpop.f32.mrb[0].mxu0
      %v3752 = vadd.f32 %v3607, %v3751
      %v3753 = vpop.f32.mrb[0].mxu0
      %v3754 = vpop.f32.mrb[0].mxu0
      %v3755 = vadd.f32 %v3610, %v3754
      %v3756 = vpop.f32.mrb[0].mxu0
      %3757 = vmatprep.mubr.bf16.mxu0 0
      %3758 = vmatmul.mubr.bf16.gmra.mrb[0].mxu0 %v250
      %v3759 = vpop.f32.mrb[0].mxu0
      %v3760 = vadd.f32 %v3615, %v3759
      %v3761 = vpop.f32.mrb[0].mxu0
      %v3762 = vpop.f32.mrb[0].mxu0
      %v3763 = vadd.f32 %v3618, %v3762
      %v3764 = vpop.f32.mrb[0].mxu0
      %3765 = vmatprep.mubr.bf16.mxu0 0
      %3766 = vmatmul.mubr.bf16.gmra.mrb[0].mxu0 %v251
      %v3767 = vpop.f32.mrb[0].mxu0
      %v3768 = vadd.f32 %v3623, %v3767
      %v3769 = vpop.f32.mrb[0].mxu0
      %v3770 = vpop.f32.mrb[0].mxu0
      %v3771 = vadd.f32 %v3626, %v3770
      %v3772 = vpop.f32.mrb[0].mxu0
      %3773 = vmatprep.mubr.bf16.mxu0 0
      %3774 = vmatmul.mubr.bf16.gmra.mrb[0].mxu0 %v252
      %v3775 = vpop.f32.mrb[0].mxu0
      %v3776 = vadd.f32 %v3631, %v3775
      %v3777 = vpop.f32.mrb[0].mxu0
      %v3778 = vpop.f32.mrb[0].mxu0
      %v3779 = vadd.f32 %v3634, %v3778
      %v3780 = vpop.f32.mrb[0].mxu0
      %3781 = vdwg.mxu0
      %v3782 = vmax.f32 %v3720, -10.0
      %v3783 = vmax.f32 %v3723, -10.0
      %v3784 = vmax.f32 %v3728, -10.0
      %v3785 = vmax.f32 %v3731, -10.0
      %v3786 = vmax.f32 %v3736, -10.0
      %v3787 = vmax.f32 %v3739, -10.0
      %v3788 = vmax.f32 %v3744, -10.0
      %v3789 = vmax.f32 %v3747, -10.0
      %v3790 = vmax.f32 %v3752, -10.0
      %v3791 = vmax.f32 %v3755, -10.0
      %v3792 = vmax.f32 %v3760, -10.0
      %v3793 = vmax.f32 %v3763, -10.0
      %v3794 = vmax.f32 %v3768, -10.0
      %v3795 = vmax.f32 %v3771, -10.0
      %v3796 = vmax.f32 %v3776, -10.0
      %v3797 = vmax.f32 %v3779, -10.0
      %v3798 = vmin.f32 %v3782, 10.0
      %v3799 = vmin.f32 %v3783, 10.0
      %v3800 = vmin.f32 %v3784, 10.0
      %v3801 = vmin.f32 %v3785, 10.0
      %v3802 = vmin.f32 %v3786, 10.0
      %v3803 = vmin.f32 %v3787, 10.0
      %v3804 = vmin.f32 %v3788, 10.0
      %v3805 = vmin.f32 %v3789, 10.0
      %v3806 = vmin.f32 %v3790, 10.0
      %v3807 = vmin.f32 %v3791, 10.0
      %v3808 = vmin.f32 %v3792, 10.0
      %v3809 = vmin.f32 %v3793, 10.0
      %v3810 = vmin.f32 %v3794, 10.0
      %v3811 = vmin.f32 %v3795, 10.0
      %v3812 = vmin.f32 %v3796, 10.0
      %v3813 = vmin.f32 %v3797, 10.0
      %v3814 = vmul.f32 %v3798, 0.5
      %v3815 = vmul.f32 %v3799, 0.5
      %v3816 = vmul.f32 %v3800, 0.5
      %v3817 = vmul.f32 %v3801, 0.5
      %v3818 = vmul.f32 %v3802, 0.5
      %v3819 = vmul.f32 %v3803, 0.5
      %v3820 = vmul.f32 %v3804, 0.5
      %v3821 = vmul.f32 %v3805, 0.5
      %v3822 = vmul.f32 %v3806, 0.5
      %v3823 = vmul.f32 %v3807, 0.5
      %v3824 = vmul.f32 %v3808, 0.5
      %v3825 = vmul.f32 %v3809, 0.5
      %v3826 = vmul.f32 %v3810, 0.5
      %v3827 = vmul.f32 %v3811, 0.5
      %v3828 = vmul.f32 %v3812, 0.5
      %v3829 = vmul.f32 %v3813, 0.5
      %v3830 = vtanh.pop %v3814
      %v3831 = vtanh.pop %v3815
      %v3832 = vtanh.pop %v3816
      %v3833 = vtanh.pop %v3817
      %v3834 = vtanh.pop %v3818
      %v3835 = vtanh.pop %v3819
      %v3836 = vtanh.pop %v3820
      %v3837 = vtanh.pop %v3821
      %v3838 = vtanh.pop %v3822
      %v3839 = vtanh.pop %v3823
      %v3840 = vtanh.pop %v3824
      %v3841 = vtanh.pop %v3825
      %v3842 = vtanh.pop %v3826
      %v3843 = vtanh.pop %v3827
      %v3844 = vtanh.pop %v3828
      %v3845 = vtanh.pop %v3829
      %v3846 = vand.u32 2147483647, %v3830
      %v3847 = vand.u32 2147483647, %v3831
      %v3848 = vand.u32 2147483647, %v3832
      %v3849 = vand.u32 2147483647, %v3833
      %v3850 = vand.u32 2147483647, %v3834
      %v3851 = vand.u32 2147483647, %v3835
      %v3852 = vand.u32 2147483647, %v3836
      %v3853 = vand.u32 2147483647, %v3837
      %v3854 = vand.u32 2147483647, %v3838
      %v3855 = vand.u32 2147483647, %v3839
      %v3856 = vand.u32 2147483647, %v3840
      %v3857 = vand.u32 2147483647, %v3841
      %v3858 = vand.u32 2147483647, %v3842
      %v3859 = vand.u32 2147483647, %v3843
      %v3860 = vand.u32 2147483647, %v3844
      %v3861 = vand.u32 2147483647, %v3845
      %vm3862 = vcmp.gt.f32.partialorder %v3846, 0.0
      %vm3863 = vcmp.gt.f32.partialorder %v3847, 0.0
      %vm3864 = vcmp.gt.f32.partialorder %v3848, 0.0
      %vm3865 = vcmp.gt.f32.partialorder %v3849, 0.0
      %vm3866 = vcmp.gt.f32.partialorder %v3850, 0.0
      %vm3867 = vcmp.gt.f32.partialorder %v3851, 0.0
      %vm3868 = vcmp.gt.f32.partialorder %v3852, 0.0
      %vm3869 = vcmp.gt.f32.partialorder %v3853, 0.0
      %vm3870 = vcmp.gt.f32.partialorder %v3854, 0.0
      %vm3871 = vcmp.gt.f32.partialorder %v3855, 0.0
      %vm3872 = vcmp.gt.f32.partialorder %v3856, 0.0
      %vm3873 = vcmp.gt.f32.partialorder %v3857, 0.0
      %vm3874 = vcmp.gt.f32.partialorder %v3858, 0.0
      %vm3875 = vcmp.gt.f32.partialorder %v3859, 0.0
      %vm3876 = vcmp.gt.f32.partialorder %v3860, 0.0
      %vm3877 = vcmp.gt.f32.partialorder %v3861, 0.0
      %v3878 = vsel %vm3862, 1, 0
      %v3879 = vsel %vm3863, 1, 0
      %v3880 = vsel %vm3864, 1, 0
      %v3881 = vsel %vm3865, 1, 0
      %v3882 = vsel %vm3866, 1, 0
      %v3883 = vsel %vm3867, 1, 0
      %v3884 = vsel %vm3868, 1, 0
      %v3885 = vsel %vm3869, 1, 0
      %v3886 = vsel %vm3870, 1, 0
      %v3887 = vsel %vm3871, 1, 0
      %v3888 = vsel %vm3872, 1, 0
      %v3889 = vsel %vm3873, 1, 0
      %v3890 = vsel %vm3874, 1, 0
      %v3891 = vsel %vm3875, 1, 0
      %v3892 = vsel %vm3876, 1, 0
      %v3893 = vsel %vm3877, 1, 0
      %v3894 = vcvt.s32.f32 %v3878
      %v3895 = vcvt.s32.f32 %v3879
      %v3896 = vcvt.s32.f32 %v3880
      %v3897 = vcvt.s32.f32 %v3881
      %v3898 = vcvt.s32.f32 %v3882
      %v3899 = vcvt.s32.f32 %v3883
      %v3900 = vcvt.s32.f32 %v3884
      %v3901 = vcvt.s32.f32 %v3885
      %v3902 = vcvt.s32.f32 %v3886
      %v3903 = vcvt.s32.f32 %v3887
      %v3904 = vcvt.s32.f32 %v3888
      %v3905 = vcvt.s32.f32 %v3889
      %v3906 = vcvt.s32.f32 %v3890
      %v3907 = vcvt.s32.f32 %v3891
      %v3908 = vcvt.s32.f32 %v3892
      %v3909 = vcvt.s32.f32 %v3893
      %v3910 = vsub.f32 1.0, %v3894
      %v3911 = vsub.f32 1.0, %v3895
      %v3912 = vsub.f32 1.0, %v3896
      %v3913 = vsub.f32 1.0, %v3897
      %v3914 = vsub.f32 1.0, %v3898
      %v3915 = vsub.f32 1.0, %v3899
      %v3916 = vsub.f32 1.0, %v3900
      %v3917 = vsub.f32 1.0, %v3901
      %v3918 = vsub.f32 1.0, %v3902
      %v3919 = vsub.f32 1.0, %v3903
      %v3920 = vsub.f32 1.0, %v3904
      %v3921 = vsub.f32 1.0, %v3905
      %v3922 = vsub.f32 1.0, %v3906
      %v3923 = vsub.f32 1.0, %v3907
      %v3924 = vsub.f32 1.0, %v3908
      %v3925 = vsub.f32 1.0, %v3909
      %v3926 = vadd.f32 %v3830, %v3910
      %v3927 = vadd.f32 %v3831, %v3911
      %v3928 = vadd.f32 %v3832, %v3912
      %v3929 = vadd.f32 %v3833, %v3913
      %v3930 = vadd.f32 %v3834, %v3914
      %v3931 = vadd.f32 %v3835, %v3915
      %v3932 = vadd.f32 %v3836, %v3916
      %v3933 = vadd.f32 %v3837, %v3917
      %v3934 = vadd.f32 %v3838, %v3918
      %v3935 = vadd.f32 %v3839, %v3919
      %v3936 = vadd.f32 %v3840, %v3920
      %v3937 = vadd.f32 %v3841, %v3921
      %v3938 = vadd.f32 %v3842, %v3922
      %v3939 = vadd.f32 %v3843, %v3923
      %v3940 = vadd.f32 %v3844, %v3924
      %v3941 = vadd.f32 %v3845, %v3925
      %v3942 = vand.u32 2147483647, %v3926
      %v3943 = vand.u32 2147483647, %v3927
      %v3944 = vand.u32 2147483647, %v3928
      %v3945 = vand.u32 2147483647, %v3929
      %v3946 = vand.u32 2147483647, %v3930
      %v3947 = vand.u32 2147483647, %v3931
      %v3948 = vand.u32 2147483647, %v3932
      %v3949 = vand.u32 2147483647, %v3933
      %v3950 = vand.u32 2147483647, %v3934
      %v3951 = vand.u32 2147483647, %v3935
      %v3952 = vand.u32 2147483647, %v3936
      %v3953 = vand.u32 2147483647, %v3937
      %v3954 = vand.u32 2147483647, %v3938
      %v3955 = vand.u32 2147483647, %v3939
      %v3956 = vand.u32 2147483647, %v3940
      %v3957 = vand.u32 2147483647, %v3941
      %v3958 = vlog2.pop %v3942
      %v3959 = vmul.f32 %v3958, 0.6931472
      %v3960 = vlog2.pop %v3943
      %v3961 = vmul.f32 %v3960, 0.6931472
      %v3962 = vlog2.pop %v3944
      %v3963 = vmul.f32 %v3962, 0.6931472
      %v3964 = vlog2.pop %v3945
      %v3965 = vmul.f32 %v3964, 0.6931472
      %v3966 = vlog2.pop %v3946
      %v3967 = vmul.f32 %v3966, 0.6931472
      %v3968 = vlog2.pop %v3947
      %v3969 = vmul.f32 %v3968, 0.6931472
      %v3970 = vlog2.pop %v3948
      %v3971 = vmul.f32 %v3970, 0.6931472
      %v3972 = vlog2.pop %v3949
      %v3973 = vmul.f32 %v3972, 0.6931472
      %v3974 = vlog2.pop %v3950
      %v3975 = vmul.f32 %v3974, 0.6931472
      %v3976 = vlog2.pop %v3951
      %v3977 = vmul.f32 %v3976, 0.6931472
      %v3978 = vlog2.pop %v3952
      %v3979 = vmul.f32 %v3978, 0.6931472
      %v3980 = vlog2.pop %v3953
      %v3981 = vmul.f32 %v3980, 0.6931472
      %v3982 = vlog2.pop %v3954
      %v3983 = vmul.f32 %v3982, 0.6931472
      %v3984 = vlog2.pop %v3955
      %v3985 = vmul.f32 %v3984, 0.6931472
      %v3986 = vlog2.pop %v3956
      %v3987 = vmul.f32 %v3986, 0.6931472
      %v3988 = vlog2.pop %v3957
      %v3989 = vmul.f32 %v3988, 0.6931472
      %vm3990 = vcmp.lt.f32.partialorder %v3926, 0.0
      %vm3991 = vcmp.lt.f32.partialorder %v3927, 0.0
      %vm3992 = vcmp.lt.f32.partialorder %v3928, 0.0
      %vm3993 = vcmp.lt.f32.partialorder %v3929, 0.0
      %vm3994 = vcmp.lt.f32.partialorder %v3930, 0.0
      %vm3995 = vcmp.lt.f32.partialorder %v3931, 0.0
      %vm3996 = vcmp.lt.f32.partialorder %v3932, 0.0
      %vm3997 = vcmp.lt.f32.partialorder %v3933, 0.0
      %vm3998 = vcmp.lt.f32.partialorder %v3934, 0.0
      %vm3999 = vcmp.lt.f32.partialorder %v3935, 0.0
      %vm4000 = vcmp.lt.f32.partialorder %v3936, 0.0
      %vm4001 = vcmp.lt.f32.partialorder %v3937, 0.0
      %vm4002 = vcmp.lt.f32.partialorder %v3938, 0.0
      %vm4003 = vcmp.lt.f32.partialorder %v3939, 0.0
      %vm4004 = vcmp.lt.f32.partialorder %v3940, 0.0
      %vm4005 = vcmp.lt.f32.partialorder %v3941, 0.0
      %v4006 = vsel %vm3990, 1, 0
      %v4007 = vsel %vm3991, 1, 0
      %v4008 = vsel %vm3992, 1, 0
      %v4009 = vsel %vm3993, 1, 0
      %v4010 = vsel %vm3994, 1, 0
      %v4011 = vsel %vm3995, 1, 0
      %v4012 = vsel %vm3996, 1, 0
      %v4013 = vsel %vm3997, 1, 0
      %v4014 = vsel %vm3998, 1, 0
      %v4015 = vsel %vm3999, 1, 0
      %v4016 = vsel %vm4000, 1, 0
      %v4017 = vsel %vm4001, 1, 0
      %v4018 = vsel %vm4002, 1, 0
      %v4019 = vsel %vm4003, 1, 0
      %v4020 = vsel %vm4004, 1, 0
      %v4021 = vsel %vm4005, 1, 0
      %v4022 = vcvt.s32.f32 %v4006
      %v4023 = vcvt.s32.f32 %v4007
      %v4024 = vcvt.s32.f32 %v4008
      %v4025 = vcvt.s32.f32 %v4009
      %v4026 = vcvt.s32.f32 %v4010
      %v4027 = vcvt.s32.f32 %v4011
      %v4028 = vcvt.s32.f32 %v4012
      %v4029 = vcvt.s32.f32 %v4013
      %v4030 = vcvt.s32.f32 %v4014
      %v4031 = vcvt.s32.f32 %v4015
      %v4032 = vcvt.s32.f32 %v4016
      %v4033 = vcvt.s32.f32 %v4017
      %v4034 = vcvt.s32.f32 %v4018
      %v4035 = vcvt.s32.f32 %v4019
      %v4036 = vcvt.s32.f32 %v4020
      %v4037 = vcvt.s32.f32 %v4021
      %v4038 = vpack.c.bf16 %v3961, %v3959
      %v4039 = vpack.c.bf16 %v3965, %v3963
      %v4040 = vpack.c.bf16 %v3969, %v3967
      %v4041 = vpack.c.bf16 %v3973, %v3971
      %v4042 = vpack.c.bf16 %v3977, %v3975
      %v4043 = vpack.c.bf16 %v3981, %v3979
      %v4044 = vpack.c.bf16 %v3985, %v3983
      %v4045 = vpack.c.bf16 %v3989, %v3987
      %v4046 = vpack.c.bf16 %v4023, %v4022
      %v4047 = vpack.c.bf16 %v4025, %v4024
      %v4048 = vpack.c.bf16 %v4027, %v4026
      %v4049 = vpack.c.bf16 %v4029, %v4028
      %v4050 = vpack.c.bf16 %v4031, %v4030
      %v4051 = vpack.c.bf16 %v4033, %v4032
      %v4052 = vpack.c.bf16 %v4035, %v4034
      %v4053 = vpack.c.bf16 %v4037, %v4036
      %4054 = vmatprep.subr.bf16.mxu0 0
      %4055 = vmatpush1.bf16.msra.mxu0 %v895
      %4056 = vmatprep.subr.bf16.mxu0 0
      %4057 = vmatpush1.bf16.msra.mxu0 %v896
      %4058 = vmatprep.subr.bf16.mxu0 0
      %4059 = vmatpush1.bf16.msra.mxu0 %v897
      %4060 = vmatprep.subr.bf16.mxu0 0
      %4061 = vmatpush1.bf16.msra.mxu0 %v898
      %4062 = vmatprep.subr.bf16.mxu0 0
      %4063 = vmatpush1.bf16.msra.mxu0 %v899
      %4064 = vmatprep.subr.bf16.mxu0 0
      %4065 = vmatpush1.bf16.msra.mxu0 %v900
      %4066 = vmatprep.subr.bf16.mxu0 0
      %4067 = vmatpush1.bf16.msra.mxu0 %v901
      %4068 = vmatprep.subr.bf16.mxu0 0
      %4069 = vmatpush1.bf16.msra.mxu0 %v902
      %4070 = vmatprep.subr.bf16.mxu0 0
      %4071 = vmatpush1.bf16.msra.mxu0 0
      %4072 = vmatprep.subr.bf16.mxu0 0
      %4073 = vmatpush1.bf16.msra.mxu0 0
      %4074 = vmatprep.subr.bf16.mxu0 0
      %4075 = vmatpush1.bf16.msra.mxu0 0
      %4076 = vmatprep.subr.bf16.mxu0 0
      %4077 = vmatpush1.bf16.msra.mxu0 0
      %4078 = vmatprep.subr.bf16.mxu0 0
      %4079 = vmatpush1.bf16.msra.mxu0 0
      %4080 = vmatprep.subr.bf16.mxu0 0
      %4081 = vmatpush1.bf16.msra.mxu0 0
      %4082 = vmatprep.subr.bf16.mxu0 0
      %4083 = vmatpush1.bf16.msra.mxu0 0
      %4084 = vmatprep.subr.bf16.mxu0 0
      %4085 = vmatpush1.bf16.msra.mxu0 0
      %4086 = vmatprep.mubr.bf16.mxu0 0
      %4087 = vmatmul.mubr.bf16.gmra.mrb[0].mxu0 %v4038
      %v4088 = vpop.f32.mrb[0].mxu0
      %v4089 = vadd.f32 0.0, %v4088
      %v4090 = vpop.f32.mrb[0].mxu0
      %v4091 = vpop.f32.mrb[0].mxu0
      %v4092 = vadd.f32 0.0, %v4091
      %v4093 = vpop.f32.mrb[0].mxu0
      %4094 = vmatprep.mubr.bf16.mxu0 0
      %4095 = vmatmul.mubr.bf16.gmra.mrb[0].mxu0 %v4039
      %v4096 = vpop.f32.mrb[0].mxu0
      %v4097 = vadd.f32 0.0, %v4096
      %v4098 = vpop.f32.mrb[0].mxu0
      %v4099 = vpop.f32.mrb[0].mxu0
      %v4100 = vadd.f32 0.0, %v4099
      %v4101 = vpop.f32.mrb[0].mxu0
      %4102 = vmatprep.mubr.bf16.mxu0 0
      %4103 = vmatmul.mubr.bf16.gmra.mrb[0].mxu0 %v4040
      %v4104 = vpop.f32.mrb[0].mxu0
      %v4105 = vadd.f32 0.0, %v4104
      %v4106 = vpop.f32.mrb[0].mxu0
      %v4107 = vpop.f32.mrb[0].mxu0
      %v4108 = vadd.f32 0.0, %v4107
      %v4109 = vpop.f32.mrb[0].mxu0
      %4110 = vmatprep.mubr.bf16.mxu0 0
      %4111 = vmatmul.mubr.bf16.gmra.mrb[0].mxu0 %v4041
      %v4112 = vpop.f32.mrb[0].mxu0
      %v4113 = vadd.f32 0.0, %v4112
      %v4114 = vpop.f32.mrb[0].mxu0
      %v4115 = vpop.f32.mrb[0].mxu0
      %v4116 = vadd.f32 0.0, %v4115
      %v4117 = vpop.f32.mrb[0].mxu0
      %4118 = vmatprep.mubr.bf16.mxu0 0
      %4119 = vmatmul.mubr.bf16.gmra.mrb[0].mxu0 %v4042
      %v4120 = vpop.f32.mrb[0].mxu0
      %v4121 = vadd.f32 0.0, %v4120
      %v4122 = vpop.f32.mrb[0].mxu0
      %v4123 = vpop.f32.mrb[0].mxu0
      %v4124 = vadd.f32 0.0, %v4123
      %v4125 = vpop.f32.mrb[0].mxu0
      %4126 = vmatprep.mubr.bf16.mxu0 0
      %4127 = vmatmul.mubr.bf16.gmra.mrb[0].mxu0 %v4043
      %v4128 = vpop.f32.mrb[0].mxu0
      %v4129 = vadd.f32 0.0, %v4128
      %v4130 = vpop.f32.mrb[0].mxu0
      %v4131 = vpop.f32.mrb[0].mxu0
      %v4132 = vadd.f32 0.0, %v4131
      %v4133 = vpop.f32.mrb[0].mxu0
      %4134 = vmatprep.mubr.bf16.mxu0 0
      %4135 = vmatmul.mubr.bf16.gmra.mrb[0].mxu0 %v4044
      %v4136 = vpop.f32.mrb[0].mxu0
      %v4137 = vadd.f32 0.0, %v4136
      %v4138 = vpop.f32.mrb[0].mxu0
      %v4139 = vpop.f32.mrb[0].mxu0
      %v4140 = vadd.f32 0.0, %v4139
      %v4141 = vpop.f32.mrb[0].mxu0
      %4142 = vmatprep.mubr.bf16.mxu0 0
      %4143 = vmatmul.mubr.bf16.gmra.mrb[0].mxu0 %v4045
      %v4144 = vpop.f32.mrb[0].mxu0
      %v4145 = vadd.f32 0.0, %v4144
      %v4146 = vpop.f32.mrb[0].mxu0
      %v4147 = vpop.f32.mrb[0].mxu0
      %v4148 = vadd.f32 0.0, %v4147
      %v4149 = vpop.f32.mrb[0].mxu0
      %4150 = vmatprep.mubr.bf16.mxu0 0
      %4151 = vmatmul.mubr.bf16.gmra.mrb[0].mxu0 %v4046
      %v4152 = vpop.f32.mrb[0].mxu0
      %v4153 = vadd.f32 0.0, %v4152
      %v4154 = vpop.f32.mrb[0].mxu0
      %v4155 = vpop.f32.mrb[0].mxu0
      %v4156 = vadd.f32 0.0, %v4155
      %v4157 = vpop.f32.mrb[0].mxu0
      %4158 = vmatprep.mubr.bf16.mxu0 0
      %4159 = vmatmul.mubr.bf16.gmra.mrb[0].mxu0 %v4047
      %v4160 = vpop.f32.mrb[0].mxu0
      %v4161 = vadd.f32 0.0, %v4160
      %v4162 = vpop.f32.mrb[0].mxu0
      %v4163 = vpop.f32.mrb[0].mxu0
      %v4164 = vadd.f32 0.0, %v4163
      %v4165 = vpop.f32.mrb[0].mxu0
      %4166 = vmatprep.mubr.bf16.mxu0 0
      %4167 = vmatmul.mubr.bf16.gmra.mrb[0].mxu0 %v4048
      %v4168 = vpop.f32.mrb[0].mxu0
      %v4169 = vadd.f32 0.0, %v4168
      %v4170 = vpop.f32.mrb[0].mxu0
      %v4171 = vpop.f32.mrb[0].mxu0
      %v4172 = vadd.f32 0.0, %v4171
      %v4173 = vpop.f32.mrb[0].mxu0
      %4174 = vmatprep.mubr.bf16.mxu0 0
      %4175 = vmatmul.mubr.bf16.gmra.mrb[0].mxu0 %v4049
      %v4176 = vpop.f32.mrb[0].mxu0
      %v4177 = vadd.f32 0.0, %v4176
      %v4178 = vpop.f32.mrb[0].mxu0
      %v4179 = vpop.f32.mrb[0].mxu0
      %v4180 = vadd.f32 0.0, %v4179
      %v4181 = vpop.f32.mrb[0].mxu0
      %4182 = vmatprep.mubr.bf16.mxu0 0
      %4183 = vmatmul.mubr.bf16.gmra.mrb[0].mxu0 %v4050
      %v4184 = vpop.f32.mrb[0].mxu0
      %v4185 = vadd.f32 0.0, %v4184
      %v4186 = vpop.f32.mrb[0].mxu0
      %v4187 = vpop.f32.mrb[0].mxu0
      %v4188 = vadd.f32 0.0, %v4187
      %v4189 = vpop.f32.mrb[0].mxu0
      %4190 = vmatprep.mubr.bf16.mxu0 0
      %4191 = vmatmul.mubr.bf16.gmra.mrb[0].mxu0 %v4051
      %v4192 = vpop.f32.mrb[0].mxu0
      %v4193 = vadd.f32 0.0, %v4192
      %v4194 = vpop.f32.mrb[0].mxu0
      %v4195 = vpop.f32.mrb[0].mxu0
      %v4196 = vadd.f32 0.0, %v4195
      %v4197 = vpop.f32.mrb[0].mxu0
      %4198 = vmatprep.mubr.bf16.mxu0 0
      %4199 = vmatmul.mubr.bf16.gmra.mrb[0].mxu0 %v4052
      %v4200 = vpop.f32.mrb[0].mxu0
      %v4201 = vadd.f32 0.0, %v4200
      %v4202 = vpop.f32.mrb[0].mxu0
      %v4203 = vpop.f32.mrb[0].mxu0
      %v4204 = vadd.f32 0.0, %v4203
      %v4205 = vpop.f32.mrb[0].mxu0
      %4206 = vmatprep.mubr.bf16.mxu0 0
      %4207 = vmatmul.mubr.bf16.gmra.mrb[0].mxu0 %v4053
      %v4208 = vpop.f32.mrb[0].mxu0
      %v4209 = vadd.f32 0.0, %v4208
      %v4210 = vpop.f32.mrb[0].mxu0
      %v4211 = vpop.f32.mrb[0].mxu0
      %v4212 = vadd.f32 0.0, %v4211
      %v4213 = vpop.f32.mrb[0].mxu0
      %4214 = vdwg.mxu0
      %v4215 = vmul.f32 %v4153, 0.5
      %v4216 = vmul.f32 %v4156, 0.5
      %v4217 = vmul.f32 %v4161, 0.5
      %v4218 = vmul.f32 %v4164, 0.5
      %v4219 = vmul.f32 %v4169, 0.5
      %v4220 = vmul.f32 %v4172, 0.5
      %v4221 = vmul.f32 %v4177, 0.5
      %v4222 = vmul.f32 %v4180, 0.5
      %v4223 = vmul.f32 %v4185, 0.5
      %v4224 = vmul.f32 %v4188, 0.5
      %v4225 = vmul.f32 %v4193, 0.5
      %v4226 = vmul.f32 %v4196, 0.5
      %v4227 = vmul.f32 %v4201, 0.5
      %v4228 = vmul.f32 %v4204, 0.5
      %v4229 = vmul.f32 %v4209, 0.5
      %v4230 = vmul.f32 %v4212, 0.5
      %v4231 = vfloor.f32 %v4215
      %v4232 = vfloor.f32 %v4216
      %v4233 = vfloor.f32 %v4217
      %v4234 = vfloor.f32 %v4218
      %v4235 = vfloor.f32 %v4219
      %v4236 = vfloor.f32 %v4220
      %v4237 = vfloor.f32 %v4221
      %v4238 = vfloor.f32 %v4222
      %v4239 = vfloor.f32 %v4223
      %v4240 = vfloor.f32 %v4224
      %v4241 = vfloor.f32 %v4225
      %v4242 = vfloor.f32 %v4226
      %v4243 = vfloor.f32 %v4227
      %v4244 = vfloor.f32 %v4228
      %v4245 = vfloor.f32 %v4229
      %v4246 = vfloor.f32 %v4230
      %v4247 = vmul.f32 %v4231, 2.0
      %v4248 = vmul.f32 %v4232, 2.0
      %v4249 = vmul.f32 %v4233, 2.0
      %v4250 = vmul.f32 %v4234, 2.0
      %v4251 = vmul.f32 %v4235, 2.0
      %v4252 = vmul.f32 %v4236, 2.0
      %v4253 = vmul.f32 %v4237, 2.0
      %v4254 = vmul.f32 %v4238, 2.0
      %v4255 = vmul.f32 %v4239, 2.0
      %v4256 = vmul.f32 %v4240, 2.0
      %v4257 = vmul.f32 %v4241, 2.0
      %v4258 = vmul.f32 %v4242, 2.0
      %v4259 = vmul.f32 %v4243, 2.0
      %v4260 = vmul.f32 %v4244, 2.0
      %v4261 = vmul.f32 %v4245, 2.0
      %v4262 = vmul.f32 %v4246, 2.0
      %v4263 = vsub.f32 %v4153, %v4247
      %v4264 = vsub.f32 %v4156, %v4248
      %v4265 = vsub.f32 %v4161, %v4249
      %v4266 = vsub.f32 %v4164, %v4250
      %v4267 = vsub.f32 %v4169, %v4251
      %v4268 = vsub.f32 %v4172, %v4252
      %v4269 = vsub.f32 %v4177, %v4253
      %v4270 = vsub.f32 %v4180, %v4254
      %v4271 = vsub.f32 %v4185, %v4255
      %v4272 = vsub.f32 %v4188, %v4256
      %v4273 = vsub.f32 %v4193, %v4257
      %v4274 = vsub.f32 %v4196, %v4258
      %v4275 = vsub.f32 %v4201, %v4259
      %v4276 = vsub.f32 %v4204, %v4260
      %v4277 = vsub.f32 %v4209, %v4261
      %v4278 = vsub.f32 %v4212, %v4262
      %v4279 = vmul.f32 %v4263, 2.0
      %v4280 = vmul.f32 %v4264, 2.0
      %v4281 = vmul.f32 %v4265, 2.0
      %v4282 = vmul.f32 %v4266, 2.0
      %v4283 = vmul.f32 %v4267, 2.0
      %v4284 = vmul.f32 %v4268, 2.0
      %v4285 = vmul.f32 %v4269, 2.0
      %v4286 = vmul.f32 %v4270, 2.0
      %v4287 = vmul.f32 %v4271, 2.0
      %v4288 = vmul.f32 %v4272, 2.0
      %v4289 = vmul.f32 %v4273, 2.0
      %v4290 = vmul.f32 %v4274, 2.0
      %v4291 = vmul.f32 %v4275, 2.0
      %v4292 = vmul.f32 %v4276, 2.0
      %v4293 = vmul.f32 %v4277, 2.0
      %v4294 = vmul.f32 %v4278, 2.0
      %v4295 = vsub.f32 1.0, %v4279
      %v4296 = vsub.f32 1.0, %v4280
      %v4297 = vsub.f32 1.0, %v4281
      %v4298 = vsub.f32 1.0, %v4282
      %v4299 = vsub.f32 1.0, %v4283
      %v4300 = vsub.f32 1.0, %v4284
      %v4301 = vsub.f32 1.0, %v4285
      %v4302 = vsub.f32 1.0, %v4286
      %v4303 = vsub.f32 1.0, %v4287
      %v4304 = vsub.f32 1.0, %v4288
      %v4305 = vsub.f32 1.0, %v4289
      %v4306 = vsub.f32 1.0, %v4290
      %v4307 = vsub.f32 1.0, %v4291
      %v4308 = vsub.f32 1.0, %v4292
      %v4309 = vsub.f32 1.0, %v4293
      %v4310 = vsub.f32 1.0, %v4294
      %v4311 = vmul.f32 %v4089, 1.442695
      %v4312 = vpow.pop %v4311
      %v4313 = vmul.f32 %v4092, 1.442695
      %v4314 = vpow.pop %v4313
      %v4315 = vmul.f32 %v4097, 1.442695
      %v4316 = vpow.pop %v4315
      %v4317 = vmul.f32 %v4100, 1.442695
      %v4318 = vpow.pop %v4317
      %v4319 = vmul.f32 %v4105, 1.442695
      %v4320 = vpow.pop %v4319
      %v4321 = vmul.f32 %v4108, 1.442695
      %v4322 = vpow.pop %v4321
      %v4323 = vmul.f32 %v4113, 1.442695
      %v4324 = vpow.pop %v4323
      %v4325 = vmul.f32 %v4116, 1.442695
      %v4326 = vpow.pop %v4325
      %v4327 = vmul.f32 %v4121, 1.442695
      %v4328 = vpow.pop %v4327
      %v4329 = vmul.f32 %v4124, 1.442695
      %v4330 = vpow.pop %v4329
      %v4331 = vmul.f32 %v4129, 1.442695
      %v4332 = vpow.pop %v4331
      %v4333 = vmul.f32 %v4132, 1.442695
      %v4334 = vpow.pop %v4333
      %v4335 = vmul.f32 %v4137, 1.442695
      %v4336 = vpow.pop %v4335
      %v4337 = vmul.f32 %v4140, 1.442695
      %v4338 = vpow.pop %v4337
      %v4339 = vmul.f32 %v4145, 1.442695
      %v4340 = vpow.pop %v4339
      %v4341 = vmul.f32 %v4148, 1.442695
      %v4342 = vpow.pop %v4341
      %v4343 = vmul.f32 %v4295, %v4312
      %v4344 = vmul.f32 %v4296, %v4314
      %v4345 = vmul.f32 %v4297, %v4316
      %v4346 = vmul.f32 %v4298, %v4318
      %v4347 = vmul.f32 %v4299, %v4320
      %v4348 = vmul.f32 %v4300, %v4322
      %v4349 = vmul.f32 %v4301, %v4324
      %v4350 = vmul.f32 %v4302, %v4326
      %v4351 = vmul.f32 %v4303, %v4328
      %v4352 = vmul.f32 %v4304, %v4330
      %v4353 = vmul.f32 %v4305, %v4332
      %v4354 = vmul.f32 %v4306, %v4334
      %v4355 = vmul.f32 %v4307, %v4336
      %v4356 = vmul.f32 %v4308, %v4338
      %v4357 = vmul.f32 %v4309, %v4340
      %v4358 = vmul.f32 %v4310, %v4342
      %v4359 = vmax.f32 %v4343, -0.999999
      %v4360 = vmax.f32 %v4344, -0.999999
      %v4361 = vmax.f32 %v4345, -0.999999
      %v4362 = vmax.f32 %v4346, -0.999999
      %v4363 = vmax.f32 %v4347, -0.999999
      %v4364 = vmax.f32 %v4348, -0.999999
      %v4365 = vmax.f32 %v4349, -0.999999
      %v4366 = vmax.f32 %v4350, -0.999999
      %v4367 = vmax.f32 %v4351, -0.999999
      %v4368 = vmax.f32 %v4352, -0.999999
      %v4369 = vmax.f32 %v4353, -0.999999
      %v4370 = vmax.f32 %v4354, -0.999999
      %v4371 = vmax.f32 %v4355, -0.999999
      %v4372 = vmax.f32 %v4356, -0.999999
      %v4373 = vmax.f32 %v4357, -0.999999
      %v4374 = vmax.f32 %v4358, -0.999999
      %v4375 = vmin.f32 %v4359, 0.999999
      %v4376 = vmin.f32 %v4360, 0.999999
      %v4377 = vmin.f32 %v4361, 0.999999
      %v4378 = vmin.f32 %v4362, 0.999999
      %v4379 = vmin.f32 %v4363, 0.999999
      %v4380 = vmin.f32 %v4364, 0.999999
      %v4381 = vmin.f32 %v4365, 0.999999
      %v4382 = vmin.f32 %v4366, 0.999999
      %v4383 = vmin.f32 %v4367, 0.999999
      %v4384 = vmin.f32 %v4368, 0.999999
      %v4385 = vmin.f32 %v4369, 0.999999
      %v4386 = vmin.f32 %v4370, 0.999999
      %v4387 = vmin.f32 %v4371, 0.999999
      %v4388 = vmin.f32 %v4372, 0.999999
      %v4389 = vmin.f32 %v4373, 0.999999
      %v4390 = vmin.f32 %v4374, 0.999999
      %v4391 = vadd.f32 %v4375, 1.0
      %v4392 = vadd.f32 %v4376, 1.0
      %v4393 = vadd.f32 %v4377, 1.0
      %v4394 = vadd.f32 %v4378, 1.0
      %v4395 = vadd.f32 %v4379, 1.0
      %v4396 = vadd.f32 %v4380, 1.0
      %v4397 = vadd.f32 %v4381, 1.0
      %v4398 = vadd.f32 %v4382, 1.0
      %v4399 = vadd.f32 %v4383, 1.0
      %v4400 = vadd.f32 %v4384, 1.0
      %v4401 = vadd.f32 %v4385, 1.0
      %v4402 = vadd.f32 %v4386, 1.0
      %v4403 = vadd.f32 %v4387, 1.0
      %v4404 = vadd.f32 %v4388, 1.0
      %v4405 = vadd.f32 %v4389, 1.0
      %v4406 = vadd.f32 %v4390, 1.0
      %v4407 = vsub.f32 1.0, %v4375
      %v4408 = vsub.f32 1.0, %v4376
      %v4409 = vsub.f32 1.0, %v4377
      %v4410 = vsub.f32 1.0, %v4378
      %v4411 = vsub.f32 1.0, %v4379
      %v4412 = vsub.f32 1.0, %v4380
      %v4413 = vsub.f32 1.0, %v4381
      %v4414 = vsub.f32 1.0, %v4382
      %v4415 = vsub.f32 1.0, %v4383
      %v4416 = vsub.f32 1.0, %v4384
      %v4417 = vsub.f32 1.0, %v4385
      %v4418 = vsub.f32 1.0, %v4386
      %v4419 = vsub.f32 1.0, %v4387
      %v4420 = vsub.f32 1.0, %v4388
      %v4421 = vsub.f32 1.0, %v4389
      %v4422 = vsub.f32 1.0, %v4390
      %v4423 = vrcp.pop %v4407
      %v4424 = vrcp.pop %v4408
      %v4425 = vrcp.pop %v4409
      %v4426 = vrcp.pop %v4410
      %v4427 = vrcp.pop %v4411
      %v4428 = vrcp.pop %v4412
      %v4429 = vrcp.pop %v4413
      %v4430 = vrcp.pop %v4414
      %v4431 = vrcp.pop %v4415
      %v4432 = vrcp.pop %v4416
      %v4433 = vrcp.pop %v4417
      %v4434 = vrcp.pop %v4418
      %v4435 = vrcp.pop %v4419
      %v4436 = vrcp.pop %v4420
      %v4437 = vrcp.pop %v4421
      %v4438 = vrcp.pop %v4422
      %v4439 = vmul.f32 %v4391, %v4423
      %v4440 = vmul.f32 %v4392, %v4424
      %v4441 = vmul.f32 %v4393, %v4425
      %v4442 = vmul.f32 %v4394, %v4426
      %v4443 = vmul.f32 %v4395, %v4427
      %v4444 = vmul.f32 %v4396, %v4428
      %v4445 = vmul.f32 %v4397, %v4429
      %v4446 = vmul.f32 %v4398, %v4430
      %v4447 = vmul.f32 %v4399, %v4431
      %v4448 = vmul.f32 %v4400, %v4432
      %v4449 = vmul.f32 %v4401, %v4433
      %v4450 = vmul.f32 %v4402, %v4434
      %v4451 = vmul.f32 %v4403, %v4435
      %v4452 = vmul.f32 %v4404, %v4436
      %v4453 = vmul.f32 %v4405, %v4437
      %v4454 = vmul.f32 %v4406, %v4438
      %v4455 = vlog2.pop %v4439
      %v4456 = vmul.f32 %v4455, 0.6931472
      %v4457 = vlog2.pop %v4440
      %v4458 = vmul.f32 %v4457, 0.6931472
      %v4459 = vlog2.pop %v4441
      %v4460 = vmul.f32 %v4459, 0.6931472
      %v4461 = vlog2.pop %v4442
      %v4462 = vmul.f32 %v4461, 0.6931472
      %v4463 = vlog2.pop %v4443
      %v4464 = vmul.f32 %v4463, 0.6931472
      %v4465 = vlog2.pop %v4444
      %v4466 = vmul.f32 %v4465, 0.6931472
      %v4467 = vlog2.pop %v4445
      %v4468 = vmul.f32 %v4467, 0.6931472
      %v4469 = vlog2.pop %v4446
      %v4470 = vmul.f32 %v4469, 0.6931472
      %v4471 = vlog2.pop %v4447
      %v4472 = vmul.f32 %v4471, 0.6931472
      %v4473 = vlog2.pop %v4448
      %v4474 = vmul.f32 %v4473, 0.6931472
      %v4475 = vlog2.pop %v4449
      %v4476 = vmul.f32 %v4475, 0.6931472
      %v4477 = vlog2.pop %v4450
      %v4478 = vmul.f32 %v4477, 0.6931472
      %v4479 = vlog2.pop %v4451
      %v4480 = vmul.f32 %v4479, 0.6931472
      %v4481 = vlog2.pop %v4452
      %v4482 = vmul.f32 %v4481, 0.6931472
      %v4483 = vlog2.pop %v4453
      %v4484 = vmul.f32 %v4483, 0.6931472
      %v4485 = vlog2.pop %v4454
      %v4486 = vmul.f32 %v4485, 0.6931472
      %s4487 = scalar_lea.vmem %s1, 256
      %v4488 = vld [vmem:[%s4487] sm:$0xf]
      %v4489 = vld [vmem:[%s4487 + $0x4] sm:$0xf]
      %v4490 = vld [vmem:[%s4487 + $0x8] sm:$0xf]
      %v4491 = vld [vmem:[%s4487 + $0xc] sm:$0xf]
      %v4492 = vld [vmem:[%s4487 + $0x10] sm:$0xf]
      %v4493 = vld [vmem:[%s4487 + $0x14] sm:$0xf]
      %v4494 = vld [vmem:[%s4487 + $0x18] sm:$0xf]
      %v4495 = vld [vmem:[%s4487 + $0x1c] sm:$0xf]
      %v4496 = vld [vmem:[%s4487 + $0x20] sm:$0xf]
      %v4497 = vld [vmem:[%s4487 + $0x24] sm:$0xf]
      %v4498 = vld [vmem:[%s4487 + $0x28] sm:$0xf]
      %v4499 = vld [vmem:[%s4487 + $0x2c] sm:$0xf]
      %v4500 = vld [vmem:[%s4487 + $0x30] sm:$0xf]
      %v4501 = vld [vmem:[%s4487 + $0x34] sm:$0xf]
      %v4502 = vld [vmem:[%s4487 + $0x38] sm:$0xf]
      %v4503 = vld [vmem:[%s4487 + $0x3c] sm:$0xf]
      %v4504 = vpack.c.bf16 %v4458, %v4456
      %v4505 = vpack.c.bf16 %v4462, %v4460
      %v4506 = vpack.c.bf16 %v4466, %v4464
      %v4507 = vpack.c.bf16 %v4470, %v4468
      %v4508 = vpack.c.bf16 %v4474, %v4472
      %v4509 = vpack.c.bf16 %v4478, %v4476
      %v4510 = vpack.c.bf16 %v4482, %v4480
      %v4511 = vpack.c.bf16 %v4486, %v4484
      %s4512 = scalar_lea.vmem %s2, 256
      %v4513 = vld [vmem:[%s4512] sm:$0xf]
      %v4514 = vld [vmem:[%s4512 + $0x4] sm:$0xf]
      %v4515 = vld [vmem:[%s4512 + $0x8] sm:$0xf]
      %v4516 = vld [vmem:[%s4512 + $0xc] sm:$0xf]
      %v4517 = vld [vmem:[%s4512 + $0x10] sm:$0xf]
      %v4518 = vld [vmem:[%s4512 + $0x14] sm:$0xf]
      %v4519 = vld [vmem:[%s4512 + $0x18] sm:$0xf]
      %v4520 = vld [vmem:[%s4512 + $0x1c] sm:$0xf]
      %v4521 = vld [vmem:[%s4512 + $0x20] sm:$0xf]
      %v4522 = vld [vmem:[%s4512 + $0x24] sm:$0xf]
      %v4523 = vld [vmem:[%s4512 + $0x28] sm:$0xf]
      %v4524 = vld [vmem:[%s4512 + $0x2c] sm:$0xf]
      %v4525 = vld [vmem:[%s4512 + $0x30] sm:$0xf]
      %v4526 = vld [vmem:[%s4512 + $0x34] sm:$0xf]
      %v4527 = vld [vmem:[%s4512 + $0x38] sm:$0xf]
      %v4528 = vld [vmem:[%s4512 + $0x3c] sm:$0xf]
      %v4545 = vunpack.c.l.b16 %v4513
      %v4546 = vunpack.c.l.b16 %v4514
      %v4547 = vunpack.c.l.b16 %v4515
      %v4548 = vunpack.c.l.b16 %v4516
      %v4549 = vunpack.c.l.b16 %v4517
      %v4550 = vunpack.c.l.b16 %v4518
      %v4551 = vunpack.c.l.b16 %v4519
      %v4552 = vunpack.c.l.b16 %v4520
      %v4553 = vunpack.c.l.b16 %v4521
      %v4554 = vunpack.c.l.b16 %v4522
      %v4555 = vunpack.c.l.b16 %v4523
      %v4556 = vunpack.c.l.b16 %v4524
      %v4557 = vunpack.c.l.b16 %v4525
      %v4558 = vunpack.c.l.b16 %v4526
      %v4559 = vunpack.c.l.b16 %v4527
      %v4560 = vunpack.c.l.b16 %v4528
      %v4561 = vpack.c.b16 %v4546, %v4545
      %v4562 = vpack.c.b16 %v4548, %v4547
      %v4563 = vpack.c.b16 %v4550, %v4549
      %v4564 = vpack.c.b16 %v4552, %v4551
      %v4565 = vpack.c.b16 %v4554, %v4553
      %v4566 = vpack.c.b16 %v4556, %v4555
      %v4567 = vpack.c.b16 %v4558, %v4557
      %v4568 = vpack.c.b16 %v4560, %v4559
      %4577 = vmatprep.subr.bf16.mxu0 0
      %4578 = vmatpush1.bf16.msra.mxu0 %v4561
      %4579 = vmatprep.subr.bf16.mxu0 0
      %4580 = vmatpush1.bf16.msra.mxu0 %v4562
      %4581 = vmatprep.subr.bf16.mxu0 0
      %4582 = vmatpush1.bf16.msra.mxu0 %v4563
      %4583 = vmatprep.subr.bf16.mxu0 0
      %4584 = vmatpush1.bf16.msra.mxu0 %v4564
      %4585 = vmatprep.subr.bf16.mxu0 0
      %4586 = vmatpush1.bf16.msra.mxu0 %v4565
      %4587 = vmatprep.subr.bf16.mxu0 0
      %4588 = vmatpush1.bf16.msra.mxu0 %v4566
      %4589 = vmatprep.subr.bf16.mxu0 0
      %4590 = vmatpush1.bf16.msra.mxu0 %v4567
      %4591 = vmatprep.subr.bf16.mxu0 0
      %4592 = vmatpush1.bf16.msra.mxu0 %v4568
      %4593 = vmatprep.subr.bf16.mxu0 0
      %4594 = vmatpush1.bf16.msra.mxu0 0
      %4595 = vmatprep.subr.bf16.mxu0 0
      %4596 = vmatpush1.bf16.msra.mxu0 0
      %4597 = vmatprep.subr.bf16.mxu0 0
      %4598 = vmatpush1.bf16.msra.mxu0 0
      %4599 = vmatprep.subr.bf16.mxu0 0
      %4600 = vmatpush1.bf16.msra.mxu0 0
      %4601 = vmatprep.subr.bf16.mxu0 0
      %4602 = vmatpush1.bf16.msra.mxu0 0
      %4603 = vmatprep.subr.bf16.mxu0 0
      %4604 = vmatpush1.bf16.msra.mxu0 0
      %4605 = vmatprep.subr.bf16.mxu0 0
      %4606 = vmatpush1.bf16.msra.mxu0 0
      %4607 = vmatprep.subr.bf16.mxu0 0
      %4608 = vmatpush1.bf16.msra.mxu0 0
      %4609 = vmatprep.mubr.bf16.mxu0 0
      %4610 = vmatmul.mubr.bf16.gmra.mrb[0].mxu0 %v4504
      %v4611 = vpop.f32.mrb[0].mxu0
      %v4612 = vadd.f32 0.0, %v4611
      %v4613 = vpop.f32.mrb[0].mxu0
      %v4614 = vpop.f32.mrb[0].mxu0
      %v4615 = vadd.f32 0.0, %v4614
      %v4616 = vpop.f32.mrb[0].mxu0
      %4617 = vmatprep.mubr.bf16.mxu0 0
      %4618 = vmatmul.mubr.bf16.gmra.mrb[0].mxu0 %v4505
      %v4619 = vpop.f32.mrb[0].mxu0
      %v4620 = vadd.f32 0.0, %v4619
      %v4621 = vpop.f32.mrb[0].mxu0
      %v4622 = vpop.f32.mrb[0].mxu0
      %v4623 = vadd.f32 0.0, %v4622
      %v4624 = vpop.f32.mrb[0].mxu0
      %4625 = vmatprep.mubr.bf16.mxu0 0
      %4626 = vmatmul.mubr.bf16.gmra.mrb[0].mxu0 %v4506
      %v4627 = vpop.f32.mrb[0].mxu0
      %v4628 = vadd.f32 0.0, %v4627
      %v4629 = vpop.f32.mrb[0].mxu0
      %v4630 = vpop.f32.mrb[0].mxu0
      %v4631 = vadd.f32 0.0, %v4630
      %v4632 = vpop.f32.mrb[0].mxu0
      %4633 = vmatprep.mubr.bf16.mxu0 0
      %4634 = vmatmul.mubr.bf16.gmra.mrb[0].mxu0 %v4507
      %v4635 = vpop.f32.mrb[0].mxu0
      %v4636 = vadd.f32 0.0, %v4635
      %v4637 = vpop.f32.mrb[0].mxu0
      %v4638 = vpop.f32.mrb[0].mxu0
      %v4639 = vadd.f32 0.0, %v4638
      %v4640 = vpop.f32.mrb[0].mxu0
      %4641 = vmatprep.mubr.bf16.mxu0 0
      %4642 = vmatmul.mubr.bf16.gmra.mrb[0].mxu0 %v4508
      %v4643 = vpop.f32.mrb[0].mxu0
      %v4644 = vadd.f32 0.0, %v4643
      %v4645 = vpop.f32.mrb[0].mxu0
      %v4646 = vpop.f32.mrb[0].mxu0
      %v4647 = vadd.f32 0.0, %v4646
      %v4648 = vpop.f32.mrb[0].mxu0
      %4649 = vmatprep.mubr.bf16.mxu0 0
      %4650 = vmatmul.mubr.bf16.gmra.mrb[0].mxu0 %v4509
      %v4651 = vpop.f32.mrb[0].mxu0
      %v4652 = vadd.f32 0.0, %v4651
      %v4653 = vpop.f32.mrb[0].mxu0
      %v4654 = vpop.f32.mrb[0].mxu0
      %v4655 = vadd.f32 0.0, %v4654
      %v4656 = vpop.f32.mrb[0].mxu0
      %4657 = vmatprep.mubr.bf16.mxu0 0
      %4658 = vmatmul.mubr.bf16.gmra.mrb[0].mxu0 %v4510
      %v4659 = vpop.f32.mrb[0].mxu0
      %v4660 = vadd.f32 0.0, %v4659
      %v4661 = vpop.f32.mrb[0].mxu0
      %v4662 = vpop.f32.mrb[0].mxu0
      %v4663 = vadd.f32 0.0, %v4662
      %v4664 = vpop.f32.mrb[0].mxu0
      %4665 = vmatprep.mubr.bf16.mxu0 0
      %4666 = vmatmul.mubr.bf16.gmra.mrb[0].mxu0 %v4511
      %v4667 = vpop.f32.mrb[0].mxu0
      %v4668 = vadd.f32 0.0, %v4667
      %v4669 = vpop.f32.mrb[0].mxu0
      %v4670 = vpop.f32.mrb[0].mxu0
      %v4671 = vadd.f32 0.0, %v4670
      %v4672 = vpop.f32.mrb[0].mxu0
      %4673 = vdwg.mxu0
      %v4690 = vunpack.c.l.b16 %v4488
      %v4691 = vunpack.c.l.b16 %v4489
      %v4692 = vunpack.c.l.b16 %v4490
      %v4693 = vunpack.c.l.b16 %v4491
      %v4694 = vunpack.c.l.b16 %v4492
      %v4695 = vunpack.c.l.b16 %v4493
      %v4696 = vunpack.c.l.b16 %v4494
      %v4697 = vunpack.c.l.b16 %v4495
      %v4698 = vunpack.c.l.b16 %v4496
      %v4699 = vunpack.c.l.b16 %v4497
      %v4700 = vunpack.c.l.b16 %v4498
      %v4701 = vunpack.c.l.b16 %v4499
      %v4702 = vunpack.c.l.b16 %v4500
      %v4703 = vunpack.c.l.b16 %v4501
      %v4704 = vunpack.c.l.b16 %v4502
      %v4705 = vunpack.c.l.b16 %v4503
      %v4706 = vpack.c.b16 %v4691, %v4690
      %v4707 = vpack.c.b16 %v4693, %v4692
      %v4708 = vpack.c.b16 %v4695, %v4694
      %v4709 = vpack.c.b16 %v4697, %v4696
      %v4710 = vpack.c.b16 %v4699, %v4698
      %v4711 = vpack.c.b16 %v4701, %v4700
      %v4712 = vpack.c.b16 %v4703, %v4702
      %v4713 = vpack.c.b16 %v4705, %v4704
      %4722 = vmatprep.subr.bf16.mxu0 0
      %4723 = vmatpush1.bf16.msra.mxu0 %v4706
      %4724 = vmatprep.subr.bf16.mxu0 0
      %4725 = vmatpush1.bf16.msra.mxu0 %v4707
      %4726 = vmatprep.subr.bf16.mxu0 0
      %4727 = vmatpush1.bf16.msra.mxu0 %v4708
      %4728 = vmatprep.subr.bf16.mxu0 0
      %4729 = vmatpush1.bf16.msra.mxu0 %v4709
      %4730 = vmatprep.subr.bf16.mxu0 0
      %4731 = vmatpush1.bf16.msra.mxu0 %v4710
      %4732 = vmatprep.subr.bf16.mxu0 0
      %4733 = vmatpush1.bf16.msra.mxu0 %v4711
      %4734 = vmatprep.subr.bf16.mxu0 0
      %4735 = vmatpush1.bf16.msra.mxu0 %v4712
      %4736 = vmatprep.subr.bf16.mxu0 0
      %4737 = vmatpush1.bf16.msra.mxu0 %v4713
      %4738 = vmatprep.subr.bf16.mxu0 0
      %4739 = vmatpush1.bf16.msra.mxu0 0
      %4740 = vmatprep.subr.bf16.mxu0 0
      %4741 = vmatpush1.bf16.msra.mxu0 0
      %4742 = vmatprep.subr.bf16.mxu0 0
      %4743 = vmatpush1.bf16.msra.mxu0 0
      %4744 = vmatprep.subr.bf16.mxu0 0
      %4745 = vmatpush1.bf16.msra.mxu0 0
      %4746 = vmatprep.subr.bf16.mxu0 0
      %4747 = vmatpush1.bf16.msra.mxu0 0
      %4748 = vmatprep.subr.bf16.mxu0 0
      %4749 = vmatpush1.bf16.msra.mxu0 0
      %4750 = vmatprep.subr.bf16.mxu0 0
      %4751 = vmatpush1.bf16.msra.mxu0 0
      %4752 = vmatprep.subr.bf16.mxu0 0
      %4753 = vmatpush1.bf16.msra.mxu0 0
      %4754 = vmatprep.mubr.bf16.mxu0 0
      %4755 = vmatmul.mubr.bf16.gmra.mrb[0].mxu0 %v245
      %v4756 = vpop.f32.mrb[0].mxu0
      %v4757 = vadd.f32 %v4612, %v4756
      %v4758 = vpop.f32.mrb[0].mxu0
      %v4759 = vpop.f32.mrb[0].mxu0
      %v4760 = vadd.f32 %v4615, %v4759
      %v4761 = vpop.f32.mrb[0].mxu0
      %4762 = vmatprep.mubr.bf16.mxu0 0
      %4763 = vmatmul.mubr.bf16.gmra.mrb[0].mxu0 %v246
      %v4764 = vpop.f32.mrb[0].mxu0
      %v4765 = vadd.f32 %v4620, %v4764
      %v4766 = vpop.f32.mrb[0].mxu0
      %v4767 = vpop.f32.mrb[0].mxu0
      %v4768 = vadd.f32 %v4623, %v4767
      %v4769 = vpop.f32.mrb[0].mxu0
      %4770 = vmatprep.mubr.bf16.mxu0 0
      %4771 = vmatmul.mubr.bf16.gmra.mrb[0].mxu0 %v247
      %v4772 = vpop.f32.mrb[0].mxu0
      %v4773 = vadd.f32 %v4628, %v4772
      %v4774 = vpop.f32.mrb[0].mxu0
      %v4775 = vpop.f32.mrb[0].mxu0
      %v4776 = vadd.f32 %v4631, %v4775
      %v4777 = vpop.f32.mrb[0].mxu0
      %4778 = vmatprep.mubr.bf16.mxu0 0
      %4779 = vmatmul.mubr.bf16.gmra.mrb[0].mxu0 %v248
      %v4780 = vpop.f32.mrb[0].mxu0
      %v4781 = vadd.f32 %v4636, %v4780
      %v4782 = vpop.f32.mrb[0].mxu0
      %v4783 = vpop.f32.mrb[0].mxu0
      %v4784 = vadd.f32 %v4639, %v4783
      %v4785 = vpop.f32.mrb[0].mxu0
      %4786 = vmatprep.mubr.bf16.mxu0 0
      %4787 = vmatmul.mubr.bf16.gmra.mrb[0].mxu0 %v249
      %v4788 = vpop.f32.mrb[0].mxu0
      %v4789 = vadd.f32 %v4644, %v4788
      %v4790 = vpop.f32.mrb[0].mxu0
      %v4791 = vpop.f32.mrb[0].mxu0
      %v4792 = vadd.f32 %v4647, %v4791
      %v4793 = vpop.f32.mrb[0].mxu0
      %4794 = vmatprep.mubr.bf16.mxu0 0
      %4795 = vmatmul.mubr.bf16.gmra.mrb[0].mxu0 %v250
      %v4796 = vpop.f32.mrb[0].mxu0
      %v4797 = vadd.f32 %v4652, %v4796
      %v4798 = vpop.f32.mrb[0].mxu0
      %v4799 = vpop.f32.mrb[0].mxu0
      %v4800 = vadd.f32 %v4655, %v4799
      %v4801 = vpop.f32.mrb[0].mxu0
      %4802 = vmatprep.mubr.bf16.mxu0 0
      %4803 = vmatmul.mubr.bf16.gmra.mrb[0].mxu0 %v251
      %v4804 = vpop.f32.mrb[0].mxu0
      %v4805 = vadd.f32 %v4660, %v4804
      %v4806 = vpop.f32.mrb[0].mxu0
      %v4807 = vpop.f32.mrb[0].mxu0
      %v4808 = vadd.f32 %v4663, %v4807
      %v4809 = vpop.f32.mrb[0].mxu0
      %4810 = vmatprep.mubr.bf16.mxu0 0
      %4811 = vmatmul.mubr.bf16.gmra.mrb[0].mxu0 %v252
      %v4812 = vpop.f32.mrb[0].mxu0
      %v4813 = vadd.f32 %v4668, %v4812
      %v4814 = vpop.f32.mrb[0].mxu0
      %v4815 = vpop.f32.mrb[0].mxu0
      %v4816 = vadd.f32 %v4671, %v4815
      %v4817 = vpop.f32.mrb[0].mxu0
      %4818 = vdwg.mxu0
      %v4819 = vmax.f32 %v4757, -10.0
      %v4820 = vmax.f32 %v4760, -10.0
      %v4821 = vmax.f32 %v4765, -10.0
      %v4822 = vmax.f32 %v4768, -10.0
      %v4823 = vmax.f32 %v4773, -10.0
      %v4824 = vmax.f32 %v4776, -10.0
      %v4825 = vmax.f32 %v4781, -10.0
      %v4826 = vmax.f32 %v4784, -10.0
      %v4827 = vmax.f32 %v4789, -10.0
      %v4828 = vmax.f32 %v4792, -10.0
      %v4829 = vmax.f32 %v4797, -10.0
      %v4830 = vmax.f32 %v4800, -10.0
      %v4831 = vmax.f32 %v4805, -10.0
      %v4832 = vmax.f32 %v4808, -10.0
      %v4833 = vmax.f32 %v4813, -10.0
      %v4834 = vmax.f32 %v4816, -10.0
      %v4835 = vmin.f32 %v4819, 10.0
      %v4836 = vmin.f32 %v4820, 10.0
      %v4837 = vmin.f32 %v4821, 10.0
      %v4838 = vmin.f32 %v4822, 10.0
      %v4839 = vmin.f32 %v4823, 10.0
      %v4840 = vmin.f32 %v4824, 10.0
      %v4841 = vmin.f32 %v4825, 10.0
      %v4842 = vmin.f32 %v4826, 10.0
      %v4843 = vmin.f32 %v4827, 10.0
      %v4844 = vmin.f32 %v4828, 10.0
      %v4845 = vmin.f32 %v4829, 10.0
      %v4846 = vmin.f32 %v4830, 10.0
      %v4847 = vmin.f32 %v4831, 10.0
      %v4848 = vmin.f32 %v4832, 10.0
      %v4849 = vmin.f32 %v4833, 10.0
      %v4850 = vmin.f32 %v4834, 10.0
      %v4851 = vmul.f32 %v4835, 0.5
      %v4852 = vmul.f32 %v4836, 0.5
      %v4853 = vmul.f32 %v4837, 0.5
      %v4854 = vmul.f32 %v4838, 0.5
      %v4855 = vmul.f32 %v4839, 0.5
      %v4856 = vmul.f32 %v4840, 0.5
      %v4857 = vmul.f32 %v4841, 0.5
      %v4858 = vmul.f32 %v4842, 0.5
      %v4859 = vmul.f32 %v4843, 0.5
      %v4860 = vmul.f32 %v4844, 0.5
      %v4861 = vmul.f32 %v4845, 0.5
      %v4862 = vmul.f32 %v4846, 0.5
      %v4863 = vmul.f32 %v4847, 0.5
      %v4864 = vmul.f32 %v4848, 0.5
      %v4865 = vmul.f32 %v4849, 0.5
      %v4866 = vmul.f32 %v4850, 0.5
      %v4867 = vtanh.pop %v4851
      %v4868 = vtanh.pop %v4852
      %v4869 = vtanh.pop %v4853
      %v4870 = vtanh.pop %v4854
      %v4871 = vtanh.pop %v4855
      %v4872 = vtanh.pop %v4856
      %v4873 = vtanh.pop %v4857
      %v4874 = vtanh.pop %v4858
      %v4875 = vtanh.pop %v4859
      %v4876 = vtanh.pop %v4860
      %v4877 = vtanh.pop %v4861
      %v4878 = vtanh.pop %v4862
      %v4879 = vtanh.pop %v4863
      %v4880 = vtanh.pop %v4864
      %v4881 = vtanh.pop %v4865
      %v4882 = vtanh.pop %v4866
      %v4883 = vand.u32 2147483647, %v4867
      %v4884 = vand.u32 2147483647, %v4868
      %v4885 = vand.u32 2147483647, %v4869
      %v4886 = vand.u32 2147483647, %v4870
      %v4887 = vand.u32 2147483647, %v4871
      %v4888 = vand.u32 2147483647, %v4872
      %v4889 = vand.u32 2147483647, %v4873
      %v4890 = vand.u32 2147483647, %v4874
      %v4891 = vand.u32 2147483647, %v4875
      %v4892 = vand.u32 2147483647, %v4876
      %v4893 = vand.u32 2147483647, %v4877
      %v4894 = vand.u32 2147483647, %v4878
      %v4895 = vand.u32 2147483647, %v4879
      %v4896 = vand.u32 2147483647, %v4880
      %v4897 = vand.u32 2147483647, %v4881
      %v4898 = vand.u32 2147483647, %v4882
      %vm4899 = vcmp.gt.f32.partialorder %v4883, 0.0
      %vm4900 = vcmp.gt.f32.partialorder %v4884, 0.0
      %vm4901 = vcmp.gt.f32.partialorder %v4885, 0.0
      %vm4902 = vcmp.gt.f32.partialorder %v4886, 0.0
      %vm4903 = vcmp.gt.f32.partialorder %v4887, 0.0
      %vm4904 = vcmp.gt.f32.partialorder %v4888, 0.0
      %vm4905 = vcmp.gt.f32.partialorder %v4889, 0.0
      %vm4906 = vcmp.gt.f32.partialorder %v4890, 0.0
      %vm4907 = vcmp.gt.f32.partialorder %v4891, 0.0
      %vm4908 = vcmp.gt.f32.partialorder %v4892, 0.0
      %vm4909 = vcmp.gt.f32.partialorder %v4893, 0.0
      %vm4910 = vcmp.gt.f32.partialorder %v4894, 0.0
      %vm4911 = vcmp.gt.f32.partialorder %v4895, 0.0
      %vm4912 = vcmp.gt.f32.partialorder %v4896, 0.0
      %vm4913 = vcmp.gt.f32.partialorder %v4897, 0.0
      %vm4914 = vcmp.gt.f32.partialorder %v4898, 0.0
      %v4915 = vsel %vm4899, 1, 0
      %v4916 = vsel %vm4900, 1, 0
      %v4917 = vsel %vm4901, 1, 0
      %v4918 = vsel %vm4902, 1, 0
      %v4919 = vsel %vm4903, 1, 0
      %v4920 = vsel %vm4904, 1, 0
      %v4921 = vsel %vm4905, 1, 0
      %v4922 = vsel %vm4906, 1, 0
      %v4923 = vsel %vm4907, 1, 0
      %v4924 = vsel %vm4908, 1, 0
      %v4925 = vsel %vm4909, 1, 0
      %v4926 = vsel %vm4910, 1, 0
      %v4927 = vsel %vm4911, 1, 0
      %v4928 = vsel %vm4912, 1, 0
      %v4929 = vsel %vm4913, 1, 0
      %v4930 = vsel %vm4914, 1, 0
      %v4931 = vcvt.s32.f32 %v4915
      %v4932 = vcvt.s32.f32 %v4916
      %v4933 = vcvt.s32.f32 %v4917
      %v4934 = vcvt.s32.f32 %v4918
      %v4935 = vcvt.s32.f32 %v4919
      %v4936 = vcvt.s32.f32 %v4920
      %v4937 = vcvt.s32.f32 %v4921
      %v4938 = vcvt.s32.f32 %v4922
      %v4939 = vcvt.s32.f32 %v4923
      %v4940 = vcvt.s32.f32 %v4924
      %v4941 = vcvt.s32.f32 %v4925
      %v4942 = vcvt.s32.f32 %v4926
      %v4943 = vcvt.s32.f32 %v4927
      %v4944 = vcvt.s32.f32 %v4928
      %v4945 = vcvt.s32.f32 %v4929
      %v4946 = vcvt.s32.f32 %v4930
      %v4947 = vsub.f32 1.0, %v4931
      %v4948 = vsub.f32 1.0, %v4932
      %v4949 = vsub.f32 1.0, %v4933
      %v4950 = vsub.f32 1.0, %v4934
      %v4951 = vsub.f32 1.0, %v4935
      %v4952 = vsub.f32 1.0, %v4936
      %v4953 = vsub.f32 1.0, %v4937
      %v4954 = vsub.f32 1.0, %v4938
      %v4955 = vsub.f32 1.0, %v4939
      %v4956 = vsub.f32 1.0, %v4940
      %v4957 = vsub.f32 1.0, %v4941
      %v4958 = vsub.f32 1.0, %v4942
      %v4959 = vsub.f32 1.0, %v4943
      %v4960 = vsub.f32 1.0, %v4944
      %v4961 = vsub.f32 1.0, %v4945
      %v4962 = vsub.f32 1.0, %v4946
      %v4963 = vadd.f32 %v4867, %v4947
      %v4964 = vadd.f32 %v4868, %v4948
      %v4965 = vadd.f32 %v4869, %v4949
      %v4966 = vadd.f32 %v4870, %v4950
      %v4967 = vadd.f32 %v4871, %v4951
      %v4968 = vadd.f32 %v4872, %v4952
      %v4969 = vadd.f32 %v4873, %v4953
      %v4970 = vadd.f32 %v4874, %v4954
      %v4971 = vadd.f32 %v4875, %v4955
      %v4972 = vadd.f32 %v4876, %v4956
      %v4973 = vadd.f32 %v4877, %v4957
      %v4974 = vadd.f32 %v4878, %v4958
      %v4975 = vadd.f32 %v4879, %v4959
      %v4976 = vadd.f32 %v4880, %v4960
      %v4977 = vadd.f32 %v4881, %v4961
      %v4978 = vadd.f32 %v4882, %v4962
      %v4979 = vand.u32 2147483647, %v4963
      %v4980 = vand.u32 2147483647, %v4964
      %v4981 = vand.u32 2147483647, %v4965
      %v4982 = vand.u32 2147483647, %v4966
      %v4983 = vand.u32 2147483647, %v4967
      %v4984 = vand.u32 2147483647, %v4968
      %v4985 = vand.u32 2147483647, %v4969
      %v4986 = vand.u32 2147483647, %v4970
      %v4987 = vand.u32 2147483647, %v4971
      %v4988 = vand.u32 2147483647, %v4972
      %v4989 = vand.u32 2147483647, %v4973
      %v4990 = vand.u32 2147483647, %v4974
      %v4991 = vand.u32 2147483647, %v4975
      %v4992 = vand.u32 2147483647, %v4976
      %v4993 = vand.u32 2147483647, %v4977
      %v4994 = vand.u32 2147483647, %v4978
      %v4995 = vlog2.pop %v4979
      %v4996 = vmul.f32 %v4995, 0.6931472
      %v4997 = vlog2.pop %v4980
      %v4998 = vmul.f32 %v4997, 0.6931472
      %v4999 = vlog2.pop %v4981
      %v5000 = vmul.f32 %v4999, 0.6931472
      %v5001 = vlog2.pop %v4982
      %v5002 = vmul.f32 %v5001, 0.6931472
      %v5003 = vlog2.pop %v4983
      %v5004 = vmul.f32 %v5003, 0.6931472
      %v5005 = vlog2.pop %v4984
      %v5006 = vmul.f32 %v5005, 0.6931472
      %v5007 = vlog2.pop %v4985
      %v5008 = vmul.f32 %v5007, 0.6931472
      %v5009 = vlog2.pop %v4986
      %v5010 = vmul.f32 %v5009, 0.6931472
      %v5011 = vlog2.pop %v4987
      %v5012 = vmul.f32 %v5011, 0.6931472
      %v5013 = vlog2.pop %v4988
      %v5014 = vmul.f32 %v5013, 0.6931472
      %v5015 = vlog2.pop %v4989
      %v5016 = vmul.f32 %v5015, 0.6931472
      %v5017 = vlog2.pop %v4990
      %v5018 = vmul.f32 %v5017, 0.6931472
      %v5019 = vlog2.pop %v4991
      %v5020 = vmul.f32 %v5019, 0.6931472
      %v5021 = vlog2.pop %v4992
      %v5022 = vmul.f32 %v5021, 0.6931472
      %v5023 = vlog2.pop %v4993
      %v5024 = vmul.f32 %v5023, 0.6931472
      %v5025 = vlog2.pop %v4994
      %v5026 = vmul.f32 %v5025, 0.6931472
      %vm5027 = vcmp.lt.f32.partialorder %v4963, 0.0
      %vm5028 = vcmp.lt.f32.partialorder %v4964, 0.0
      %vm5029 = vcmp.lt.f32.partialorder %v4965, 0.0
      %vm5030 = vcmp.lt.f32.partialorder %v4966, 0.0
      %vm5031 = vcmp.lt.f32.partialorder %v4967, 0.0
      %vm5032 = vcmp.lt.f32.partialorder %v4968, 0.0
      %vm5033 = vcmp.lt.f32.partialorder %v4969, 0.0
      %vm5034 = vcmp.lt.f32.partialorder %v4970, 0.0
      %vm5035 = vcmp.lt.f32.partialorder %v4971, 0.0
      %vm5036 = vcmp.lt.f32.partialorder %v4972, 0.0
      %vm5037 = vcmp.lt.f32.partialorder %v4973, 0.0
      %vm5038 = vcmp.lt.f32.partialorder %v4974, 0.0
      %vm5039 = vcmp.lt.f32.partialorder %v4975, 0.0
      %vm5040 = vcmp.lt.f32.partialorder %v4976, 0.0
      %vm5041 = vcmp.lt.f32.partialorder %v4977, 0.0
      %vm5042 = vcmp.lt.f32.partialorder %v4978, 0.0
      %v5043 = vsel %vm5027, 1, 0
      %v5044 = vsel %vm5028, 1, 0
      %v5045 = vsel %vm5029, 1, 0
      %v5046 = vsel %vm5030, 1, 0
      %v5047 = vsel %vm5031, 1, 0
      %v5048 = vsel %vm5032, 1, 0
      %v5049 = vsel %vm5033, 1, 0
      %v5050 = vsel %vm5034, 1, 0
      %v5051 = vsel %vm5035, 1, 0
      %v5052 = vsel %vm5036, 1, 0
      %v5053 = vsel %vm5037, 1, 0
      %v5054 = vsel %vm5038, 1, 0
      %v5055 = vsel %vm5039, 1, 0
      %v5056 = vsel %vm5040, 1, 0
      %v5057 = vsel %vm5041, 1, 0
      %v5058 = vsel %vm5042, 1, 0
      %v5059 = vcvt.s32.f32 %v5043
      %v5060 = vcvt.s32.f32 %v5044
      %v5061 = vcvt.s32.f32 %v5045
      %v5062 = vcvt.s32.f32 %v5046
      %v5063 = vcvt.s32.f32 %v5047
      %v5064 = vcvt.s32.f32 %v5048
      %v5065 = vcvt.s32.f32 %v5049
      %v5066 = vcvt.s32.f32 %v5050
      %v5067 = vcvt.s32.f32 %v5051
      %v5068 = vcvt.s32.f32 %v5052
      %v5069 = vcvt.s32.f32 %v5053
      %v5070 = vcvt.s32.f32 %v5054
      %v5071 = vcvt.s32.f32 %v5055
      %v5072 = vcvt.s32.f32 %v5056
      %v5073 = vcvt.s32.f32 %v5057
      %v5074 = vcvt.s32.f32 %v5058
      %v5075 = vpack.c.bf16 %v4998, %v4996
      %v5076 = vpack.c.bf16 %v5002, %v5000
      %v5077 = vpack.c.bf16 %v5006, %v5004
      %v5078 = vpack.c.bf16 %v5010, %v5008
      %v5079 = vpack.c.bf16 %v5014, %v5012
      %v5080 = vpack.c.bf16 %v5018, %v5016
      %v5081 = vpack.c.bf16 %v5022, %v5020
      %v5082 = vpack.c.bf16 %v5026, %v5024
      %v5083 = vpack.c.bf16 %v5060, %v5059
      %v5084 = vpack.c.bf16 %v5062, %v5061
      %v5085 = vpack.c.bf16 %v5064, %v5063
      %v5086 = vpack.c.bf16 %v5066, %v5065
      %v5087 = vpack.c.bf16 %v5068, %v5067
      %v5088 = vpack.c.bf16 %v5070, %v5069
      %v5089 = vpack.c.bf16 %v5072, %v5071
      %v5090 = vpack.c.bf16 %v5074, %v5073
      %5091 = vmatprep.subr.bf16.mxu0 0
      %5092 = vmatpush1.bf16.msra.mxu0 %v895
      %5093 = vmatprep.subr.bf16.mxu0 0
      %5094 = vmatpush1.bf16.msra.mxu0 %v896
      %5095 = vmatprep.subr.bf16.mxu0 0
      %5096 = vmatpush1.bf16.msra.mxu0 %v897
      %5097 = vmatprep.subr.bf16.mxu0 0
      %5098 = vmatpush1.bf16.msra.mxu0 %v898
      %5099 = vmatprep.subr.bf16.mxu0 0
      %5100 = vmatpush1.bf16.msra.mxu0 %v899
      %5101 = vmatprep.subr.bf16.mxu0 0
      %5102 = vmatpush1.bf16.msra.mxu0 %v900
      %5103 = vmatprep.subr.bf16.mxu0 0
      %5104 = vmatpush1.bf16.msra.mxu0 %v901
      %5105 = vmatprep.subr.bf16.mxu0 0
      %5106 = vmatpush1.bf16.msra.mxu0 %v902
      %5107 = vmatprep.subr.bf16.mxu0 0
      %5108 = vmatpush1.bf16.msra.mxu0 0
      %5109 = vmatprep.subr.bf16.mxu0 0
      %5110 = vmatpush1.bf16.msra.mxu0 0
      %5111 = vmatprep.subr.bf16.mxu0 0
      %5112 = vmatpush1.bf16.msra.mxu0 0
      %5113 = vmatprep.subr.bf16.mxu0 0
      %5114 = vmatpush1.bf16.msra.mxu0 0
      %5115 = vmatprep.subr.bf16.mxu0 0
      %5116 = vmatpush1.bf16.msra.mxu0 0
      %5117 = vmatprep.subr.bf16.mxu0 0
      %5118 = vmatpush1.bf16.msra.mxu0 0
      %5119 = vmatprep.subr.bf16.mxu0 0
      %5120 = vmatpush1.bf16.msra.mxu0 0
      %5121 = vmatprep.subr.bf16.mxu0 0
      %5122 = vmatpush1.bf16.msra.mxu0 0
      %5123 = vmatprep.mubr.bf16.mxu0 0
      %5124 = vmatmul.mubr.bf16.gmra.mrb[0].mxu0 %v5075
      %v5125 = vpop.f32.mrb[0].mxu0
      %v5126 = vadd.f32 0.0, %v5125
      %v5127 = vpop.f32.mrb[0].mxu0
      %v5128 = vpop.f32.mrb[0].mxu0
      %v5129 = vadd.f32 0.0, %v5128
      %v5130 = vpop.f32.mrb[0].mxu0
      %5131 = vmatprep.mubr.bf16.mxu0 0
      %5132 = vmatmul.mubr.bf16.gmra.mrb[0].mxu0 %v5076
      %v5133 = vpop.f32.mrb[0].mxu0
      %v5134 = vadd.f32 0.0, %v5133
      %v5135 = vpop.f32.mrb[0].mxu0
      %v5136 = vpop.f32.mrb[0].mxu0
      %v5137 = vadd.f32 0.0, %v5136
      %v5138 = vpop.f32.mrb[0].mxu0
      %5139 = vmatprep.mubr.bf16.mxu0 0
      %5140 = vmatmul.mubr.bf16.gmra.mrb[0].mxu0 %v5077
      %v5141 = vpop.f32.mrb[0].mxu0
      %v5142 = vadd.f32 0.0, %v5141
      %v5143 = vpop.f32.mrb[0].mxu0
      %v5144 = vpop.f32.mrb[0].mxu0
      %v5145 = vadd.f32 0.0, %v5144
      %v5146 = vpop.f32.mrb[0].mxu0
      %5147 = vmatprep.mubr.bf16.mxu0 0
      %5148 = vmatmul.mubr.bf16.gmra.mrb[0].mxu0 %v5078
      %v5149 = vpop.f32.mrb[0].mxu0
      %v5150 = vadd.f32 0.0, %v5149
      %v5151 = vpop.f32.mrb[0].mxu0
      %v5152 = vpop.f32.mrb[0].mxu0
      %v5153 = vadd.f32 0.0, %v5152
      %v5154 = vpop.f32.mrb[0].mxu0
      %5155 = vmatprep.mubr.bf16.mxu0 0
      %5156 = vmatmul.mubr.bf16.gmra.mrb[0].mxu0 %v5079
      %v5157 = vpop.f32.mrb[0].mxu0
      %v5158 = vadd.f32 0.0, %v5157
      %v5159 = vpop.f32.mrb[0].mxu0
      %v5160 = vpop.f32.mrb[0].mxu0
      %v5161 = vadd.f32 0.0, %v5160
      %v5162 = vpop.f32.mrb[0].mxu0
      %5163 = vmatprep.mubr.bf16.mxu0 0
      %5164 = vmatmul.mubr.bf16.gmra.mrb[0].mxu0 %v5080
      %v5165 = vpop.f32.mrb[0].mxu0
      %v5166 = vadd.f32 0.0, %v5165
      %v5167 = vpop.f32.mrb[0].mxu0
      %v5168 = vpop.f32.mrb[0].mxu0
      %v5169 = vadd.f32 0.0, %v5168
      %v5170 = vpop.f32.mrb[0].mxu0
      %5171 = vmatprep.mubr.bf16.mxu0 0
      %5172 = vmatmul.mubr.bf16.gmra.mrb[0].mxu0 %v5081
      %v5173 = vpop.f32.mrb[0].mxu0
      %v5174 = vadd.f32 0.0, %v5173
      %v5175 = vpop.f32.mrb[0].mxu0
      %v5176 = vpop.f32.mrb[0].mxu0
      %v5177 = vadd.f32 0.0, %v5176
      %v5178 = vpop.f32.mrb[0].mxu0
      %5179 = vmatprep.mubr.bf16.mxu0 0
      %5180 = vmatmul.mubr.bf16.gmra.mrb[0].mxu0 %v5082
      %v5181 = vpop.f32.mrb[0].mxu0
      %v5182 = vadd.f32 0.0, %v5181
      %v5183 = vpop.f32.mrb[0].mxu0
      %v5184 = vpop.f32.mrb[0].mxu0
      %v5185 = vadd.f32 0.0, %v5184
      %v5186 = vpop.f32.mrb[0].mxu0
      %5187 = vmatprep.mubr.bf16.mxu0 0
      %5188 = vmatmul.mubr.bf16.gmra.mrb[0].mxu0 %v5083
      %v5189 = vpop.f32.mrb[0].mxu0
      %v5190 = vadd.f32 0.0, %v5189
      %v5191 = vpop.f32.mrb[0].mxu0
      %v5192 = vpop.f32.mrb[0].mxu0
      %v5193 = vadd.f32 0.0, %v5192
      %v5194 = vpop.f32.mrb[0].mxu0
      %5195 = vmatprep.mubr.bf16.mxu0 0
      %5196 = vmatmul.mubr.bf16.gmra.mrb[0].mxu0 %v5084
      %v5197 = vpop.f32.mrb[0].mxu0
      %v5198 = vadd.f32 0.0, %v5197
      %v5199 = vpop.f32.mrb[0].mxu0
      %v5200 = vpop.f32.mrb[0].mxu0
      %v5201 = vadd.f32 0.0, %v5200
      %v5202 = vpop.f32.mrb[0].mxu0
      %5203 = vmatprep.mubr.bf16.mxu0 0
      %5204 = vmatmul.mubr.bf16.gmra.mrb[0].mxu0 %v5085
      %v5205 = vpop.f32.mrb[0].mxu0
      %v5206 = vadd.f32 0.0, %v5205
      %v5207 = vpop.f32.mrb[0].mxu0
      %v5208 = vpop.f32.mrb[0].mxu0
      %v5209 = vadd.f32 0.0, %v5208
      %v5210 = vpop.f32.mrb[0].mxu0
      %5211 = vmatprep.mubr.bf16.mxu0 0
      %5212 = vmatmul.mubr.bf16.gmra.mrb[0].mxu0 %v5086
      %v5213 = vpop.f32.mrb[0].mxu0
      %v5214 = vadd.f32 0.0, %v5213
      %v5215 = vpop.f32.mrb[0].mxu0
      %v5216 = vpop.f32.mrb[0].mxu0
      %v5217 = vadd.f32 0.0, %v5216
      %v5218 = vpop.f32.mrb[0].mxu0
      %5219 = vmatprep.mubr.bf16.mxu0 0
      %5220 = vmatmul.mubr.bf16.gmra.mrb[0].mxu0 %v5087
      %v5221 = vpop.f32.mrb[0].mxu0
      %v5222 = vadd.f32 0.0, %v5221
      %v5223 = vpop.f32.mrb[0].mxu0
      %v5224 = vpop.f32.mrb[0].mxu0
      %v5225 = vadd.f32 0.0, %v5224
      %v5226 = vpop.f32.mrb[0].mxu0
      %5227 = vmatprep.mubr.bf16.mxu0 0
      %5228 = vmatmul.mubr.bf16.gmra.mrb[0].mxu0 %v5088
      %v5229 = vpop.f32.mrb[0].mxu0
      %v5230 = vadd.f32 0.0, %v5229
      %v5231 = vpop.f32.mrb[0].mxu0
      %v5232 = vpop.f32.mrb[0].mxu0
      %v5233 = vadd.f32 0.0, %v5232
      %v5234 = vpop.f32.mrb[0].mxu0
      %5235 = vmatprep.mubr.bf16.mxu0 0
      %5236 = vmatmul.mubr.bf16.gmra.mrb[0].mxu0 %v5089
      %v5237 = vpop.f32.mrb[0].mxu0
      %v5238 = vadd.f32 0.0, %v5237
      %v5239 = vpop.f32.mrb[0].mxu0
      %v5240 = vpop.f32.mrb[0].mxu0
      %v5241 = vadd.f32 0.0, %v5240
      %v5242 = vpop.f32.mrb[0].mxu0
      %5243 = vmatprep.mubr.bf16.mxu0 0
      %5244 = vmatmul.mubr.bf16.gmra.mrb[0].mxu0 %v5090
      %v5245 = vpop.f32.mrb[0].mxu0
      %v5246 = vadd.f32 0.0, %v5245
      %v5247 = vpop.f32.mrb[0].mxu0
      %v5248 = vpop.f32.mrb[0].mxu0
      %v5249 = vadd.f32 0.0, %v5248
      %v5250 = vpop.f32.mrb[0].mxu0
      %5251 = vdwg.mxu0
      %v5252 = vmul.f32 %v5190, 0.5
      %v5253 = vmul.f32 %v5193, 0.5
      %v5254 = vmul.f32 %v5198, 0.5
      %v5255 = vmul.f32 %v5201, 0.5
      %v5256 = vmul.f32 %v5206, 0.5
      %v5257 = vmul.f32 %v5209, 0.5
      %v5258 = vmul.f32 %v5214, 0.5
      %v5259 = vmul.f32 %v5217, 0.5
      %v5260 = vmul.f32 %v5222, 0.5
      %v5261 = vmul.f32 %v5225, 0.5
      %v5262 = vmul.f32 %v5230, 0.5
      %v5263 = vmul.f32 %v5233, 0.5
      %v5264 = vmul.f32 %v5238, 0.5
      %v5265 = vmul.f32 %v5241, 0.5
      %v5266 = vmul.f32 %v5246, 0.5
      %v5267 = vmul.f32 %v5249, 0.5
      %v5268 = vfloor.f32 %v5252
      %v5269 = vfloor.f32 %v5253
      %v5270 = vfloor.f32 %v5254
      %v5271 = vfloor.f32 %v5255
      %v5272 = vfloor.f32 %v5256
      %v5273 = vfloor.f32 %v5257
      %v5274 = vfloor.f32 %v5258
      %v5275 = vfloor.f32 %v5259
      %v5276 = vfloor.f32 %v5260
      %v5277 = vfloor.f32 %v5261
      %v5278 = vfloor.f32 %v5262
      %v5279 = vfloor.f32 %v5263
      %v5280 = vfloor.f32 %v5264
      %v5281 = vfloor.f32 %v5265
      %v5282 = vfloor.f32 %v5266
      %v5283 = vfloor.f32 %v5267
      %v5284 = vmul.f32 %v5268, 2.0
      %v5285 = vmul.f32 %v5269, 2.0
      %v5286 = vmul.f32 %v5270, 2.0
      %v5287 = vmul.f32 %v5271, 2.0
      %v5288 = vmul.f32 %v5272, 2.0
      %v5289 = vmul.f32 %v5273, 2.0
      %v5290 = vmul.f32 %v5274, 2.0
      %v5291 = vmul.f32 %v5275, 2.0
      %v5292 = vmul.f32 %v5276, 2.0
      %v5293 = vmul.f32 %v5277, 2.0
      %v5294 = vmul.f32 %v5278, 2.0
      %v5295 = vmul.f32 %v5279, 2.0
      %v5296 = vmul.f32 %v5280, 2.0
      %v5297 = vmul.f32 %v5281, 2.0
      %v5298 = vmul.f32 %v5282, 2.0
      %v5299 = vmul.f32 %v5283, 2.0
      %v5300 = vsub.f32 %v5190, %v5284
      %v5301 = vsub.f32 %v5193, %v5285
      %v5302 = vsub.f32 %v5198, %v5286
      %v5303 = vsub.f32 %v5201, %v5287
      %v5304 = vsub.f32 %v5206, %v5288
      %v5305 = vsub.f32 %v5209, %v5289
      %v5306 = vsub.f32 %v5214, %v5290
      %v5307 = vsub.f32 %v5217, %v5291
      %v5308 = vsub.f32 %v5222, %v5292
      %v5309 = vsub.f32 %v5225, %v5293
      %v5310 = vsub.f32 %v5230, %v5294
      %v5311 = vsub.f32 %v5233, %v5295
      %v5312 = vsub.f32 %v5238, %v5296
      %v5313 = vsub.f32 %v5241, %v5297
      %v5314 = vsub.f32 %v5246, %v5298
      %v5315 = vsub.f32 %v5249, %v5299
      %v5316 = vmul.f32 %v5300, 2.0
      %v5317 = vmul.f32 %v5301, 2.0
      %v5318 = vmul.f32 %v5302, 2.0
      %v5319 = vmul.f32 %v5303, 2.0
      %v5320 = vmul.f32 %v5304, 2.0
      %v5321 = vmul.f32 %v5305, 2.0
      %v5322 = vmul.f32 %v5306, 2.0
      %v5323 = vmul.f32 %v5307, 2.0
      %v5324 = vmul.f32 %v5308, 2.0
      %v5325 = vmul.f32 %v5309, 2.0
      %v5326 = vmul.f32 %v5310, 2.0
      %v5327 = vmul.f32 %v5311, 2.0
      %v5328 = vmul.f32 %v5312, 2.0
      %v5329 = vmul.f32 %v5313, 2.0
      %v5330 = vmul.f32 %v5314, 2.0
      %v5331 = vmul.f32 %v5315, 2.0
      %v5332 = vsub.f32 1.0, %v5316
      %v5333 = vsub.f32 1.0, %v5317
      %v5334 = vsub.f32 1.0, %v5318
      %v5335 = vsub.f32 1.0, %v5319
      %v5336 = vsub.f32 1.0, %v5320
      %v5337 = vsub.f32 1.0, %v5321
      %v5338 = vsub.f32 1.0, %v5322
      %v5339 = vsub.f32 1.0, %v5323
      %v5340 = vsub.f32 1.0, %v5324
      %v5341 = vsub.f32 1.0, %v5325
      %v5342 = vsub.f32 1.0, %v5326
      %v5343 = vsub.f32 1.0, %v5327
      %v5344 = vsub.f32 1.0, %v5328
      %v5345 = vsub.f32 1.0, %v5329
      %v5346 = vsub.f32 1.0, %v5330
      %v5347 = vsub.f32 1.0, %v5331
      %v5348 = vmul.f32 %v5126, 1.442695
      %v5349 = vpow.pop %v5348
      %v5350 = vmul.f32 %v5129, 1.442695
      %v5351 = vpow.pop %v5350
      %v5352 = vmul.f32 %v5134, 1.442695
      %v5353 = vpow.pop %v5352
      %v5354 = vmul.f32 %v5137, 1.442695
      %v5355 = vpow.pop %v5354
      %v5356 = vmul.f32 %v5142, 1.442695
      %v5357 = vpow.pop %v5356
      %v5358 = vmul.f32 %v5145, 1.442695
      %v5359 = vpow.pop %v5358
      %v5360 = vmul.f32 %v5150, 1.442695
      %v5361 = vpow.pop %v5360
      %v5362 = vmul.f32 %v5153, 1.442695
      %v5363 = vpow.pop %v5362
      %v5364 = vmul.f32 %v5158, 1.442695
      %v5365 = vpow.pop %v5364
      %v5366 = vmul.f32 %v5161, 1.442695
      %v5367 = vpow.pop %v5366
      %v5368 = vmul.f32 %v5166, 1.442695
      %v5369 = vpow.pop %v5368
      %v5370 = vmul.f32 %v5169, 1.442695
      %v5371 = vpow.pop %v5370
      %v5372 = vmul.f32 %v5174, 1.442695
      %v5373 = vpow.pop %v5372
      %v5374 = vmul.f32 %v5177, 1.442695
      %v5375 = vpow.pop %v5374
      %v5376 = vmul.f32 %v5182, 1.442695
      %v5377 = vpow.pop %v5376
      %v5378 = vmul.f32 %v5185, 1.442695
      %v5379 = vpow.pop %v5378
      %v5380 = vmul.f32 %v5332, %v5349
      %v5381 = vmul.f32 %v5333, %v5351
      %v5382 = vmul.f32 %v5334, %v5353
      %v5383 = vmul.f32 %v5335, %v5355
      %v5384 = vmul.f32 %v5336, %v5357
      %v5385 = vmul.f32 %v5337, %v5359
      %v5386 = vmul.f32 %v5338, %v5361
      %v5387 = vmul.f32 %v5339, %v5363
      %v5388 = vmul.f32 %v5340, %v5365
      %v5389 = vmul.f32 %v5341, %v5367
      %v5390 = vmul.f32 %v5342, %v5369
      %v5391 = vmul.f32 %v5343, %v5371
      %v5392 = vmul.f32 %v5344, %v5373
      %v5393 = vmul.f32 %v5345, %v5375
      %v5394 = vmul.f32 %v5346, %v5377
      %v5395 = vmul.f32 %v5347, %v5379
      %v5396 = vmax.f32 %v5380, -0.999999
      %v5397 = vmax.f32 %v5381, -0.999999
      %v5398 = vmax.f32 %v5382, -0.999999
      %v5399 = vmax.f32 %v5383, -0.999999
      %v5400 = vmax.f32 %v5384, -0.999999
      %v5401 = vmax.f32 %v5385, -0.999999
      %v5402 = vmax.f32 %v5386, -0.999999
      %v5403 = vmax.f32 %v5387, -0.999999
      %v5404 = vmax.f32 %v5388, -0.999999
      %v5405 = vmax.f32 %v5389, -0.999999
      %v5406 = vmax.f32 %v5390, -0.999999
      %v5407 = vmax.f32 %v5391, -0.999999
      %v5408 = vmax.f32 %v5392, -0.999999
      %v5409 = vmax.f32 %v5393, -0.999999
      %v5410 = vmax.f32 %v5394, -0.999999
      %v5411 = vmax.f32 %v5395, -0.999999
      %v5412 = vmin.f32 %v5396, 0.999999
      %v5413 = vmin.f32 %v5397, 0.999999
      %v5414 = vmin.f32 %v5398, 0.999999
      %v5415 = vmin.f32 %v5399, 0.999999
      %v5416 = vmin.f32 %v5400, 0.999999
      %v5417 = vmin.f32 %v5401, 0.999999
      %v5418 = vmin.f32 %v5402, 0.999999
      %v5419 = vmin.f32 %v5403, 0.999999
      %v5420 = vmin.f32 %v5404, 0.999999
      %v5421 = vmin.f32 %v5405, 0.999999
      %v5422 = vmin.f32 %v5406, 0.999999
      %v5423 = vmin.f32 %v5407, 0.999999
      %v5424 = vmin.f32 %v5408, 0.999999
      %v5425 = vmin.f32 %v5409, 0.999999
      %v5426 = vmin.f32 %v5410, 0.999999
      %v5427 = vmin.f32 %v5411, 0.999999
      %v5428 = vadd.f32 %v5412, 1.0
      %v5429 = vadd.f32 %v5413, 1.0
      %v5430 = vadd.f32 %v5414, 1.0
      %v5431 = vadd.f32 %v5415, 1.0
      %v5432 = vadd.f32 %v5416, 1.0
      %v5433 = vadd.f32 %v5417, 1.0
      %v5434 = vadd.f32 %v5418, 1.0
      %v5435 = vadd.f32 %v5419, 1.0
      %v5436 = vadd.f32 %v5420, 1.0
      %v5437 = vadd.f32 %v5421, 1.0
      %v5438 = vadd.f32 %v5422, 1.0
      %v5439 = vadd.f32 %v5423, 1.0
      %v5440 = vadd.f32 %v5424, 1.0
      %v5441 = vadd.f32 %v5425, 1.0
      %v5442 = vadd.f32 %v5426, 1.0
      %v5443 = vadd.f32 %v5427, 1.0
      %v5444 = vsub.f32 1.0, %v5412
      %v5445 = vsub.f32 1.0, %v5413
      %v5446 = vsub.f32 1.0, %v5414
      %v5447 = vsub.f32 1.0, %v5415
      %v5448 = vsub.f32 1.0, %v5416
      %v5449 = vsub.f32 1.0, %v5417
      %v5450 = vsub.f32 1.0, %v5418
      %v5451 = vsub.f32 1.0, %v5419
      %v5452 = vsub.f32 1.0, %v5420
      %v5453 = vsub.f32 1.0, %v5421
      %v5454 = vsub.f32 1.0, %v5422
      %v5455 = vsub.f32 1.0, %v5423
      %v5456 = vsub.f32 1.0, %v5424
      %v5457 = vsub.f32 1.0, %v5425
      %v5458 = vsub.f32 1.0, %v5426
      %v5459 = vsub.f32 1.0, %v5427
      %v5460 = vrcp.pop %v5444
      %v5461 = vrcp.pop %v5445
      %v5462 = vrcp.pop %v5446
      %v5463 = vrcp.pop %v5447
      %v5464 = vrcp.pop %v5448
      %v5465 = vrcp.pop %v5449
      %v5466 = vrcp.pop %v5450
      %v5467 = vrcp.pop %v5451
      %v5468 = vrcp.pop %v5452
      %v5469 = vrcp.pop %v5453
      %v5470 = vrcp.pop %v5454
      %v5471 = vrcp.pop %v5455
      %v5472 = vrcp.pop %v5456
      %v5473 = vrcp.pop %v5457
      %v5474 = vrcp.pop %v5458
      %v5475 = vrcp.pop %v5459
      %v5476 = vmul.f32 %v5428, %v5460
      %v5477 = vmul.f32 %v5429, %v5461
      %v5478 = vmul.f32 %v5430, %v5462
      %v5479 = vmul.f32 %v5431, %v5463
      %v5480 = vmul.f32 %v5432, %v5464
      %v5481 = vmul.f32 %v5433, %v5465
      %v5482 = vmul.f32 %v5434, %v5466
      %v5483 = vmul.f32 %v5435, %v5467
      %v5484 = vmul.f32 %v5436, %v5468
      %v5485 = vmul.f32 %v5437, %v5469
      %v5486 = vmul.f32 %v5438, %v5470
      %v5487 = vmul.f32 %v5439, %v5471
      %v5488 = vmul.f32 %v5440, %v5472
      %v5489 = vmul.f32 %v5441, %v5473
      %v5490 = vmul.f32 %v5442, %v5474
      %v5491 = vmul.f32 %v5443, %v5475
      %v5492 = vlog2.pop %v5476
      %v5493 = vmul.f32 %v5492, 0.6931472
      %v5494 = vlog2.pop %v5477
      %v5495 = vmul.f32 %v5494, 0.6931472
      %v5496 = vlog2.pop %v5478
      %v5497 = vmul.f32 %v5496, 0.6931472
      %v5498 = vlog2.pop %v5479
      %v5499 = vmul.f32 %v5498, 0.6931472
      %v5500 = vlog2.pop %v5480
      %v5501 = vmul.f32 %v5500, 0.6931472
      %v5502 = vlog2.pop %v5481
      %v5503 = vmul.f32 %v5502, 0.6931472
      %v5504 = vlog2.pop %v5482
      %v5505 = vmul.f32 %v5504, 0.6931472
      %v5506 = vlog2.pop %v5483
      %v5507 = vmul.f32 %v5506, 0.6931472
      %v5508 = vlog2.pop %v5484
      %v5509 = vmul.f32 %v5508, 0.6931472
      %v5510 = vlog2.pop %v5485
      %v5511 = vmul.f32 %v5510, 0.6931472
      %v5512 = vlog2.pop %v5486
      %v5513 = vmul.f32 %v5512, 0.6931472
      %v5514 = vlog2.pop %v5487
      %v5515 = vmul.f32 %v5514, 0.6931472
      %v5516 = vlog2.pop %v5488
      %v5517 = vmul.f32 %v5516, 0.6931472
      %v5518 = vlog2.pop %v5489
      %v5519 = vmul.f32 %v5518, 0.6931472
      %v5520 = vlog2.pop %v5490
      %v5521 = vmul.f32 %v5520, 0.6931472
      %v5522 = vlog2.pop %v5491
      %v5523 = vmul.f32 %v5522, 0.6931472
      %v5524 = vpack.c.bf16 %v5495, %v5493
      %v5525 = vpack.c.bf16 %v5499, %v5497
      %v5526 = vpack.c.bf16 %v5503, %v5501
      %v5527 = vpack.c.bf16 %v5507, %v5505
      %v5528 = vpack.c.bf16 %v5511, %v5509
      %v5529 = vpack.c.bf16 %v5515, %v5513
      %v5530 = vpack.c.bf16 %v5519, %v5517
      %v5531 = vpack.c.bf16 %v5523, %v5521
      %v5532 = vld [vmem:[%s4] sm:$0xf]
      %v5533 = vld [vmem:[%s4 + $0x4] sm:$0xf]
      %v5534 = vld [vmem:[%s4 + $0x8] sm:$0xf]
      %v5535 = vld [vmem:[%s4 + $0xc] sm:$0xf]
      %v5536 = vld [vmem:[%s4 + $0x10] sm:$0xf]
      %v5537 = vld [vmem:[%s4 + $0x14] sm:$0xf]
      %v5538 = vld [vmem:[%s4 + $0x18] sm:$0xf]
      %v5539 = vld [vmem:[%s4 + $0x1c] sm:$0xf]
      %v5540 = vld [vmem:[%s4 + $0x20] sm:$0xf]
      %v5541 = vld [vmem:[%s4 + $0x24] sm:$0xf]
      %v5542 = vld [vmem:[%s4 + $0x28] sm:$0xf]
      %v5543 = vld [vmem:[%s4 + $0x2c] sm:$0xf]
      %v5544 = vld [vmem:[%s4 + $0x30] sm:$0xf]
      %v5545 = vld [vmem:[%s4 + $0x34] sm:$0xf]
      %v5546 = vld [vmem:[%s4 + $0x38] sm:$0xf]
      %v5547 = vld [vmem:[%s4 + $0x3c] sm:$0xf]
      %v5564 = vunpack.c.l.b16 %v5532
      %v5565 = vunpack.c.l.b16 %v5533
      %v5566 = vunpack.c.l.b16 %v5534
      %v5567 = vunpack.c.l.b16 %v5535
      %v5568 = vunpack.c.l.b16 %v5536
      %v5569 = vunpack.c.l.b16 %v5537
      %v5570 = vunpack.c.l.b16 %v5538
      %v5571 = vunpack.c.l.b16 %v5539
      %v5572 = vunpack.c.l.b16 %v5540
      %v5573 = vunpack.c.l.b16 %v5541
      %v5574 = vunpack.c.l.b16 %v5542
      %v5575 = vunpack.c.l.b16 %v5543
      %v5576 = vunpack.c.l.b16 %v5544
      %v5577 = vunpack.c.l.b16 %v5545
      %v5578 = vunpack.c.l.b16 %v5546
      %v5579 = vunpack.c.l.b16 %v5547
      %v5580 = vpack.c.b16 %v5565, %v5564
      %v5581 = vpack.c.b16 %v5567, %v5566
      %v5582 = vpack.c.b16 %v5569, %v5568
      %v5583 = vpack.c.b16 %v5571, %v5570
      %v5584 = vpack.c.b16 %v5573, %v5572
      %v5585 = vpack.c.b16 %v5575, %v5574
      %v5586 = vpack.c.b16 %v5577, %v5576
      %v5587 = vpack.c.b16 %v5579, %v5578
      %5596 = vmatprep.subr.bf16.mxu0 0
      %5597 = vmatpush1.bf16.msra.mxu0 %v5580
      %5598 = vmatprep.subr.bf16.mxu0 0
      %5599 = vmatpush1.bf16.msra.mxu0 %v5581
      %5600 = vmatprep.subr.bf16.mxu0 0
      %5601 = vmatpush1.bf16.msra.mxu0 %v5582
      %5602 = vmatprep.subr.bf16.mxu0 0
      %5603 = vmatpush1.bf16.msra.mxu0 %v5583
      %5604 = vmatprep.subr.bf16.mxu0 0
      %5605 = vmatpush1.bf16.msra.mxu0 %v5584
      %5606 = vmatprep.subr.bf16.mxu0 0
      %5607 = vmatpush1.bf16.msra.mxu0 %v5585
      %5608 = vmatprep.subr.bf16.mxu0 0
      %5609 = vmatpush1.bf16.msra.mxu0 %v5586
      %5610 = vmatprep.subr.bf16.mxu0 0
      %5611 = vmatpush1.bf16.msra.mxu0 %v5587
      %5612 = vmatprep.subr.bf16.mxu0 0
      %5613 = vmatpush1.bf16.msra.mxu0 0
      %5614 = vmatprep.subr.bf16.mxu0 0
      %5615 = vmatpush1.bf16.msra.mxu0 0
      %5616 = vmatprep.subr.bf16.mxu0 0
      %5617 = vmatpush1.bf16.msra.mxu0 0
      %5618 = vmatprep.subr.bf16.mxu0 0
      %5619 = vmatpush1.bf16.msra.mxu0 0
      %5620 = vmatprep.subr.bf16.mxu0 0
      %5621 = vmatpush1.bf16.msra.mxu0 0
      %5622 = vmatprep.subr.bf16.mxu0 0
      %5623 = vmatpush1.bf16.msra.mxu0 0
      %5624 = vmatprep.subr.bf16.mxu0 0
      %5625 = vmatpush1.bf16.msra.mxu0 0
      %5626 = vmatprep.subr.bf16.mxu0 0
      %5627 = vmatpush1.bf16.msra.mxu0 0
      %5628 = vmatprep.mubr.bf16.mxu0 0
      %5629 = vmatmul.mubr.bf16.gmra.mrb[0].mxu0 %v5524
      %v5630 = vpop.f32.mrb[0].mxu0
      %v5631 = vadd.f32 0.0, %v5630
      %v5632 = vpop.f32.mrb[0].mxu0
      %v5633 = vpop.f32.mrb[0].mxu0
      %v5634 = vadd.f32 0.0, %v5633
      %v5635 = vpop.f32.mrb[0].mxu0
      %5636 = vmatprep.mubr.bf16.mxu0 0
      %5637 = vmatmul.mubr.bf16.gmra.mrb[0].mxu0 %v5525
      %v5638 = vpop.f32.mrb[0].mxu0
      %v5639 = vadd.f32 0.0, %v5638
      %v5640 = vpop.f32.mrb[0].mxu0
      %v5641 = vpop.f32.mrb[0].mxu0
      %v5642 = vadd.f32 0.0, %v5641
      %v5643 = vpop.f32.mrb[0].mxu0
      %5644 = vmatprep.mubr.bf16.mxu0 0
      %5645 = vmatmul.mubr.bf16.gmra.mrb[0].mxu0 %v5526
      %v5646 = vpop.f32.mrb[0].mxu0
      %v5647 = vadd.f32 0.0, %v5646
      %v5648 = vpop.f32.mrb[0].mxu0
      %v5649 = vpop.f32.mrb[0].mxu0
      %v5650 = vadd.f32 0.0, %v5649
      %v5651 = vpop.f32.mrb[0].mxu0
      %5652 = vmatprep.mubr.bf16.mxu0 0
      %5653 = vmatmul.mubr.bf16.gmra.mrb[0].mxu0 %v5527
      %v5654 = vpop.f32.mrb[0].mxu0
      %v5655 = vadd.f32 0.0, %v5654
      %v5656 = vpop.f32.mrb[0].mxu0
      %v5657 = vpop.f32.mrb[0].mxu0
      %v5658 = vadd.f32 0.0, %v5657
      %v5659 = vpop.f32.mrb[0].mxu0
      %5660 = vmatprep.mubr.bf16.mxu0 0
      %5661 = vmatmul.mubr.bf16.gmra.mrb[0].mxu0 %v5528
      %v5662 = vpop.f32.mrb[0].mxu0
      %v5663 = vadd.f32 0.0, %v5662
      %v5664 = vpop.f32.mrb[0].mxu0
      %v5665 = vpop.f32.mrb[0].mxu0
      %v5666 = vadd.f32 0.0, %v5665
      %v5667 = vpop.f32.mrb[0].mxu0
      %5668 = vmatprep.mubr.bf16.mxu0 0
      %5669 = vmatmul.mubr.bf16.gmra.mrb[0].mxu0 %v5529
      %v5670 = vpop.f32.mrb[0].mxu0
      %v5671 = vadd.f32 0.0, %v5670
      %v5672 = vpop.f32.mrb[0].mxu0
      %v5673 = vpop.f32.mrb[0].mxu0
      %v5674 = vadd.f32 0.0, %v5673
      %v5675 = vpop.f32.mrb[0].mxu0
      %5676 = vmatprep.mubr.bf16.mxu0 0
      %5677 = vmatmul.mubr.bf16.gmra.mrb[0].mxu0 %v5530
      %v5678 = vpop.f32.mrb[0].mxu0
      %v5679 = vadd.f32 0.0, %v5678
      %v5680 = vpop.f32.mrb[0].mxu0
      %v5681 = vpop.f32.mrb[0].mxu0
      %v5682 = vadd.f32 0.0, %v5681
      %v5683 = vpop.f32.mrb[0].mxu0
      %5684 = vmatprep.mubr.bf16.mxu0 0
      %5685 = vmatmul.mubr.bf16.gmra.mrb[0].mxu0 %v5531
      %v5686 = vpop.f32.mrb[0].mxu0
      %v5687 = vadd.f32 0.0, %v5686
      %v5688 = vpop.f32.mrb[0].mxu0
      %v5689 = vpop.f32.mrb[0].mxu0
      %v5690 = vadd.f32 0.0, %v5689
      %v5691 = vpop.f32.mrb[0].mxu0
      %5692 = vdwg.mxu0
      %v5693 = vadd.f32 %v229, %v5631
      %v5694 = vadd.f32 %v230, %v5634
      %v5695 = vadd.f32 %v231, %v5639
      %v5696 = vadd.f32 %v232, %v5642
      %v5697 = vadd.f32 %v233, %v5647
      %v5698 = vadd.f32 %v234, %v5650
      %v5699 = vadd.f32 %v235, %v5655
      %v5700 = vadd.f32 %v236, %v5658
      %v5701 = vadd.f32 %v237, %v5663
      %v5702 = vadd.f32 %v238, %v5666
      %v5703 = vadd.f32 %v239, %v5671
      %v5704 = vadd.f32 %v240, %v5674
      %v5705 = vadd.f32 %v241, %v5679
      %v5706 = vadd.f32 %v242, %v5682
      %v5707 = vadd.f32 %v243, %v5687
      %v5708 = vadd.f32 %v244, %v5690
      %5709 = vst [vmem:[%s226] sm:$0xff] %v5693
      %5710 = vst [vmem:[%s226 + $0x8] sm:$0xff] %v5694
      %5711 = vst [vmem:[%s226 + $0x10] sm:$0xff] %v5695
      %5712 = vst [vmem:[%s226 + $0x18] sm:$0xff] %v5696
      %5713 = vst [vmem:[%s226 + $0x20] sm:$0xff] %v5697
      %5714 = vst [vmem:[%s226 + $0x28] sm:$0xff] %v5698
      %5715 = vst [vmem:[%s226 + $0x30] sm:$0xff] %v5699
      %5716 = vst [vmem:[%s226 + $0x38] sm:$0xff] %v5700
      %5717 = vst [vmem:[%s226 + $0x40] sm:$0xff] %v5701
      %5718 = vst [vmem:[%s226 + $0x48] sm:$0xff] %v5702
      %5719 = vst [vmem:[%s226 + $0x50] sm:$0xff] %v5703
      %5720 = vst [vmem:[%s226 + $0x58] sm:$0xff] %v5704
      %5721 = vst [vmem:[%s226 + $0x60] sm:$0xff] %v5705
      %5722 = vst [vmem:[%s226 + $0x68] sm:$0xff] %v5706
      %5723 = vst [vmem:[%s226 + $0x70] sm:$0xff] %v5707
      %5724 = vst [vmem:[%s226 + $0x78] sm:$0xff] %v5708
      %s5725 = smul.u32 16, %s16
      %p5726 = scmp.lt.s32.totalorder %s5725, 31
      %s5727 = scalar_select %p5726, %s5725, 31
      %s5728 = smul.addr %s5727, 8
      %s5729 = scalar_lea.vmem %s5, %s5728
      // Predicated region
      $region41: #{cycnet_forward.1} parent=39 // pred_check
        %p5730 = pneg %p144
      $region42: #{cycnet_forward.1} parent=39 // pred_check_branch
        %5732 = sbr.rel (%p5730) target = $region44
      $region43: #{cycnet_forward.1} parent=39 // pred_region
        %s5733 = smul.u32 16, %s16
      $region44: #{cycnet_forward.1} parent=39 // pred_fallthru
        _
    $region40: #{cycnet_forward.1} parent=5 // pred_fallthru
      _
    %p5734 = scmp.le.s32.totalorder 2, %s11
    // Predicated region
    $region45: #{cycnet_forward.1} parent=5 // pred_check
      %p5735 = pneg %p5734
    $region46: #{cycnet_forward.1} parent=5 // pred_check_branch
      %5737 = sbr.rel (%p5735) target = $region48
    $region47: #{cycnet_forward.1} parent=5 // pred_region
      %s5738 = ssub.s32 %s11, 2
      // Predicated region
      $region49: #{cycnet_forward.1} parent=47 // pred_check
        %p5739 = pneg %p150
      $region50: #{cycnet_forward.1} parent=47 // pred_check_branch
        %5741 = sbr.rel (%p5739) target = $region52
      $region51: #{cycnet_forward.1} parent=47 // pred_region
        %s5742 = smul.u32 16, %s17
        %p5743 = scmp.lt.s32.totalorder %s5742, 31
        %s5744 = scalar_select %p5743, %s5742, 31
        %s5745 = smul.addr %s5744, 8
        %s5746 = scalar_lea.vmem %s5, %s5745
      $region52: #{cycnet_forward.1} parent=47 // pred_fallthru
        _
    $region48: #{cycnet_forward.1} parent=5 // pred_fallthru
      _
  $region6: #{cycnet_forward.1} parent=0 // loop_footer
    %s15 = sadd.s32 1, %s11
  $region7: #{cycnet_forward.1} parent=0 // loop_footer_branch
    %10 = sbr.rel target = $region3
  $region8: #{cycnet_forward.1} parent=0 // loop_exit
    _

</llo_original>
